<compile_context>
chip_gen: v5e
topology: v5e:2x2
jax: 0.10.0
libtpu: 0.0.40
codegen_flags: <defaults>
</compile_context>

<pallas_src>
import functools

import numpy as np
import jax
import jax.numpy as jnp
from jax.experimental import pallas as pl
from jax.experimental.pallas import tpu as pltpu

LANES = 128        # output channels padded to a multiple of this (lane-dense vst)
TARGET_TM = 512    # target pixel rows per pass-1 tile (rounded to a multiple of Wt)


def _round_up(x, m):
    return ((x + m - 1) // m) * m


# ------------------------------ pass-1 kernel --------------------------------

def _conv_bn_stats_kernel(top_ref, ctr_ref, bot_ref, w_ref, msk_ref,
                          y_ref, s_ref, sq_ref, acc_ref, *, wt, tm):
    """3x3 conv as 3 kh taps of K=3*Cin matmuls + fused BN partial statistics.

    top_ref : (wt, 3*Cin)  bf16  slab rows one image row above the tile
    ctr_ref : (tm, 3*Cin)  bf16  slab rows of the tile (kw taps fused in lanes)
    bot_ref : (wt, 3*Cin)  bf16  slab rows one image row below the tile
    w_ref   : (3, 3*Cin, Cpad) bf16  one (3*Cin, Cpad) weight slice per kh tap
    msk_ref : (1, tm)      f32   1.0 for rows that are real output pixels
    y_ref   : (tm, Cpad)   f32   conv output tile
    s_ref   : (1, Cpad)    f32   per-tile masked sum_i y[i, :]
    sq_ref  : (1, Cpad)    f32   per-tile masked sum_i y[i, :]**2
    acc_ref : (tm, Cpad)   f32   VMEM scratch accumulator
    """
    f32 = jnp.float32
    # kh = 1 : center image row, full tile.
    acc_ref[...] = jnp.dot(ctr_ref[...], w_ref[1], preferred_element_type=f32)
    # kh = 0 : image row above.  First `wt` output rows read the top halo, the
    # rest read the center block shifted up by one image row (wt slab rows).
    acc_ref[pl.ds(0, wt), :] = acc_ref[pl.ds(0, wt), :] + jnp.dot(
        top_ref[...], w_ref[0], preferred_element_type=f32)
    if tm > wt:
        acc_ref[pl.ds(wt, tm - wt), :] = acc_ref[pl.ds(wt, tm - wt), :] + jnp.dot(
            ctr_ref[pl.ds(0, tm - wt), :], w_ref[0], preferred_element_type=f32)
        # kh = 2 : image row below (center part).
        acc_ref[pl.ds(0, tm - wt), :] = acc_ref[pl.ds(0, tm - wt), :] + jnp.dot(
            ctr_ref[pl.ds(wt, tm - wt), :], w_ref[2], preferred_element_type=f32)
    acc_ref[pl.ds(tm - wt, wt), :] = acc_ref[pl.ds(tm - wt, wt), :] + jnp.dot(
        bot_ref[...], w_ref[2], preferred_element_type=f32)

    y = acc_ref[...]
    y_ref[...] = y
    # Masked per-tile BN partials via a small MXU matmul (lane-dense mask row;
    # broadcast to 8 sublanes to stay tile-friendly, keep row 0).
    m8 = jnp.broadcast_to(msk_ref[...], (8, tm))
    s_ref[...] = jnp.dot(m8, y, preferred_element_type=f32)[0:1, :]
    sq_ref[...] = jnp.dot(m8, y * y, preferred_element_type=f32)[0:1, :]


# ------------------------------ pass-2 kernel --------------------------------

def _bn_act_kernel(y_ref, scale_ref, shift_ref, o_ref, *, alpha):
    # y_hat = (y - mean) * gamma / sqrt(var + eps) + beta folded into scale/shift
    z = y_ref[...] * scale_ref[...] + shift_ref[...]
    o_ref[...] = jnp.where(z >= 0, z, alpha * z)          # LeakyReLU


# --------------------------------- wrapper -----------------------------------

@functools.partial(jax.jit, static_argnames=("eps", "alpha_leaky"))
def conv_block_forward(x, weight, bias, gamma, beta, *,
                       eps=1e-5, alpha_leaky=0.03):
    """x: (N, Cin, H, W) f32. weight: (Cout, Cin, 3, 3). Returns (N, Cout, H, W)."""
    del bias  # cancels exactly in (y - mean) under training-mode BatchNorm

    N, Cin, H, W = x.shape
    Cout = weight.shape[0]
    Cpad = _round_up(Cout, LANES)
    Hp = H + 2
    Wt = _round_up(W, 16)               # padded width: lane/sublane friendly slices
    Kc = 3 * Cin                        # kw-fused contraction size
    TR = max(1, TARGET_TM // Wt)        # image rows per pass-1 tile
    TM = TR * Wt                        # pass-1 tile rows (multiple of Wt and 16)
    Mrows = N * Hp * Wt                 # slab rows = padded image rows x padded width
    n_chunks = -(-Mrows // TM)
    TM2 = TM * min(4, n_chunks)         # pass-2 tile rows (pure streaming -> bigger)
    Mp = _round_up(Mrows, TM2)          # output slab rows (multiple of TM and TM2)
    n1 = Mp // TM
    n2 = Mp // TM2

    # ---- glue: kw-fused, width-padded, bf16 input slab (XLA fuses this chain) ----
    x_nhwc = jnp.transpose(x, (0, 2, 3, 1)).astype(jnp.bfloat16)      # (N,H,W,Cin)
    xp = jnp.pad(x_nhwc, ((0, 0), (1, 1), (1, 1), (0, 0)))            # (N,Hp,W+2,Cin)
    xs = jnp.concatenate(                                             # kw fusion
        [xp[:, :, 0:W, :], xp[:, :, 1:W + 1, :], xp[:, :, 2:W + 2, :]], axis=-1)
    xs = jnp.pad(xs, ((0, 0), (0, 0), (0, Wt - W), (0, 0)))           # (N,Hp,Wt,3Cin)
    xs = xs.reshape(Mrows, Kc)
    # Guard rows: TM zeros on top (center of tile i is block i+1) + tail guard.
    xs_g = jnp.pad(xs, ((TM, TM + Mp - Mrows), (0, 0)))               # (Mp+2TM, Kc)

    # weight[co, c, kh, kw] -> taps[kh, kw*Cin + c, co], Cpad lanes, bf16
    w_taps = jnp.transpose(weight, (2, 3, 1, 0)).reshape(3, Kc, Cout)
    w_taps = jnp.pad(w_taps, ((0, 0), (0, 0), (0, Cpad - Cout))).astype(jnp.bfloat16)

    # Static row-validity mask, lane-dense (n1, 1, TM).
    q = np.arange(Mp)
    rr = q % (Hp * Wt)
    hp, wc = rr // Wt, rr % Wt
    valid = (q < Mrows) & (hp >= 1) & (hp <= H) & (wc < W)
    mask = jnp.asarray(valid.astype(np.float32).reshape(n1, 1, TM))

    # ---- explicit scoped-VMEM limits sized from the per-tile footprint ----
    def blk_bytes(shape, dtype, bufs=2):
        sub = 16 if dtype == jnp.bfloat16 else 8
        r = _round_up(shape[-2], sub) if len(shape) >= 2 else 1
        c = _round_up(shape[-1], LANES)
        lead = int(np.prod(shape[:-2])) if len(shape) > 2 else 1
        return lead * r * c * jnp.dtype(dtype).itemsize * bufs

    vmem1 = (2 * blk_bytes((Wt, Kc), jnp.bfloat16)            # halos
             + blk_bytes((TM, Kc), jnp.bfloat16)              # center
             + blk_bytes((3, Kc, Cpad), jnp.bfloat16)         # weights
             + blk_bytes((1, TM), jnp.float32)                 # mask
             + blk_bytes((TM, Cpad), jnp.float32)              # y out
             + 2 * blk_bytes((1, Cpad), jnp.float32)           # stats out
             + blk_bytes((TM, Cpad), jnp.float32, bufs=1))     # acc scratch
    vmem1 = int(min(max(4 * vmem1, 32 * 2**20), 64 * 2**20))
    vmem2 = (2 * blk_bytes((TM2, Cpad), jnp.float32)
             + 2 * blk_bytes((1, Cpad), jnp.float32))
    vmem2 = int(min(max(4 * vmem2, 32 * 2**20), 64 * 2**20))

    # ---- pass 1: streamed conv (bf16 MXU, K=3*Cin) + fused BN partial stats ----
    y_wide, psum, psq = pl.pallas_call(
        functools.partial(_conv_bn_stats_kernel, wt=Wt, tm=TM),
        out_shape=(jax.ShapeDtypeStruct((Mp, Cpad), jnp.float32),
                   jax.ShapeDtypeStruct((n1, 1, Cpad), jnp.float32),
                   jax.ShapeDtypeStruct((n1, 1, Cpad), jnp.float32)),
        grid=(n1,),
        in_specs=[
            pl.BlockSpec((Wt, Kc), lambda i: ((i + 1) * TR - 1, 0)),   # top halo
            pl.BlockSpec((TM, Kc), lambda i: (i + 1, 0)),              # center strip
            pl.BlockSpec((Wt, Kc), lambda i: ((i + 2) * TR, 0)),       # bottom halo
            pl.BlockSpec((3, Kc, Cpad), lambda i: (0, 0, 0)),          # weights (tiny)
            pl.BlockSpec((None, 1, TM), lambda i: (i, 0, 0)),          # row mask
        ],
        out_specs=(pl.BlockSpec((TM, Cpad), lambda i: (i, 0)),
                   pl.BlockSpec((None, 1, Cpad), lambda i: (i, 0, 0)),
                   pl.BlockSpec((None, 1, Cpad), lambda i: (i, 0, 0))),
        scratch_shapes=[pltpu.VMEM((TM, Cpad), jnp.float32)],
        compiler_params=pltpu.CompilerParams(
            dimension_semantics=("parallel",),
            vmem_limit_bytes=vmem1),
    )(xs_g, xs_g, xs_g, w_taps, mask)

    # ---- tiny reductions + fold BN into scale/shift (training mode, biased var) ----
    cnt = float(N * H * W)
    s_tot = jnp.sum(psum, axis=0)                      # (1, Cpad)
    sq_tot = jnp.sum(psq, axis=0)                      # (1, Cpad)
    mean = s_tot / cnt
    var = jnp.maximum(sq_tot / cnt - mean * mean, 0.0)
    gamma_p = jnp.pad(gamma, (0, Cpad - Cout)).reshape(1, Cpad)
    beta_p = jnp.pad(beta, (0, Cpad - Cout)).reshape(1, Cpad)
    scale = gamma_p * jax.lax.rsqrt(var + eps)
    shift = beta_p - mean * scale

    # ---- pass 2: normalize + affine + LeakyReLU, big blocks, aliased in-place ----
    act = pl.pallas_call(
        functools.partial(_bn_act_kernel, alpha=alpha_leaky),
        out_shape=jax.ShapeDtypeStruct((Mp, Cpad), jnp.float32),
        grid=(n2,),
        in_specs=[pl.BlockSpec((TM2, Cpad), lambda i: (i, 0)),
                  pl.BlockSpec((1, Cpad), lambda i: (0, 0)),
                  pl.BlockSpec((1, Cpad), lambda i: (0, 0))],
        out_specs=pl.BlockSpec((TM2, Cpad), lambda i: (i, 0)),
        input_output_aliases={0: 0},
        compiler_params=pltpu.CompilerParams(
            dimension_semantics=("parallel",),
            vmem_limit_bytes=vmem2),
    )(y_wide, scale, shift)

    # ---- slice valid pixels/channels, restore NCHW (small XLA epilogue) ----
    out = act[:Mrows].reshape(N, Hp, Wt, Cpad)[:, 1:H + 1, :W, :Cout]
    return jnp.transpose(out, (0, 3, 1, 2))


# ---------------- reference (plain JAX) for sanity ----------------

def conv_block_reference(x, weight, bias, gamma, beta, *, eps=1e-5, alpha_leaky=0.03):
    y = jax.lax.conv_general_dilated(
        x, weight, window_strides=(1, 1), padding=((1, 1), (1, 1)),
        dimension_numbers=('NCHW', 'OIHW', 'NCHW')) + bias.reshape(1, -1, 1, 1)
    mean = y.mean(axis=(0, 2, 3), keepdims=True)
    var = y.var(axis=(0, 2, 3), keepdims=True)
    z = (y - mean) * jax.lax.rsqrt(var + eps) * gamma.reshape(1, -1, 1, 1) \
        + beta.reshape(1, -1, 1, 1)
    return jnp.where(z >= 0, z, alpha_leaky * z)


if __name__ == "__main__":
    key = jax.random.PRNGKey(0)
    k_x, k_w, k_b, k_g, k_be = jax.random.split(key, 5)

    N, Cin, Cout, H, W = 2, 4, 8, 16, 16

    x = jax.random.normal(k_x, (N, Cin, H, W), dtype=jnp.float32)
    weight = jax.random.normal(k_w, (Cout, Cin, 3, 3), dtype=jnp.float32) * 0.1
    bias = jax.random.normal(k_b, (Cout,), dtype=jnp.float32) * 0.1
    gamma = 1.0 + 0.1 * jax.random.normal(k_g, (Cout,), dtype=jnp.float32)
    beta = 0.1 * jax.random.normal(k_be, (Cout,), dtype=jnp.float32)

    out = conv_block_forward(x, weight, bias, gamma, beta)
    out = jax.block_until_ready(out)

    ref = conv_block_reference(x, weight, bias, gamma, beta)
    assert out.shape == (N, Cout, H, W)
    # Tolerance relaxed (2e-2) because matmul operands are bf16 (f32 accumulation),
    # as recommended for v6e/v7x; BN normalization keeps the error well inside this.
    assert jnp.allclose(out, ref, rtol=2e-2, atol=2e-2), "mismatch vs reference"

    print("KERNEL_OK")
</pallas_src>

<mosaic_0001>
module attributes {stable_mosaic.version = 11 : i64} {
  func.func @_conv_bn_stats_kernel(%arg0: i32, %arg1: memref<16x12xbf16, #tpu.memory_space<vmem>>, %arg2: memref<512x12xbf16, #tpu.memory_space<vmem>>, %arg3: memref<16x12xbf16, #tpu.memory_space<vmem>>, %arg4: memref<3x12x128xbf16, #tpu.memory_space<vmem>>, %arg5: memref<1x1x512xf32, #tpu.memory_space<vmem>>, %arg6: memref<512x128xf32, #tpu.memory_space<vmem>>, %arg7: memref<1x1x128xf32, #tpu.memory_space<vmem>>, %arg8: memref<1x1x128xf32, #tpu.memory_space<vmem>>, %arg9: memref<512x128xf32, #tpu.memory_space<vmem>>) attributes {dimension_semantics = [#tpu.dimension_semantics<parallel>], iteration_bounds = array<i64: 2>, scalar_prefetch = 0 : i64, scratch_operands = 1 : i64, tpu.core_type = #tpu.core_type<tc>, window_params = [{transform_indices = @transform_0, window_bounds = array<i64: 16, 12>}, {transform_indices = @transform_1, window_bounds = array<i64: 512, 12>}, {transform_indices = @transform_2, window_bounds = array<i64: 16, 12>}, {pipeline_mode = #tpu.pipeline_mode<synchronous>, transform_indices = @transform_3, window_bounds = array<i64: 3, 12, 128>}, {transform_indices = @transform_4, window_bounds = array<i64: 1, 1, 512>}, {transform_indices = @transform_5, window_bounds = array<i64: 512, 128>}, {transform_indices = @transform_6, window_bounds = array<i64: 1, 1, 128>}, {transform_indices = @transform_7, window_bounds = array<i64: 1, 1, 128>}]} {
    %c0 = arith.constant 0 : index
    %c0_0 = arith.constant 0 : index
    %0 = vector.load %arg2[%c0, %c0_0] : memref<512x12xbf16, #tpu.memory_space<vmem>>, vector<512x12xbf16>
    %c1 = arith.constant 1 : index
    %c0_1 = arith.constant 0 : index
    %c0_2 = arith.constant 0 : index
    %1 = vector.load %arg4[%c1, %c0_1, %c0_2] : memref<3x12x128xbf16, #tpu.memory_space<vmem>>, vector<1x12x128xbf16>
    %2 = vector.shape_cast %1 : vector<1x12x128xbf16> to vector<12x128xbf16>
    %cst = arith.constant dense<0.000000e+00> : vector<512x128xf32>
    %3 = tpu.matmul %0, %2, %cst {dimension_numbers = #tpu.dot_dimension_numbers<[1], [0], [0], [1], [0, 0, 1, 1], [], []>} : vector<512x12xbf16>, vector<12x128xbf16>, vector<512x128xf32> -> vector<512x128xf32>
    %c0_3 = arith.constant 0 : index
    %c0_4 = arith.constant 0 : index
    %4 = vector.load %arg9[%c0_3, %c0_4] : memref<512x128xf32, #tpu.memory_space<vmem>>, vector<512x128xf32>
    tpu.vector_store %arg9[%c0_3, %c0_4], %3 {strides = array<i32>} : memref<512x128xf32, #tpu.memory_space<vmem>>, vector<512x128xf32>,
    %c0_5 = arith.constant 0 : index
    %c0_6 = arith.constant 0 : index
    %5 = vector.load %arg9[%c0_5, %c0_6] : memref<512x128xf32, #tpu.memory_space<vmem>>, vector<16x128xf32>
    %c0_7 = arith.constant 0 : index
    %c0_8 = arith.constant 0 : index
    %6 = vector.load %arg1[%c0_7, %c0_8] : memref<16x12xbf16, #tpu.memory_space<vmem>>, vector<16x12xbf16>
    %c0_9 = arith.constant 0 : index
    %c0_10 = arith.constant 0 : index
    %c0_11 = arith.constant 0 : index
    %7 = vector.load %arg4[%c0_9, %c0_10, %c0_11] : memref<3x12x128xbf16, #tpu.memory_space<vmem>>, vector<1x12x128xbf16>
    %8 = vector.shape_cast %7 : vector<1x12x128xbf16> to vector<12x128xbf16>
    %cst_12 = arith.constant dense<0.000000e+00> : vector<16x128xf32>
    %9 = tpu.matmul %6, %8, %cst_12 {dimension_numbers = #tpu.dot_dimension_numbers<[1], [0], [0], [1], [0, 0, 1, 1], [], []>} : vector<16x12xbf16>, vector<12x128xbf16>, vector<16x128xf32> -> vector<16x128xf32>
    %10 = arith.addf %5, %9 : vector<16x128xf32>
    %c0_13 = arith.constant 0 : index
    %c0_14 = arith.constant 0 : index
    %11 = vector.load %arg9[%c0_13, %c0_14] : memref<512x128xf32, #tpu.memory_space<vmem>>, vector<16x128xf32>
    tpu.vector_store %arg9[%c0_13, %c0_14], %10 {strides = array<i32>} : memref<512x128xf32, #tpu.memory_space<vmem>>, vector<16x128xf32>,
    %c16 = arith.constant 16 : index
    %c0_15 = arith.constant 0 : index
    %12 = vector.load %arg9[%c16, %c0_15] : memref<512x128xf32, #tpu.memory_space<vmem>>, vector<496x128xf32>
    %c0_16 = arith.constant 0 : index
    %c0_17 = arith.constant 0 : index
    %13 = vector.load %arg2[%c0_16, %c0_17] : memref<512x12xbf16, #tpu.memory_space<vmem>>, vector<496x12xbf16>
    %c0_18 = arith.constant 0 : index
    %c0_19 = arith.constant 0 : index
    %c0_20 = arith.constant 0 : index
    %14 = vector.load %arg4[%c0_18, %c0_19, %c0_20] : memref<3x12x128xbf16, #tpu.memory_space<vmem>>, vector<1x12x128xbf16>
    %15 = vector.shape_cast %14 : vector<1x12x128xbf16> to vector<12x128xbf16>
    %cst_21 = arith.constant dense<0.000000e+00> : vector<496x128xf32>
    %16 = tpu.matmul %13, %15, %cst_21 {dimension_numbers = #tpu.dot_dimension_numbers<[1], [0], [0], [1], [0, 0, 1, 1], [], []>} : vector<496x12xbf16>, vector<12x128xbf16>, vector<496x128xf32> -> vector<496x128xf32>
    %17 = arith.addf %12, %16 : vector<496x128xf32>
    %c16_22 = arith.constant 16 : index
    %c0_23 = arith.constant 0 : index
    %18 = vector.load %arg9[%c16_22, %c0_23] : memref<512x128xf32, #tpu.memory_space<vmem>>, vector<496x128xf32>
    tpu.vector_store %arg9[%c16_22, %c0_23], %17 {strides = array<i32>} : memref<512x128xf32, #tpu.memory_space<vmem>>, vector<496x128xf32>,
    %c0_24 = arith.constant 0 : index
    %c0_25 = arith.constant 0 : index
    %19 = vector.load %arg9[%c0_24, %c0_25] : memref<512x128xf32, #tpu.memory_space<vmem>>, vector<496x128xf32>
    %c16_26 = arith.constant 16 : index
    %c0_27 = arith.constant 0 : index
    %20 = vector.load %arg2[%c16_26, %c0_27] : memref<512x12xbf16, #tpu.memory_space<vmem>>, vector<496x12xbf16>
    %c2 = arith.constant 2 : index
    %c0_28 = arith.constant 0 : index
    %c0_29 = arith.constant 0 : index
    %21 = vector.load %arg4[%c2, %c0_28, %c0_29] : memref<3x12x128xbf16, #tpu.memory_space<vmem>>, vector<1x12x128xbf16>
    %22 = vector.shape_cast %21 : vector<1x12x128xbf16> to vector<12x128xbf16>
    %cst_30 = arith.constant dense<0.000000e+00> : vector<496x128xf32>
    %23 = tpu.matmul %20, %22, %cst_30 {dimension_numbers = #tpu.dot_dimension_numbers<[1], [0], [0], [1], [0, 0, 1, 1], [], []>} : vector<496x12xbf16>, vector<12x128xbf16>, vector<496x128xf32> -> vector<496x128xf32>
    %24 = arith.addf %19, %23 : vector<496x128xf32>
    %c0_31 = arith.constant 0 : index
    %c0_32 = arith.constant 0 : index
    %25 = vector.load %arg9[%c0_31, %c0_32] : memref<512x128xf32, #tpu.memory_space<vmem>>, vector<496x128xf32>
    tpu.vector_store %arg9[%c0_31, %c0_32], %24 {strides = array<i32>} : memref<512x128xf32, #tpu.memory_space<vmem>>, vector<496x128xf32>,
    %c496 = arith.constant 496 : index
    %c0_33 = arith.constant 0 : index
    %26 = vector.load %arg9[%c496, %c0_33] : memref<512x128xf32, #tpu.memory_space<vmem>>, vector<16x128xf32>
    %c0_34 = arith.constant 0 : index
    %c0_35 = arith.constant 0 : index
    %27 = vector.load %arg3[%c0_34, %c0_35] : memref<16x12xbf16, #tpu.memory_space<vmem>>, vector<16x12xbf16>
    %c2_36 = arith.constant 2 : index
    %c0_37 = arith.constant 0 : index
    %c0_38 = arith.constant 0 : index
    %28 = vector.load %arg4[%c2_36, %c0_37, %c0_38] : memref<3x12x128xbf16, #tpu.memory_space<vmem>>, vector<1x12x128xbf16>
    %29 = vector.shape_cast %28 : vector<1x12x128xbf16> to vector<12x128xbf16>
    %cst_39 = arith.constant dense<0.000000e+00> : vector<16x128xf32>
    %30 = tpu.matmul %27, %29, %cst_39 {dimension_numbers = #tpu.dot_dimension_numbers<[1], [0], [0], [1], [0, 0, 1, 1], [], []>} : vector<16x12xbf16>, vector<12x128xbf16>, vector<16x128xf32> -> vector<16x128xf32>
    %31 = arith.addf %26, %30 : vector<16x128xf32>
    %c496_40 = arith.constant 496 : index
    %c0_41 = arith.constant 0 : index
    %32 = vector.load %arg9[%c496_40, %c0_41] : memref<512x128xf32, #tpu.memory_space<vmem>>, vector<16x128xf32>
    tpu.vector_store %arg9[%c496_40, %c0_41], %31 {strides = array<i32>} : memref<512x128xf32, #tpu.memory_space<vmem>>, vector<16x128xf32>,
    %c0_42 = arith.constant 0 : index
    %c0_43 = arith.constant 0 : index
    %33 = vector.load %arg9[%c0_42, %c0_43] : memref<512x128xf32, #tpu.memory_space<vmem>>, vector<512x128xf32>
    %c0_44 = arith.constant 0 : index
    %c0_45 = arith.constant 0 : index
    %34 = vector.load %arg6[%c0_44, %c0_45] : memref<512x128xf32, #tpu.memory_space<vmem>>, vector<512x128xf32>
    tpu.vector_store %arg6[%c0_44, %c0_45], %33 {strides = array<i32>} : memref<512x128xf32, #tpu.memory_space<vmem>>, vector<512x128xf32>,
    %c0_46 = arith.constant 0 : index
    %c0_47 = arith.constant 0 : index
    %c0_48 = arith.constant 0 : index
    %35 = vector.load %arg5[%c0_46, %c0_47, %c0_48] : memref<1x1x512xf32, #tpu.memory_space<vmem>>, vector<1x1x512xf32>
    %36 = vector.shape_cast %35 : vector<1x1x512xf32> to vector<1x512xf32>
    %37 = vector.shape_cast %36 : vector<1x512xf32> to vector<1x512xf32>
    %38 = vector.broadcast %37 : vector<1x512xf32> to vector<8x512xf32>
    %cst_49 = arith.constant dense<0.000000e+00> : vector<8x128xf32>
    %39 = tpu.matmul %38, %33, %cst_49 {dimension_numbers = #tpu.dot_dimension_numbers<[1], [0], [0], [1], [0, 0, 1, 1], [], []>} : vector<8x512xf32>, vector<512x128xf32>, vector<8x128xf32> -> vector<8x128xf32>
    %40 = vector.extract_strided_slice %39 {offsets = [0, 0], sizes = [1, 128], strides = [1, 1]} : vector<8x128xf32> to vector<1x128xf32>
    %c0_50 = arith.constant 0 : index
    %c0_51 = arith.constant 0 : index
    %c0_52 = arith.constant 0 : index
    %41 = vector.load %arg7[%c0_50, %c0_51, %c0_52] : memref<1x1x128xf32, #tpu.memory_space<vmem>>, vector<1x1x128xf32>
    %42 = vector.shape_cast %41 : vector<1x1x128xf32> to vector<1x128xf32>
    %43 = vector.shape_cast %40 : vector<1x128xf32> to vector<1x1x128xf32>
    tpu.vector_store %arg7[%c0_50, %c0_51, %c0_52], %43 {strides = array<i32>} : memref<1x1x128xf32, #tpu.memory_space<vmem>>, vector<1x1x128xf32>,
    %44 = arith.mulf %33, %33 : vector<512x128xf32>
    %cst_53 = arith.constant dense<0.000000e+00> : vector<8x128xf32>
    %45 = tpu.matmul %38, %44, %cst_53 {dimension_numbers = #tpu.dot_dimension_numbers<[1], [0], [0], [1], [0, 0, 1, 1], [], []>} : vector<8x512xf32>, vector<512x128xf32>, vector<8x128xf32> -> vector<8x128xf32>
    %46 = vector.extract_strided_slice %45 {offsets = [0, 0], sizes = [1, 128], strides = [1, 1]} : vector<8x128xf32> to vector<1x128xf32>
    %c0_54 = arith.constant 0 : index
    %c0_55 = arith.constant 0 : index
    %c0_56 = arith.constant 0 : index
    %47 = vector.load %arg8[%c0_54, %c0_55, %c0_56] : memref<1x1x128xf32, #tpu.memory_space<vmem>>, vector<1x1x128xf32>
    %48 = vector.shape_cast %47 : vector<1x1x128xf32> to vector<1x128xf32>
    %49 = vector.shape_cast %46 : vector<1x128xf32> to vector<1x1x128xf32>
    tpu.vector_store %arg8[%c0_54, %c0_55, %c0_56], %49 {strides = array<i32>} : memref<1x1x128xf32, #tpu.memory_space<vmem>>, vector<1x1x128xf32>,
    return
  }
  func.func @transform_0(%arg0: i32) -> (i32, i32) {
    %c1_i32 = arith.constant 1 : i32
    %0 = arith.addi %arg0, %c1_i32 : i32
    %c32_i32 = arith.constant 32 : i32
    %1 = arith.muli %0, %c32_i32 : i32
    %c1_i32_0 = arith.constant 1 : i32
    %2 = arith.subi %1, %c1_i32_0 : i32
    %c0_i32 = arith.constant 0 : i32
    %c0_i32_1 = arith.constant 0 : i32
    return %2, %c0_i32 : i32, i32
  }
  func.func @transform_1(%arg0: i32) -> (i32, i32) {
    %c1_i32 = arith.constant 1 : i32
    %0 = arith.addi %arg0, %c1_i32 : i32
    %c0_i32 = arith.constant 0 : i32
    %c0_i32_0 = arith.constant 0 : i32
    return %0, %c0_i32 : i32, i32
  }
  func.func @transform_2(%arg0: i32) -> (i32, i32) {
    %c2_i32 = arith.constant 2 : i32
    %0 = arith.addi %arg0, %c2_i32 : i32
    %c32_i32 = arith.constant 32 : i32
    %1 = arith.muli %0, %c32_i32 : i32
    %c0_i32 = arith.constant 0 : i32
    %c0_i32_0 = arith.constant 0 : i32
    return %1, %c0_i32 : i32, i32
  }
  func.func @transform_3(%arg0: i32) -> (i32, i32, i32) {
    %c0_i32 = arith.constant 0 : i32
    %c0_i32_0 = arith.constant 0 : i32
    %c0_i32_1 = arith.constant 0 : i32
    %c0_i32_2 = arith.constant 0 : i32
    return %c0_i32, %c0_i32_0, %c0_i32_1 : i32, i32, i32
  }
  func.func @transform_4(%arg0: i32) -> (i32, i32, i32) {
    %c0_i32 = arith.constant 0 : i32
    %c0_i32_0 = arith.constant 0 : i32
    %c0_i32_1 = arith.constant 0 : i32
    return %arg0, %c0_i32, %c0_i32_0 : i32, i32, i32
  }
  func.func @transform_5(%arg0: i32) -> (i32, i32) {
    %c0_i32 = arith.constant 0 : i32
    %c0_i32_0 = arith.constant 0 : i32
    return %arg0, %c0_i32 : i32, i32
  }
  func.func @transform_6(%arg0: i32) -> (i32, i32, i32) {
    %c0_i32 = arith.constant 0 : i32
    %c0_i32_0 = arith.constant 0 : i32
    %c0_i32_1 = arith.constant 0 : i32
    return %arg0, %c0_i32, %c0_i32_0 : i32, i32, i32
  }
  func.func @transform_7(%arg0: i32) -> (i32, i32, i32) {
    %c0_i32 = arith.constant 0 : i32
    %c0_i32_0 = arith.constant 0 : i32
    %c0_i32_1 = arith.constant 0 : i32
    return %arg0, %c0_i32, %c0_i32_0 : i32, i32, i32
  }
}

module attributes {stable_mosaic.version = 11 : i64} {
  func.func @_bn_act_kernel(%arg0: i32, %arg1: memref<1024x128xf32, #tpu.memory_space<vmem>>, %arg2: memref<1x128xf32, #tpu.memory_space<vmem>>, %arg3: memref<1x128xf32, #tpu.memory_space<vmem>>, %arg4: memref<1024x128xf32, #tpu.memory_space<vmem>>) attributes {dimension_semantics = [#tpu.dimension_semantics<parallel>], iteration_bounds = array<i64: 1>, scalar_prefetch = 0 : i64, scratch_operands = 0 : i64, tpu.core_type = #tpu.core_type<tc>, window_params = [{transform_indices = @transform_0, window_bounds = array<i64: 1024, 128>}, {pipeline_mode = #tpu.pipeline_mode<synchronous>, transform_indices = @transform_1, window_bounds = array<i64: 1, 128>}, {pipeline_mode = #tpu.pipeline_mode<synchronous>, transform_indices = @transform_2, window_bounds = array<i64: 1, 128>}, {transform_indices = @transform_3, window_bounds = array<i64: 1024, 128>}]} {
    %c0 = arith.constant 0 : index
    %c0_0 = arith.constant 0 : index
    %0 = vector.load %arg1[%c0, %c0_0] : memref<1024x128xf32, #tpu.memory_space<vmem>>, vector<1024x128xf32>
    %c0_1 = arith.constant 0 : index
    %c0_2 = arith.constant 0 : index
    %1 = vector.load %arg2[%c0_1, %c0_2] : memref<1x128xf32, #tpu.memory_space<vmem>>, vector<1x128xf32>
    %2 = vector.broadcast %1 : vector<1x128xf32> to vector<1024x128xf32>
    %3 = arith.mulf %0, %2 : vector<1024x128xf32>
    %c0_3 = arith.constant 0 : index
    %c0_4 = arith.constant 0 : index
    %4 = vector.load %arg3[%c0_3, %c0_4] : memref<1x128xf32, #tpu.memory_space<vmem>>, vector<1x128xf32>
    %5 = vector.broadcast %4 : vector<1x128xf32> to vector<1024x128xf32>
    %6 = arith.addf %3, %5 : vector<1024x128xf32>
    %cst = arith.constant 0.000000e+00 : f32
    %7 = vector.broadcast %cst : f32 to vector<1024x128xf32>
    %8 = arith.cmpf oge, %6, %7 : vector<1024x128xf32>
    %cst_5 = arith.constant 3.000000e-02 : f32
    %9 = vector.broadcast %cst_5 : f32 to vector<1024x128xf32>
    %10 = arith.mulf %9, %6 : vector<1024x128xf32>
    %11 = arith.select %8, %6, %10 : vector<1024x128xi1>, vector<1024x128xf32>
    %c0_6 = arith.constant 0 : index
    %c0_7 = arith.constant 0 : index
    %12 = vector.load %arg4[%c0_6, %c0_7] : memref<1024x128xf32, #tpu.memory_space<vmem>>, vector<1024x128xf32>
    tpu.vector_store %arg4[%c0_6, %c0_7], %11 {strides = array<i32>} : memref<1024x128xf32, #tpu.memory_space<vmem>>, vector<1024x128xf32>,
    return
  }
  func.func @transform_0(%arg0: i32) -> (i32, i32) {
    %c0_i32 = arith.constant 0 : i32
    %c0_i32_0 = arith.constant 0 : i32
    return %arg0, %c0_i32 : i32, i32
  }
  func.func @transform_1(%arg0: i32) -> (i32, i32) {
    %c0_i32 = arith.constant 0 : i32
    %c0_i32_0 = arith.constant 0 : i32
    %c0_i32_1 = arith.constant 0 : i32
    return %c0_i32, %c0_i32_0 : i32, i32
  }
  func.func @transform_2(%arg0: i32) -> (i32, i32) {
    %c0_i32 = arith.constant 0 : i32
    %c0_i32_0 = arith.constant 0 : i32
    %c0_i32_1 = arith.constant 0 : i32
    return %c0_i32, %c0_i32_0 : i32, i32
  }
  func.func @transform_3(%arg0: i32) -> (i32, i32) {
    %c0_i32 = arith.constant 0 : i32
    %c0_i32_0 = arith.constant 0 : i32
    return %arg0, %c0_i32 : i32, i32
  }
}

</mosaic_0001>

<llo_original>
// kernel: conv_block_forward.3
$region0: #{conv_block_forward.3}
  #allocation0 [shape = 'u32[]', space=smem, size = 0x4, offset = 0x4, fixed_abs, tag = 'smem constant byte address 0x4 - core index']
  #allocation1 [shape = 'u32[72,128]{1,0:T(1,128)}', space=vmem, size = 0x9000, scoped, tag = 'internal scratch']
  %s0 = inlined_call_operand.vmem [shape: f32[1024,128], index: 0, kind: input, shape index: {}, may-alias: {0,3}]
  %s1 = inlined_call_operand.vmem [shape: f32[1,128], index: 1, kind: input, shape index: {}]
  %s2 = inlined_call_operand.vmem [shape: f32[1,128], index: 2, kind: input, shape index: {}]
  %s3 = inlined_call_operand.vmem [shape: f32[1024,128], index: 3, kind: output, shape index: {}, may-alias: {0,3}]
  %s4 = sld [smem:[#allocation0]]
  $region22: #{conv_block_forward.3} parent=0
    _
  %s6 = ssub.s32 1, %s4
  %s7 = scalar_select 0, %s6, %s4
  // Predicated region
  $region2: #{conv_block_forward.3} parent=0 // pred_check
    _
  $region3: #{conv_block_forward.3} parent=0 // pred_check_branch
    %9 = sbr.rel (0) target = $region5
  $region4: #{conv_block_forward.3} parent=0 // pred_region
    _
  $region5: #{conv_block_forward.3} parent=0 // pred_fallthru
    _
  // Predicated region
  $region6: #{conv_block_forward.3} parent=0 // pred_check
    _
  $region7: #{conv_block_forward.3} parent=0 // pred_check_branch
    %11 = sbr.rel (0) target = $region9
  $region8: #{conv_block_forward.3} parent=0 // pred_region
    _
  $region9: #{conv_block_forward.3} parent=0 // pred_fallthru
    _
  // Predicated region
  $region10: #{conv_block_forward.3} parent=0 // pred_check
    _
  $region11: #{conv_block_forward.3} parent=0 // pred_check_branch
    %13 = sbr.rel (0) target = $region13
  $region12: #{conv_block_forward.3} parent=0 // pred_region
    _
  $region13: #{conv_block_forward.3} parent=0 // pred_fallthru
    _
  %v14 = vld [vmem:[%s0] sm:$0xff]
  %v15 = vld [vmem:[%s0 + $0x8] sm:$0xff]
  %v16 = vld [vmem:[%s0 + $0x10] sm:$0xff]
  %v17 = vld [vmem:[%s0 + $0x18] sm:$0xff]
  %v18 = vld [vmem:[%s0 + $0x20] sm:$0xff]
  %v19 = vld [vmem:[%s0 + $0x28] sm:$0xff]
  %v20 = vld [vmem:[%s0 + $0x30] sm:$0xff]
  %v21 = vld [vmem:[%s0 + $0x38] sm:$0xff]
  %v22 = vld [vmem:[%s0 + $0x40] sm:$0xff]
  %v23 = vld [vmem:[%s0 + $0x48] sm:$0xff]
  %v24 = vld [vmem:[%s0 + $0x50] sm:$0xff]
  %v25 = vld [vmem:[%s0 + $0x58] sm:$0xff]
  %v26 = vld [vmem:[%s0 + $0x60] sm:$0xff]
  %v27 = vld [vmem:[%s0 + $0x68] sm:$0xff]
  %v28 = vld [vmem:[%s0 + $0x70] sm:$0xff]
  %v29 = vld [vmem:[%s0 + $0x78] sm:$0xff]
  %v30 = vld [vmem:[%s0 + $0x80] sm:$0xff]
  %v31 = vld [vmem:[%s0 + $0x88] sm:$0xff]
  %v32 = vld [vmem:[%s0 + $0x90] sm:$0xff]
  %v33 = vld [vmem:[%s0 + $0x98] sm:$0xff]
  %v34 = vld [vmem:[%s0 + $0xa0] sm:$0xff]
  %v35 = vld [vmem:[%s0 + $0xa8] sm:$0xff]
  %v36 = vld [vmem:[%s0 + $0xb0] sm:$0xff]
  %v37 = vld [vmem:[%s0 + $0xb8] sm:$0xff]
  %v38 = vld [vmem:[%s0 + $0xc0] sm:$0xff]
  %v39 = vld [vmem:[%s0 + $0xc8] sm:$0xff]
  %v40 = vld [vmem:[%s0 + $0xd0] sm:$0xff]
  %v41 = vld [vmem:[%s0 + $0xd8] sm:$0xff]
  %v42 = vld [vmem:[%s0 + $0xe0] sm:$0xff]
  %v43 = vld [vmem:[%s0 + $0xe8] sm:$0xff]
  %v44 = vld [vmem:[%s0 + $0xf0] sm:$0xff]
  %v45 = vld [vmem:[%s0 + $0xf8] sm:$0xff]
  %v46 = vld [vmem:[%s0 + $0x100] sm:$0xff]
  %v47 = vld [vmem:[%s0 + $0x108] sm:$0xff]
  %v48 = vld [vmem:[%s0 + $0x110] sm:$0xff]
  %v49 = vld [vmem:[%s0 + $0x118] sm:$0xff]
  %v50 = vld [vmem:[%s0 + $0x120] sm:$0xff]
  %v51 = vld [vmem:[%s0 + $0x128] sm:$0xff]
  %v52 = vld [vmem:[%s0 + $0x130] sm:$0xff]
  %v53 = vld [vmem:[%s0 + $0x138] sm:$0xff]
  %v54 = vld [vmem:[%s0 + $0x140] sm:$0xff]
  %v55 = vld [vmem:[%s0 + $0x148] sm:$0xff]
  %v56 = vld [vmem:[%s0 + $0x150] sm:$0xff]
  %v57 = vld [vmem:[%s0 + $0x158] sm:$0xff]
  %v58 = vld [vmem:[%s0 + $0x160] sm:$0xff]
  %v59 = vld [vmem:[%s0 + $0x168] sm:$0xff]
  %v60 = vld [vmem:[%s0 + $0x170] sm:$0xff]
  %v61 = vld [vmem:[%s0 + $0x178] sm:$0xff]
  %v62 = vld [vmem:[%s0 + $0x180] sm:$0xff]
  %v63 = vld [vmem:[%s0 + $0x188] sm:$0xff]
  %v64 = vld [vmem:[%s0 + $0x190] sm:$0xff]
  %v65 = vld [vmem:[%s0 + $0x198] sm:$0xff]
  %v66 = vld [vmem:[%s0 + $0x1a0] sm:$0xff]
  %v67 = vld [vmem:[%s0 + $0x1a8] sm:$0xff]
  %v68 = vld [vmem:[%s0 + $0x1b0] sm:$0xff]
  %v69 = vld [vmem:[%s0 + $0x1b8] sm:$0xff]
  %v70 = vld [vmem:[%s0 + $0x1c0] sm:$0xff]
  %v71 = vld [vmem:[%s0 + $0x1c8] sm:$0xff]
  %v72 = vld [vmem:[%s0 + $0x1d0] sm:$0xff]
  %v73 = vld [vmem:[%s0 + $0x1d8] sm:$0xff]
  %v74 = vld [vmem:[%s0 + $0x1e0] sm:$0xff]
  %v75 = vld [vmem:[%s0 + $0x1e8] sm:$0xff]
  %v76 = vld [vmem:[%s0 + $0x1f0] sm:$0xff]
  %v77 = vld [vmem:[%s0 + $0x1f8] sm:$0xff]
  %v78 = vld [vmem:[%s0 + $0x200] sm:$0xff]
  %v79 = vld [vmem:[%s0 + $0x208] sm:$0xff]
  %v80 = vld [vmem:[%s0 + $0x210] sm:$0xff]
  %v81 = vld [vmem:[%s0 + $0x218] sm:$0xff]
  %v82 = vld [vmem:[%s0 + $0x220] sm:$0xff]
  %v83 = vld [vmem:[%s0 + $0x228] sm:$0xff]
  %v84 = vld [vmem:[%s0 + $0x230] sm:$0xff]
  %v85 = vld [vmem:[%s0 + $0x238] sm:$0xff]
  %v86 = vld [vmem:[%s0 + $0x240] sm:$0xff]
  %v87 = vld [vmem:[%s0 + $0x248] sm:$0xff]
  %v88 = vld [vmem:[%s0 + $0x250] sm:$0xff]
  %v89 = vld [vmem:[%s0 + $0x258] sm:$0xff]
  %v90 = vld [vmem:[%s0 + $0x260] sm:$0xff]
  %v91 = vld [vmem:[%s0 + $0x268] sm:$0xff]
  %v92 = vld [vmem:[%s0 + $0x270] sm:$0xff]
  %v93 = vld [vmem:[%s0 + $0x278] sm:$0xff]
  %v94 = vld [vmem:[%s0 + $0x280] sm:$0xff]
  %v95 = vld [vmem:[%s0 + $0x288] sm:$0xff]
  %v96 = vld [vmem:[%s0 + $0x290] sm:$0xff]
  %v97 = vld [vmem:[%s0 + $0x298] sm:$0xff]
  %v98 = vld [vmem:[%s0 + $0x2a0] sm:$0xff]
  %v99 = vld [vmem:[%s0 + $0x2a8] sm:$0xff]
  %v100 = vld [vmem:[%s0 + $0x2b0] sm:$0xff]
  %v101 = vld [vmem:[%s0 + $0x2b8] sm:$0xff]
  %v102 = vld [vmem:[%s0 + $0x2c0] sm:$0xff]
  %v103 = vld [vmem:[%s0 + $0x2c8] sm:$0xff]
  %v104 = vld [vmem:[%s0 + $0x2d0] sm:$0xff]
  %v105 = vld [vmem:[%s0 + $0x2d8] sm:$0xff]
  %v106 = vld [vmem:[%s0 + $0x2e0] sm:$0xff]
  %v107 = vld [vmem:[%s0 + $0x2e8] sm:$0xff]
  %v108 = vld [vmem:[%s0 + $0x2f0] sm:$0xff]
  %v109 = vld [vmem:[%s0 + $0x2f8] sm:$0xff]
  %v110 = vld [vmem:[%s0 + $0x300] sm:$0xff]
  %v111 = vld [vmem:[%s0 + $0x308] sm:$0xff]
  %v112 = vld [vmem:[%s0 + $0x310] sm:$0xff]
  %v113 = vld [vmem:[%s0 + $0x318] sm:$0xff]
  %v114 = vld [vmem:[%s0 + $0x320] sm:$0xff]
  %v115 = vld [vmem:[%s0 + $0x328] sm:$0xff]
  %v116 = vld [vmem:[%s0 + $0x330] sm:$0xff]
  %v117 = vld [vmem:[%s0 + $0x338] sm:$0xff]
  %v118 = vld [vmem:[%s0 + $0x340] sm:$0xff]
  %v119 = vld [vmem:[%s0 + $0x348] sm:$0xff]
  %v120 = vld [vmem:[%s0 + $0x350] sm:$0xff]
  %v121 = vld [vmem:[%s0 + $0x358] sm:$0xff]
  %v122 = vld [vmem:[%s0 + $0x360] sm:$0xff]
  %v123 = vld [vmem:[%s0 + $0x368] sm:$0xff]
  %v124 = vld [vmem:[%s0 + $0x370] sm:$0xff]
  %v125 = vld [vmem:[%s0 + $0x378] sm:$0xff]
  %v126 = vld [vmem:[%s0 + $0x380] sm:$0xff]
  %v127 = vld [vmem:[%s0 + $0x388] sm:$0xff]
  %v128 = vld [vmem:[%s0 + $0x390] sm:$0xff]
  %v129 = vld [vmem:[%s0 + $0x398] sm:$0xff]
  %v130 = vld [vmem:[%s0 + $0x3a0] sm:$0xff]
  %v131 = vld [vmem:[%s0 + $0x3a8] sm:$0xff]
  %v132 = vld [vmem:[%s0 + $0x3b0] sm:$0xff]
  %v133 = vld [vmem:[%s0 + $0x3b8] sm:$0xff]
  %v134 = vld [vmem:[%s0 + $0x3c0] sm:$0xff]
  %v135 = vld [vmem:[%s0 + $0x3c8] sm:$0xff]
  %v136 = vld [vmem:[%s0 + $0x3d0] sm:$0xff]
  %v137 = vld [vmem:[%s0 + $0x3d8] sm:$0xff]
  %v138 = vld [vmem:[%s0 + $0x3e0] sm:$0xff]
  %v139 = vld [vmem:[%s0 + $0x3e8] sm:$0xff]
  %v140 = vld [vmem:[%s0 + $0x3f0] sm:$0xff]
  %v141 = vld [vmem:[%s0 + $0x3f8] sm:$0xff]
  %v142 = vld [vmem:[%s1] sm:$0x1]
  %v144 = vperm.slane %v142, 0
  %v146 = vmul.f32 %v14, %v144
  %v147 = vmul.f32 %v15, %v144
  %v148 = vmul.f32 %v16, %v144
  %v149 = vmul.f32 %v17, %v144
  %v150 = vmul.f32 %v18, %v144
  %v151 = vmul.f32 %v19, %v144
  %v152 = vmul.f32 %v20, %v144
  %v153 = vmul.f32 %v21, %v144
  %v154 = vmul.f32 %v22, %v144
  %v155 = vmul.f32 %v23, %v144
  %v156 = vmul.f32 %v24, %v144
  %v157 = vmul.f32 %v25, %v144
  %v158 = vmul.f32 %v26, %v144
  %v159 = vmul.f32 %v27, %v144
  %v160 = vmul.f32 %v28, %v144
  %v161 = vmul.f32 %v29, %v144
  %v162 = vmul.f32 %v30, %v144
  %v163 = vmul.f32 %v31, %v144
  %v164 = vmul.f32 %v32, %v144
  %v165 = vmul.f32 %v33, %v144
  %v166 = vmul.f32 %v34, %v144
  %v167 = vmul.f32 %v35, %v144
  %v168 = vmul.f32 %v36, %v144
  %v169 = vmul.f32 %v37, %v144
  %v170 = vmul.f32 %v38, %v144
  %v171 = vmul.f32 %v39, %v144
  %v172 = vmul.f32 %v40, %v144
  %v173 = vmul.f32 %v41, %v144
  %v174 = vmul.f32 %v42, %v144
  %v175 = vmul.f32 %v43, %v144
  %v176 = vmul.f32 %v44, %v144
  %v177 = vmul.f32 %v45, %v144
  %v178 = vmul.f32 %v46, %v144
  %v179 = vmul.f32 %v47, %v144
  %v180 = vmul.f32 %v48, %v144
  %v181 = vmul.f32 %v49, %v144
  %v182 = vmul.f32 %v50, %v144
  %v183 = vmul.f32 %v51, %v144
  %v184 = vmul.f32 %v52, %v144
  %v185 = vmul.f32 %v53, %v144
  %v186 = vmul.f32 %v54, %v144
  %v187 = vmul.f32 %v55, %v144
  %v188 = vmul.f32 %v56, %v144
  %v189 = vmul.f32 %v57, %v144
  %v190 = vmul.f32 %v58, %v144
  %v191 = vmul.f32 %v59, %v144
  %v192 = vmul.f32 %v60, %v144
  %v193 = vmul.f32 %v61, %v144
  %v194 = vmul.f32 %v62, %v144
  %v195 = vmul.f32 %v63, %v144
  %v196 = vmul.f32 %v64, %v144
  %v197 = vmul.f32 %v65, %v144
  %v198 = vmul.f32 %v66, %v144
  %v199 = vmul.f32 %v67, %v144
  %v200 = vmul.f32 %v68, %v144
  %v201 = vmul.f32 %v69, %v144
  %v202 = vmul.f32 %v70, %v144
  %v203 = vmul.f32 %v71, %v144
  %v204 = vmul.f32 %v72, %v144
  %v205 = vmul.f32 %v73, %v144
  %v206 = vmul.f32 %v74, %v144
  %v207 = vmul.f32 %v75, %v144
  %v208 = vmul.f32 %v76, %v144
  %v209 = vmul.f32 %v77, %v144
  %v210 = vmul.f32 %v78, %v144
  %v211 = vmul.f32 %v79, %v144
  %v212 = vmul.f32 %v80, %v144
  %v213 = vmul.f32 %v81, %v144
  %v214 = vmul.f32 %v82, %v144
  %v215 = vmul.f32 %v83, %v144
  %v216 = vmul.f32 %v84, %v144
  %v217 = vmul.f32 %v85, %v144
  %v218 = vmul.f32 %v86, %v144
  %v219 = vmul.f32 %v87, %v144
  %v220 = vmul.f32 %v88, %v144
  %v221 = vmul.f32 %v89, %v144
  %v222 = vmul.f32 %v90, %v144
  %v223 = vmul.f32 %v91, %v144
  %v224 = vmul.f32 %v92, %v144
  %v225 = vmul.f32 %v93, %v144
  %v226 = vmul.f32 %v94, %v144
  %v227 = vmul.f32 %v95, %v144
  %v228 = vmul.f32 %v96, %v144
  %v229 = vmul.f32 %v97, %v144
  %v230 = vmul.f32 %v98, %v144
  %v231 = vmul.f32 %v99, %v144
  %v232 = vmul.f32 %v100, %v144
  %v233 = vmul.f32 %v101, %v144
  %v234 = vmul.f32 %v102, %v144
  %v235 = vmul.f32 %v103, %v144
  %v236 = vmul.f32 %v104, %v144
  %v237 = vmul.f32 %v105, %v144
  %v238 = vmul.f32 %v106, %v144
  %v239 = vmul.f32 %v107, %v144
  %v240 = vmul.f32 %v108, %v144
  %v241 = vmul.f32 %v109, %v144
  %v242 = vmul.f32 %v110, %v144
  %v243 = vmul.f32 %v111, %v144
  %v244 = vmul.f32 %v112, %v144
  %v245 = vmul.f32 %v113, %v144
  %v246 = vmul.f32 %v114, %v144
  %v247 = vmul.f32 %v115, %v144
  %v248 = vmul.f32 %v116, %v144
  %v249 = vmul.f32 %v117, %v144
  %v250 = vmul.f32 %v118, %v144
  %v251 = vmul.f32 %v119, %v144
  %v252 = vmul.f32 %v120, %v144
  %v253 = vmul.f32 %v121, %v144
  %v254 = vmul.f32 %v122, %v144
  %v255 = vmul.f32 %v123, %v144
  %v256 = vmul.f32 %v124, %v144
  %v257 = vmul.f32 %v125, %v144
  %v258 = vmul.f32 %v126, %v144
  %v259 = vmul.f32 %v127, %v144
  %v260 = vmul.f32 %v128, %v144
  %v261 = vmul.f32 %v129, %v144
  %v262 = vmul.f32 %v130, %v144
  %v263 = vmul.f32 %v131, %v144
  %v264 = vmul.f32 %v132, %v144
  %v265 = vmul.f32 %v133, %v144
  %v266 = vmul.f32 %v134, %v144
  %v267 = vmul.f32 %v135, %v144
  %v268 = vmul.f32 %v136, %v144
  %v269 = vmul.f32 %v137, %v144
  %v270 = vmul.f32 %v138, %v144
  %v271 = vmul.f32 %v139, %v144
  %v272 = vmul.f32 %v140, %v144
  %v273 = vmul.f32 %v141, %v144
  %v274 = vld [vmem:[%s2] sm:$0x1]
  %v276 = vperm.slane %v274, 0
  %v278 = vadd.f32 %v146, %v276
  %v279 = vadd.f32 %v147, %v276
  %v280 = vadd.f32 %v148, %v276
  %v281 = vadd.f32 %v149, %v276
  %v282 = vadd.f32 %v150, %v276
  %v283 = vadd.f32 %v151, %v276
  %v284 = vadd.f32 %v152, %v276
  %v285 = vadd.f32 %v153, %v276
  %v286 = vadd.f32 %v154, %v276
  %v287 = vadd.f32 %v155, %v276
  %v288 = vadd.f32 %v156, %v276
  %v289 = vadd.f32 %v157, %v276
  %v290 = vadd.f32 %v158, %v276
  %v291 = vadd.f32 %v159, %v276
  %v292 = vadd.f32 %v160, %v276
  %v293 = vadd.f32 %v161, %v276
  %v294 = vadd.f32 %v162, %v276
  %v295 = vadd.f32 %v163, %v276
  %v296 = vadd.f32 %v164, %v276
  %v297 = vadd.f32 %v165, %v276
  %v298 = vadd.f32 %v166, %v276
  %v299 = vadd.f32 %v167, %v276
  %v300 = vadd.f32 %v168, %v276
  %v301 = vadd.f32 %v169, %v276
  %v302 = vadd.f32 %v170, %v276
  %v303 = vadd.f32 %v171, %v276
  %v304 = vadd.f32 %v172, %v276
  %v305 = vadd.f32 %v173, %v276
  %v306 = vadd.f32 %v174, %v276
  %v307 = vadd.f32 %v175, %v276
  %v308 = vadd.f32 %v176, %v276
  %v309 = vadd.f32 %v177, %v276
  %v310 = vadd.f32 %v178, %v276
  %v311 = vadd.f32 %v179, %v276
  %v312 = vadd.f32 %v180, %v276
  %v313 = vadd.f32 %v181, %v276
  %v314 = vadd.f32 %v182, %v276
  %v315 = vadd.f32 %v183, %v276
  %v316 = vadd.f32 %v184, %v276
  %v317 = vadd.f32 %v185, %v276
  %v318 = vadd.f32 %v186, %v276
  %v319 = vadd.f32 %v187, %v276
  %v320 = vadd.f32 %v188, %v276
  %v321 = vadd.f32 %v189, %v276
  %v322 = vadd.f32 %v190, %v276
  %v323 = vadd.f32 %v191, %v276
  %v324 = vadd.f32 %v192, %v276
  %v325 = vadd.f32 %v193, %v276
  %v326 = vadd.f32 %v194, %v276
  %v327 = vadd.f32 %v195, %v276
  %v328 = vadd.f32 %v196, %v276
  %v329 = vadd.f32 %v197, %v276
  %v330 = vadd.f32 %v198, %v276
  %v331 = vadd.f32 %v199, %v276
  %v332 = vadd.f32 %v200, %v276
  %v333 = vadd.f32 %v201, %v276
  %v334 = vadd.f32 %v202, %v276
  %v335 = vadd.f32 %v203, %v276
  %v336 = vadd.f32 %v204, %v276
  %v337 = vadd.f32 %v205, %v276
  %v338 = vadd.f32 %v206, %v276
  %v339 = vadd.f32 %v207, %v276
  %v340 = vadd.f32 %v208, %v276
  %v341 = vadd.f32 %v209, %v276
  %v342 = vadd.f32 %v210, %v276
  %v343 = vadd.f32 %v211, %v276
  %v344 = vadd.f32 %v212, %v276
  %v345 = vadd.f32 %v213, %v276
  %v346 = vadd.f32 %v214, %v276
  %v347 = vadd.f32 %v215, %v276
  %v348 = vadd.f32 %v216, %v276
  %v349 = vadd.f32 %v217, %v276
  %v350 = vadd.f32 %v218, %v276
  %v351 = vadd.f32 %v219, %v276
  %v352 = vadd.f32 %v220, %v276
  %v353 = vadd.f32 %v221, %v276
  %v354 = vadd.f32 %v222, %v276
  %v355 = vadd.f32 %v223, %v276
  %v356 = vadd.f32 %v224, %v276
  %v357 = vadd.f32 %v225, %v276
  %v358 = vadd.f32 %v226, %v276
  %v359 = vadd.f32 %v227, %v276
  %v360 = vadd.f32 %v228, %v276
  %v361 = vadd.f32 %v229, %v276
  %v362 = vadd.f32 %v230, %v276
  %v363 = vadd.f32 %v231, %v276
  %v364 = vadd.f32 %v232, %v276
  %v365 = vadd.f32 %v233, %v276
  %v366 = vadd.f32 %v234, %v276
  %v367 = vadd.f32 %v235, %v276
  %v368 = vadd.f32 %v236, %v276
  %v369 = vadd.f32 %v237, %v276
  %v370 = vadd.f32 %v238, %v276
  %v371 = vadd.f32 %v239, %v276
  %v372 = vadd.f32 %v240, %v276
  %v373 = vadd.f32 %v241, %v276
  %v374 = vadd.f32 %v242, %v276
  %v375 = vadd.f32 %v243, %v276
  %v376 = vadd.f32 %v244, %v276
  %v377 = vadd.f32 %v245, %v276
  %v378 = vadd.f32 %v246, %v276
  %v379 = vadd.f32 %v247, %v276
  %v380 = vadd.f32 %v248, %v276
  %v381 = vadd.f32 %v249, %v276
  %v382 = vadd.f32 %v250, %v276
  %v383 = vadd.f32 %v251, %v276
  %v384 = vadd.f32 %v252, %v276
  %v385 = vadd.f32 %v253, %v276
  %v386 = vadd.f32 %v254, %v276
  %v387 = vadd.f32 %v255, %v276
  %v388 = vadd.f32 %v256, %v276
  %v389 = vadd.f32 %v257, %v276
  %v390 = vadd.f32 %v258, %v276
  %v391 = vadd.f32 %v259, %v276
  %v392 = vadd.f32 %v260, %v276
  %v393 = vadd.f32 %v261, %v276
  %v394 = vadd.f32 %v262, %v276
  %v395 = vadd.f32 %v263, %v276
  %v396 = vadd.f32 %v264, %v276
  %v397 = vadd.f32 %v265, %v276
  %v398 = vadd.f32 %v266, %v276
  %v399 = vadd.f32 %v267, %v276
  %v400 = vadd.f32 %v268, %v276
  %v401 = vadd.f32 %v269, %v276
  %v402 = vadd.f32 %v270, %v276
  %v403 = vadd.f32 %v271, %v276
  %v404 = vadd.f32 %v272, %v276
  %v405 = vadd.f32 %v273, %v276
  %vm406 = vcmp.ge.f32.partialorder %v278, 0.0
  %vm407 = vcmp.ge.f32.partialorder %v279, 0.0
  %vm408 = vcmp.ge.f32.partialorder %v280, 0.0
  %vm409 = vcmp.ge.f32.partialorder %v281, 0.0
  %vm410 = vcmp.ge.f32.partialorder %v282, 0.0
  %vm411 = vcmp.ge.f32.partialorder %v283, 0.0
  %vm412 = vcmp.ge.f32.partialorder %v284, 0.0
  %vm413 = vcmp.ge.f32.partialorder %v285, 0.0
  %vm414 = vcmp.ge.f32.partialorder %v286, 0.0
  %vm415 = vcmp.ge.f32.partialorder %v287, 0.0
  %vm416 = vcmp.ge.f32.partialorder %v288, 0.0
  %vm417 = vcmp.ge.f32.partialorder %v289, 0.0
  %vm418 = vcmp.ge.f32.partialorder %v290, 0.0
  %vm419 = vcmp.ge.f32.partialorder %v291, 0.0
  %vm420 = vcmp.ge.f32.partialorder %v292, 0.0
  %vm421 = vcmp.ge.f32.partialorder %v293, 0.0
  %vm422 = vcmp.ge.f32.partialorder %v294, 0.0
  %vm423 = vcmp.ge.f32.partialorder %v295, 0.0
  %vm424 = vcmp.ge.f32.partialorder %v296, 0.0
  %vm425 = vcmp.ge.f32.partialorder %v297, 0.0
  %vm426 = vcmp.ge.f32.partialorder %v298, 0.0
  %vm427 = vcmp.ge.f32.partialorder %v299, 0.0
  %vm428 = vcmp.ge.f32.partialorder %v300, 0.0
  %vm429 = vcmp.ge.f32.partialorder %v301, 0.0
  %vm430 = vcmp.ge.f32.partialorder %v302, 0.0
  %vm431 = vcmp.ge.f32.partialorder %v303, 0.0
  %vm432 = vcmp.ge.f32.partialorder %v304, 0.0
  %vm433 = vcmp.ge.f32.partialorder %v305, 0.0
  %vm434 = vcmp.ge.f32.partialorder %v306, 0.0
  %vm435 = vcmp.ge.f32.partialorder %v307, 0.0
  %vm436 = vcmp.ge.f32.partialorder %v308, 0.0
  %vm437 = vcmp.ge.f32.partialorder %v309, 0.0
  %vm438 = vcmp.ge.f32.partialorder %v310, 0.0
  %vm439 = vcmp.ge.f32.partialorder %v311, 0.0
  %vm440 = vcmp.ge.f32.partialorder %v312, 0.0
  %vm441 = vcmp.ge.f32.partialorder %v313, 0.0
  %vm442 = vcmp.ge.f32.partialorder %v314, 0.0
  %vm443 = vcmp.ge.f32.partialorder %v315, 0.0
  %vm444 = vcmp.ge.f32.partialorder %v316, 0.0
  %vm445 = vcmp.ge.f32.partialorder %v317, 0.0
  %vm446 = vcmp.ge.f32.partialorder %v318, 0.0
  %vm447 = vcmp.ge.f32.partialorder %v319, 0.0
  %vm448 = vcmp.ge.f32.partialorder %v320, 0.0
  %vm449 = vcmp.ge.f32.partialorder %v321, 0.0
  %vm450 = vcmp.ge.f32.partialorder %v322, 0.0
  %vm451 = vcmp.ge.f32.partialorder %v323, 0.0
  %vm452 = vcmp.ge.f32.partialorder %v324, 0.0
  %vm453 = vcmp.ge.f32.partialorder %v325, 0.0
  %vm454 = vcmp.ge.f32.partialorder %v326, 0.0
  %vm455 = vcmp.ge.f32.partialorder %v327, 0.0
  %vm456 = vcmp.ge.f32.partialorder %v328, 0.0
  %vm457 = vcmp.ge.f32.partialorder %v329, 0.0
  %vm458 = vcmp.ge.f32.partialorder %v330, 0.0
  %vm459 = vcmp.ge.f32.partialorder %v331, 0.0
  %vm460 = vcmp.ge.f32.partialorder %v332, 0.0
  %vm461 = vcmp.ge.f32.partialorder %v333, 0.0
  %vm462 = vcmp.ge.f32.partialorder %v334, 0.0
  %vm463 = vcmp.ge.f32.partialorder %v335, 0.0
  %vm464 = vcmp.ge.f32.partialorder %v336, 0.0
  %vm465 = vcmp.ge.f32.partialorder %v337, 0.0
  %vm466 = vcmp.ge.f32.partialorder %v338, 0.0
  %vm467 = vcmp.ge.f32.partialorder %v339, 0.0
  %vm468 = vcmp.ge.f32.partialorder %v340, 0.0
  %vm469 = vcmp.ge.f32.partialorder %v341, 0.0
  %vm470 = vcmp.ge.f32.partialorder %v342, 0.0
  %vm471 = vcmp.ge.f32.partialorder %v343, 0.0
  %vm472 = vcmp.ge.f32.partialorder %v344, 0.0
  %vm473 = vcmp.ge.f32.partialorder %v345, 0.0
  %vm474 = vcmp.ge.f32.partialorder %v346, 0.0
  %vm475 = vcmp.ge.f32.partialorder %v347, 0.0
  %vm476 = vcmp.ge.f32.partialorder %v348, 0.0
  %vm477 = vcmp.ge.f32.partialorder %v349, 0.0
  %vm478 = vcmp.ge.f32.partialorder %v350, 0.0
  %vm479 = vcmp.ge.f32.partialorder %v351, 0.0
  %vm480 = vcmp.ge.f32.partialorder %v352, 0.0
  %vm481 = vcmp.ge.f32.partialorder %v353, 0.0
  %vm482 = vcmp.ge.f32.partialorder %v354, 0.0
  %vm483 = vcmp.ge.f32.partialorder %v355, 0.0
  %vm484 = vcmp.ge.f32.partialorder %v356, 0.0
  %vm485 = vcmp.ge.f32.partialorder %v357, 0.0
  %vm486 = vcmp.ge.f32.partialorder %v358, 0.0
  %vm487 = vcmp.ge.f32.partialorder %v359, 0.0
  %vm488 = vcmp.ge.f32.partialorder %v360, 0.0
  %vm489 = vcmp.ge.f32.partialorder %v361, 0.0
  %vm490 = vcmp.ge.f32.partialorder %v362, 0.0
  %vm491 = vcmp.ge.f32.partialorder %v363, 0.0
  %vm492 = vcmp.ge.f32.partialorder %v364, 0.0
  %vm493 = vcmp.ge.f32.partialorder %v365, 0.0
  %vm494 = vcmp.ge.f32.partialorder %v366, 0.0
  %vm495 = vcmp.ge.f32.partialorder %v367, 0.0
  %vm496 = vcmp.ge.f32.partialorder %v368, 0.0
  %vm497 = vcmp.ge.f32.partialorder %v369, 0.0
  %vm498 = vcmp.ge.f32.partialorder %v370, 0.0
  %vm499 = vcmp.ge.f32.partialorder %v371, 0.0
  %vm500 = vcmp.ge.f32.partialorder %v372, 0.0
  %vm501 = vcmp.ge.f32.partialorder %v373, 0.0
  %vm502 = vcmp.ge.f32.partialorder %v374, 0.0
  %vm503 = vcmp.ge.f32.partialorder %v375, 0.0
  %vm504 = vcmp.ge.f32.partialorder %v376, 0.0
  %vm505 = vcmp.ge.f32.partialorder %v377, 0.0
  %vm506 = vcmp.ge.f32.partialorder %v378, 0.0
  %vm507 = vcmp.ge.f32.partialorder %v379, 0.0
  %vm508 = vcmp.ge.f32.partialorder %v380, 0.0
  %vm509 = vcmp.ge.f32.partialorder %v381, 0.0
  %vm510 = vcmp.ge.f32.partialorder %v382, 0.0
  %vm511 = vcmp.ge.f32.partialorder %v383, 0.0
  %vm512 = vcmp.ge.f32.partialorder %v384, 0.0
  %vm513 = vcmp.ge.f32.partialorder %v385, 0.0
  %vm514 = vcmp.ge.f32.partialorder %v386, 0.0
  %vm515 = vcmp.ge.f32.partialorder %v387, 0.0
  %vm516 = vcmp.ge.f32.partialorder %v388, 0.0
  %vm517 = vcmp.ge.f32.partialorder %v389, 0.0
  %vm518 = vcmp.ge.f32.partialorder %v390, 0.0
  %vm519 = vcmp.ge.f32.partialorder %v391, 0.0
  %vm520 = vcmp.ge.f32.partialorder %v392, 0.0
  %vm521 = vcmp.ge.f32.partialorder %v393, 0.0
  %vm522 = vcmp.ge.f32.partialorder %v394, 0.0
  %vm523 = vcmp.ge.f32.partialorder %v395, 0.0
  %vm524 = vcmp.ge.f32.partialorder %v396, 0.0
  %vm525 = vcmp.ge.f32.partialorder %v397, 0.0
  %vm526 = vcmp.ge.f32.partialorder %v398, 0.0
  %vm527 = vcmp.ge.f32.partialorder %v399, 0.0
  %vm528 = vcmp.ge.f32.partialorder %v400, 0.0
  %vm529 = vcmp.ge.f32.partialorder %v401, 0.0
  %vm530 = vcmp.ge.f32.partialorder %v402, 0.0
  %vm531 = vcmp.ge.f32.partialorder %v403, 0.0
  %vm532 = vcmp.ge.f32.partialorder %v404, 0.0
  %vm533 = vcmp.ge.f32.partialorder %v405, 0.0
  %v534 = vmul.f32 %v278, 0.03
  %v535 = vmul.f32 %v279, 0.03
  %v536 = vmul.f32 %v280, 0.03
  %v537 = vmul.f32 %v281, 0.03
  %v538 = vmul.f32 %v282, 0.03
  %v539 = vmul.f32 %v283, 0.03
  %v540 = vmul.f32 %v284, 0.03
  %v541 = vmul.f32 %v285, 0.03
  %v542 = vmul.f32 %v286, 0.03
  %v543 = vmul.f32 %v287, 0.03
  %v544 = vmul.f32 %v288, 0.03
  %v545 = vmul.f32 %v289, 0.03
  %v546 = vmul.f32 %v290, 0.03
  %v547 = vmul.f32 %v291, 0.03
  %v548 = vmul.f32 %v292, 0.03
  %v549 = vmul.f32 %v293, 0.03
  %v550 = vmul.f32 %v294, 0.03
  %v551 = vmul.f32 %v295, 0.03
  %v552 = vmul.f32 %v296, 0.03
  %v553 = vmul.f32 %v297, 0.03
  %v554 = vmul.f32 %v298, 0.03
  %v555 = vmul.f32 %v299, 0.03
  %v556 = vmul.f32 %v300, 0.03
  %v557 = vmul.f32 %v301, 0.03
  %v558 = vmul.f32 %v302, 0.03
  %v559 = vmul.f32 %v303, 0.03
  %v560 = vmul.f32 %v304, 0.03
  %v561 = vmul.f32 %v305, 0.03
  %v562 = vmul.f32 %v306, 0.03
  %v563 = vmul.f32 %v307, 0.03
  %v564 = vmul.f32 %v308, 0.03
  %v565 = vmul.f32 %v309, 0.03
  %v566 = vmul.f32 %v310, 0.03
  %v567 = vmul.f32 %v311, 0.03
  %v568 = vmul.f32 %v312, 0.03
  %v569 = vmul.f32 %v313, 0.03
  %v570 = vmul.f32 %v314, 0.03
  %v571 = vmul.f32 %v315, 0.03
  %v572 = vmul.f32 %v316, 0.03
  %v573 = vmul.f32 %v317, 0.03
  %v574 = vmul.f32 %v318, 0.03
  %v575 = vmul.f32 %v319, 0.03
  %v576 = vmul.f32 %v320, 0.03
  %v577 = vmul.f32 %v321, 0.03
  %v578 = vmul.f32 %v322, 0.03
  %v579 = vmul.f32 %v323, 0.03
  %v580 = vmul.f32 %v324, 0.03
  %v581 = vmul.f32 %v325, 0.03
  %v582 = vmul.f32 %v326, 0.03
  %v583 = vmul.f32 %v327, 0.03
  %v584 = vmul.f32 %v328, 0.03
  %v585 = vmul.f32 %v329, 0.03
  %v586 = vmul.f32 %v330, 0.03
  %v587 = vmul.f32 %v331, 0.03
  %v588 = vmul.f32 %v332, 0.03
  %v589 = vmul.f32 %v333, 0.03
  %v590 = vmul.f32 %v334, 0.03
  %v591 = vmul.f32 %v335, 0.03
  %v592 = vmul.f32 %v336, 0.03
  %v593 = vmul.f32 %v337, 0.03
  %v594 = vmul.f32 %v338, 0.03
  %v595 = vmul.f32 %v339, 0.03
  %v596 = vmul.f32 %v340, 0.03
  %v597 = vmul.f32 %v341, 0.03
  %v598 = vmul.f32 %v342, 0.03
  %v599 = vmul.f32 %v343, 0.03
  %v600 = vmul.f32 %v344, 0.03
  %v601 = vmul.f32 %v345, 0.03
  %v602 = vmul.f32 %v346, 0.03
  %v603 = vmul.f32 %v347, 0.03
  %v604 = vmul.f32 %v348, 0.03
  %v605 = vmul.f32 %v349, 0.03
  %v606 = vmul.f32 %v350, 0.03
  %v607 = vmul.f32 %v351, 0.03
  %v608 = vmul.f32 %v352, 0.03
  %v609 = vmul.f32 %v353, 0.03
  %v610 = vmul.f32 %v354, 0.03
  %v611 = vmul.f32 %v355, 0.03
  %v612 = vmul.f32 %v356, 0.03
  %v613 = vmul.f32 %v357, 0.03
  %v614 = vmul.f32 %v358, 0.03
  %v615 = vmul.f32 %v359, 0.03
  %v616 = vmul.f32 %v360, 0.03
  %v617 = vmul.f32 %v361, 0.03
  %v618 = vmul.f32 %v362, 0.03
  %v619 = vmul.f32 %v363, 0.03
  %v620 = vmul.f32 %v364, 0.03
  %v621 = vmul.f32 %v365, 0.03
  %v622 = vmul.f32 %v366, 0.03
  %v623 = vmul.f32 %v367, 0.03
  %v624 = vmul.f32 %v368, 0.03
  %v625 = vmul.f32 %v369, 0.03
  %v626 = vmul.f32 %v370, 0.03
  %v627 = vmul.f32 %v371, 0.03
  %v628 = vmul.f32 %v372, 0.03
  %v629 = vmul.f32 %v373, 0.03
  %v630 = vmul.f32 %v374, 0.03
  %v631 = vmul.f32 %v375, 0.03
  %v632 = vmul.f32 %v376, 0.03
  %v633 = vmul.f32 %v377, 0.03
  %v634 = vmul.f32 %v378, 0.03
  %v635 = vmul.f32 %v379, 0.03
  %v636 = vmul.f32 %v380, 0.03
  %v637 = vmul.f32 %v381, 0.03
  %v638 = vmul.f32 %v382, 0.03
  %v639 = vmul.f32 %v383, 0.03
  %v640 = vmul.f32 %v384, 0.03
  %v641 = vmul.f32 %v385, 0.03
  %v642 = vmul.f32 %v386, 0.03
  %v643 = vmul.f32 %v387, 0.03
  %v644 = vmul.f32 %v388, 0.03
  %v645 = vmul.f32 %v389, 0.03
  %v646 = vmul.f32 %v390, 0.03
  %v647 = vmul.f32 %v391, 0.03
  %v648 = vmul.f32 %v392, 0.03
  %v649 = vmul.f32 %v393, 0.03
  %v650 = vmul.f32 %v394, 0.03
  %v651 = vmul.f32 %v395, 0.03
  %v652 = vmul.f32 %v396, 0.03
  %v653 = vmul.f32 %v397, 0.03
  %v654 = vmul.f32 %v398, 0.03
  %v655 = vmul.f32 %v399, 0.03
  %v656 = vmul.f32 %v400, 0.03
  %v657 = vmul.f32 %v401, 0.03
  %v658 = vmul.f32 %v402, 0.03
  %v659 = vmul.f32 %v403, 0.03
  %v660 = vmul.f32 %v404, 0.03
  %v661 = vmul.f32 %v405, 0.03
  %v662 = vsel %vm406, %v278, %v534
  %v663 = vsel %vm407, %v279, %v535
  %v664 = vsel %vm408, %v280, %v536
  %v665 = vsel %vm409, %v281, %v537
  %v666 = vsel %vm410, %v282, %v538
  %v667 = vsel %vm411, %v283, %v539
  %v668 = vsel %vm412, %v284, %v540
  %v669 = vsel %vm413, %v285, %v541
  %v670 = vsel %vm414, %v286, %v542
  %v671 = vsel %vm415, %v287, %v543
  %v672 = vsel %vm416, %v288, %v544
  %v673 = vsel %vm417, %v289, %v545
  %v674 = vsel %vm418, %v290, %v546
  %v675 = vsel %vm419, %v291, %v547
  %v676 = vsel %vm420, %v292, %v548
  %v677 = vsel %vm421, %v293, %v549
  %v678 = vsel %vm422, %v294, %v550
  %v679 = vsel %vm423, %v295, %v551
  %v680 = vsel %vm424, %v296, %v552
  %v681 = vsel %vm425, %v297, %v553
  %v682 = vsel %vm426, %v298, %v554
  %v683 = vsel %vm427, %v299, %v555
  %v684 = vsel %vm428, %v300, %v556
  %v685 = vsel %vm429, %v301, %v557
  %v686 = vsel %vm430, %v302, %v558
  %v687 = vsel %vm431, %v303, %v559
  %v688 = vsel %vm432, %v304, %v560
  %v689 = vsel %vm433, %v305, %v561
  %v690 = vsel %vm434, %v306, %v562
  %v691 = vsel %vm435, %v307, %v563
  %v692 = vsel %vm436, %v308, %v564
  %v693 = vsel %vm437, %v309, %v565
  %v694 = vsel %vm438, %v310, %v566
  %v695 = vsel %vm439, %v311, %v567
  %v696 = vsel %vm440, %v312, %v568
  %v697 = vsel %vm441, %v313, %v569
  %v698 = vsel %vm442, %v314, %v570
  %v699 = vsel %vm443, %v315, %v571
  %v700 = vsel %vm444, %v316, %v572
  %v701 = vsel %vm445, %v317, %v573
  %v702 = vsel %vm446, %v318, %v574
  %v703 = vsel %vm447, %v319, %v575
  %v704 = vsel %vm448, %v320, %v576
  %v705 = vsel %vm449, %v321, %v577
  %v706 = vsel %vm450, %v322, %v578
  %v707 = vsel %vm451, %v323, %v579
  %v708 = vsel %vm452, %v324, %v580
  %v709 = vsel %vm453, %v325, %v581
  %v710 = vsel %vm454, %v326, %v582
  %v711 = vsel %vm455, %v327, %v583
  %v712 = vsel %vm456, %v328, %v584
  %v713 = vsel %vm457, %v329, %v585
  %v714 = vsel %vm458, %v330, %v586
  %v715 = vsel %vm459, %v331, %v587
  %v716 = vsel %vm460, %v332, %v588
  %v717 = vsel %vm461, %v333, %v589
  %v718 = vsel %vm462, %v334, %v590
  %v719 = vsel %vm463, %v335, %v591
  %v720 = vsel %vm464, %v336, %v592
  %v721 = vsel %vm465, %v337, %v593
  %v722 = vsel %vm466, %v338, %v594
  %v723 = vsel %vm467, %v339, %v595
  %v724 = vsel %vm468, %v340, %v596
  %v725 = vsel %vm469, %v341, %v597
  %v726 = vsel %vm470, %v342, %v598
  %v727 = vsel %vm471, %v343, %v599
  %v728 = vsel %vm472, %v344, %v600
  %v729 = vsel %vm473, %v345, %v601
  %v730 = vsel %vm474, %v346, %v602
  %v731 = vsel %vm475, %v347, %v603
  %v732 = vsel %vm476, %v348, %v604
  %v733 = vsel %vm477, %v349, %v605
  %v734 = vsel %vm478, %v350, %v606
  %v735 = vsel %vm479, %v351, %v607
  %v736 = vsel %vm480, %v352, %v608
  %v737 = vsel %vm481, %v353, %v609
  %v738 = vsel %vm482, %v354, %v610
  %v739 = vsel %vm483, %v355, %v611
  %v740 = vsel %vm484, %v356, %v612
  %v741 = vsel %vm485, %v357, %v613
  %v742 = vsel %vm486, %v358, %v614
  %v743 = vsel %vm487, %v359, %v615
  %v744 = vsel %vm488, %v360, %v616
  %v745 = vsel %vm489, %v361, %v617
  %v746 = vsel %vm490, %v362, %v618
  %v747 = vsel %vm491, %v363, %v619
  %v748 = vsel %vm492, %v364, %v620
  %v749 = vsel %vm493, %v365, %v621
  %v750 = vsel %vm494, %v366, %v622
  %v751 = vsel %vm495, %v367, %v623
  %v752 = vsel %vm496, %v368, %v624
  %v753 = vsel %vm497, %v369, %v625
  %v754 = vsel %vm498, %v370, %v626
  %v755 = vsel %vm499, %v371, %v627
  %v756 = vsel %vm500, %v372, %v628
  %v757 = vsel %vm501, %v373, %v629
  %v758 = vsel %vm502, %v374, %v630
  %v759 = vsel %vm503, %v375, %v631
  %v760 = vsel %vm504, %v376, %v632
  %v761 = vsel %vm505, %v377, %v633
  %v762 = vsel %vm506, %v378, %v634
  %v763 = vsel %vm507, %v379, %v635
  %v764 = vsel %vm508, %v380, %v636
  %v765 = vsel %vm509, %v381, %v637
  %v766 = vsel %vm510, %v382, %v638
  %v767 = vsel %vm511, %v383, %v639
  %v768 = vsel %vm512, %v384, %v640
  %v769 = vsel %vm513, %v385, %v641
  %v770 = vsel %vm514, %v386, %v642
  %v771 = vsel %vm515, %v387, %v643
  %v772 = vsel %vm516, %v388, %v644
  %v773 = vsel %vm517, %v389, %v645
  %v774 = vsel %vm518, %v390, %v646
  %v775 = vsel %vm519, %v391, %v647
  %v776 = vsel %vm520, %v392, %v648
  %v777 = vsel %vm521, %v393, %v649
  %v778 = vsel %vm522, %v394, %v650
  %v779 = vsel %vm523, %v395, %v651
  %v780 = vsel %vm524, %v396, %v652
  %v781 = vsel %vm525, %v397, %v653
  %v782 = vsel %vm526, %v398, %v654
  %v783 = vsel %vm527, %v399, %v655
  %v784 = vsel %vm528, %v400, %v656
  %v785 = vsel %vm529, %v401, %v657
  %v786 = vsel %vm530, %v402, %v658
  %v787 = vsel %vm531, %v403, %v659
  %v788 = vsel %vm532, %v404, %v660
  %v789 = vsel %vm533, %v405, %v661
  %790 = vst [vmem:[%s3] sm:$0xff] %v662
  %791 = vst [vmem:[%s3 + $0x8] sm:$0xff] %v663
  %792 = vst [vmem:[%s3 + $0x10] sm:$0xff] %v664
  %793 = vst [vmem:[%s3 + $0x18] sm:$0xff] %v665
  %794 = vst [vmem:[%s3 + $0x20] sm:$0xff] %v666
  %795 = vst [vmem:[%s3 + $0x28] sm:$0xff] %v667
  %796 = vst [vmem:[%s3 + $0x30] sm:$0xff] %v668
  %797 = vst [vmem:[%s3 + $0x38] sm:$0xff] %v669
  %798 = vst [vmem:[%s3 + $0x40] sm:$0xff] %v670
  %799 = vst [vmem:[%s3 + $0x48] sm:$0xff] %v671
  %800 = vst [vmem:[%s3 + $0x50] sm:$0xff] %v672
  %801 = vst [vmem:[%s3 + $0x58] sm:$0xff] %v673
  %802 = vst [vmem:[%s3 + $0x60] sm:$0xff] %v674
  %803 = vst [vmem:[%s3 + $0x68] sm:$0xff] %v675
  %804 = vst [vmem:[%s3 + $0x70] sm:$0xff] %v676
  %805 = vst [vmem:[%s3 + $0x78] sm:$0xff] %v677
  %806 = vst [vmem:[%s3 + $0x80] sm:$0xff] %v678
  %807 = vst [vmem:[%s3 + $0x88] sm:$0xff] %v679
  %808 = vst [vmem:[%s3 + $0x90] sm:$0xff] %v680
  %809 = vst [vmem:[%s3 + $0x98] sm:$0xff] %v681
  %810 = vst [vmem:[%s3 + $0xa0] sm:$0xff] %v682
  %811 = vst [vmem:[%s3 + $0xa8] sm:$0xff] %v683
  %812 = vst [vmem:[%s3 + $0xb0] sm:$0xff] %v684
  %813 = vst [vmem:[%s3 + $0xb8] sm:$0xff] %v685
  %814 = vst [vmem:[%s3 + $0xc0] sm:$0xff] %v686
  %815 = vst [vmem:[%s3 + $0xc8] sm:$0xff] %v687
  %816 = vst [vmem:[%s3 + $0xd0] sm:$0xff] %v688
  %817 = vst [vmem:[%s3 + $0xd8] sm:$0xff] %v689
  %818 = vst [vmem:[%s3 + $0xe0] sm:$0xff] %v690
  %819 = vst [vmem:[%s3 + $0xe8] sm:$0xff] %v691
  %820 = vst [vmem:[%s3 + $0xf0] sm:$0xff] %v692
  %821 = vst [vmem:[%s3 + $0xf8] sm:$0xff] %v693
  %822 = vst [vmem:[%s3 + $0x100] sm:$0xff] %v694
  %823 = vst [vmem:[%s3 + $0x108] sm:$0xff] %v695
  %824 = vst [vmem:[%s3 + $0x110] sm:$0xff] %v696
  %825 = vst [vmem:[%s3 + $0x118] sm:$0xff] %v697
  %826 = vst [vmem:[%s3 + $0x120] sm:$0xff] %v698
  %827 = vst [vmem:[%s3 + $0x128] sm:$0xff] %v699
  %828 = vst [vmem:[%s3 + $0x130] sm:$0xff] %v700
  %829 = vst [vmem:[%s3 + $0x138] sm:$0xff] %v701
  %830 = vst [vmem:[%s3 + $0x140] sm:$0xff] %v702
  %831 = vst [vmem:[%s3 + $0x148] sm:$0xff] %v703
  %832 = vst [vmem:[%s3 + $0x150] sm:$0xff] %v704
  %833 = vst [vmem:[%s3 + $0x158] sm:$0xff] %v705
  %834 = vst [vmem:[%s3 + $0x160] sm:$0xff] %v706
  %835 = vst [vmem:[%s3 + $0x168] sm:$0xff] %v707
  %836 = vst [vmem:[%s3 + $0x170] sm:$0xff] %v708
  %837 = vst [vmem:[%s3 + $0x178] sm:$0xff] %v709
  %838 = vst [vmem:[%s3 + $0x180] sm:$0xff] %v710
  %839 = vst [vmem:[%s3 + $0x188] sm:$0xff] %v711
  %840 = vst [vmem:[%s3 + $0x190] sm:$0xff] %v712
  %841 = vst [vmem:[%s3 + $0x198] sm:$0xff] %v713
  %842 = vst [vmem:[%s3 + $0x1a0] sm:$0xff] %v714
  %843 = vst [vmem:[%s3 + $0x1a8] sm:$0xff] %v715
  %844 = vst [vmem:[%s3 + $0x1b0] sm:$0xff] %v716
  %845 = vst [vmem:[%s3 + $0x1b8] sm:$0xff] %v717
  %846 = vst [vmem:[%s3 + $0x1c0] sm:$0xff] %v718
  %847 = vst [vmem:[%s3 + $0x1c8] sm:$0xff] %v719
  %848 = vst [vmem:[%s3 + $0x1d0] sm:$0xff] %v720
  %849 = vst [vmem:[%s3 + $0x1d8] sm:$0xff] %v721
  %850 = vst [vmem:[%s3 + $0x1e0] sm:$0xff] %v722
  %851 = vst [vmem:[%s3 + $0x1e8] sm:$0xff] %v723
  %852 = vst [vmem:[%s3 + $0x1f0] sm:$0xff] %v724
  %853 = vst [vmem:[%s3 + $0x1f8] sm:$0xff] %v725
  %854 = vst [vmem:[%s3 + $0x200] sm:$0xff] %v726
  %855 = vst [vmem:[%s3 + $0x208] sm:$0xff] %v727
  %856 = vst [vmem:[%s3 + $0x210] sm:$0xff] %v728
  %857 = vst [vmem:[%s3 + $0x218] sm:$0xff] %v729
  %858 = vst [vmem:[%s3 + $0x220] sm:$0xff] %v730
  %859 = vst [vmem:[%s3 + $0x228] sm:$0xff] %v731
  %860 = vst [vmem:[%s3 + $0x230] sm:$0xff] %v732
  %861 = vst [vmem:[%s3 + $0x238] sm:$0xff] %v733
  %862 = vst [vmem:[%s3 + $0x240] sm:$0xff] %v734
  %863 = vst [vmem:[%s3 + $0x248] sm:$0xff] %v735
  %864 = vst [vmem:[%s3 + $0x250] sm:$0xff] %v736
  %865 = vst [vmem:[%s3 + $0x258] sm:$0xff] %v737
  %866 = vst [vmem:[%s3 + $0x260] sm:$0xff] %v738
  %867 = vst [vmem:[%s3 + $0x268] sm:$0xff] %v739
  %868 = vst [vmem:[%s3 + $0x270] sm:$0xff] %v740
  %869 = vst [vmem:[%s3 + $0x278] sm:$0xff] %v741
  %870 = vst [vmem:[%s3 + $0x280] sm:$0xff] %v742
  %871 = vst [vmem:[%s3 + $0x288] sm:$0xff] %v743
  %872 = vst [vmem:[%s3 + $0x290] sm:$0xff] %v744
  %873 = vst [vmem:[%s3 + $0x298] sm:$0xff] %v745
  %874 = vst [vmem:[%s3 + $0x2a0] sm:$0xff] %v746
  %875 = vst [vmem:[%s3 + $0x2a8] sm:$0xff] %v747
  %876 = vst [vmem:[%s3 + $0x2b0] sm:$0xff] %v748
  %877 = vst [vmem:[%s3 + $0x2b8] sm:$0xff] %v749
  %878 = vst [vmem:[%s3 + $0x2c0] sm:$0xff] %v750
  %879 = vst [vmem:[%s3 + $0x2c8] sm:$0xff] %v751
  %880 = vst [vmem:[%s3 + $0x2d0] sm:$0xff] %v752
  %881 = vst [vmem:[%s3 + $0x2d8] sm:$0xff] %v753
  %882 = vst [vmem:[%s3 + $0x2e0] sm:$0xff] %v754
  %883 = vst [vmem:[%s3 + $0x2e8] sm:$0xff] %v755
  %884 = vst [vmem:[%s3 + $0x2f0] sm:$0xff] %v756
  %885 = vst [vmem:[%s3 + $0x2f8] sm:$0xff] %v757
  %886 = vst [vmem:[%s3 + $0x300] sm:$0xff] %v758
  %887 = vst [vmem:[%s3 + $0x308] sm:$0xff] %v759
  %888 = vst [vmem:[%s3 + $0x310] sm:$0xff] %v760
  %889 = vst [vmem:[%s3 + $0x318] sm:$0xff] %v761
  %890 = vst [vmem:[%s3 + $0x320] sm:$0xff] %v762
  %891 = vst [vmem:[%s3 + $0x328] sm:$0xff] %v763
  %892 = vst [vmem:[%s3 + $0x330] sm:$0xff] %v764
  %893 = vst [vmem:[%s3 + $0x338] sm:$0xff] %v765
  %894 = vst [vmem:[%s3 + $0x340] sm:$0xff] %v766
  %895 = vst [vmem:[%s3 + $0x348] sm:$0xff] %v767
  %896 = vst [vmem:[%s3 + $0x350] sm:$0xff] %v768
  %897 = vst [vmem:[%s3 + $0x358] sm:$0xff] %v769
  %898 = vst [vmem:[%s3 + $0x360] sm:$0xff] %v770
  %899 = vst [vmem:[%s3 + $0x368] sm:$0xff] %v771
  %900 = vst [vmem:[%s3 + $0x370] sm:$0xff] %v772
  %901 = vst [vmem:[%s3 + $0x378] sm:$0xff] %v773
  %902 = vst [vmem:[%s3 + $0x380] sm:$0xff] %v774
  %903 = vst [vmem:[%s3 + $0x388] sm:$0xff] %v775
  %904 = vst [vmem:[%s3 + $0x390] sm:$0xff] %v776
  %905 = vst [vmem:[%s3 + $0x398] sm:$0xff] %v777
  %906 = vst [vmem:[%s3 + $0x3a0] sm:$0xff] %v778
  %907 = vst [vmem:[%s3 + $0x3a8] sm:$0xff] %v779
  %908 = vst [vmem:[%s3 + $0x3b0] sm:$0xff] %v780
  %909 = vst [vmem:[%s3 + $0x3b8] sm:$0xff] %v781
  %910 = vst [vmem:[%s3 + $0x3c0] sm:$0xff] %v782
  %911 = vst [vmem:[%s3 + $0x3c8] sm:$0xff] %v783
  %912 = vst [vmem:[%s3 + $0x3d0] sm:$0xff] %v784
  %913 = vst [vmem:[%s3 + $0x3d8] sm:$0xff] %v785
  %914 = vst [vmem:[%s3 + $0x3e0] sm:$0xff] %v786
  %915 = vst [vmem:[%s3 + $0x3e8] sm:$0xff] %v787
  %916 = vst [vmem:[%s3 + $0x3f0] sm:$0xff] %v788
  %917 = vst [vmem:[%s3 + $0x3f8] sm:$0xff] %v789
  // Predicated region
  $region14: #{conv_block_forward.3} parent=0 // pred_check
    _
  $region15: #{conv_block_forward.3} parent=0 // pred_check_branch
    %919 = sbr.rel (0) target = $region17
  $region16: #{conv_block_forward.3} parent=0 // pred_region
    _
  $region17: #{conv_block_forward.3} parent=0 // pred_fallthru
    _
  // Predicated region
  $region18: #{conv_block_forward.3} parent=0 // pred_check
    _
  $region19: #{conv_block_forward.3} parent=0 // pred_check_branch
    %921 = sbr.rel (0) target = $region21
  $region20: #{conv_block_forward.3} parent=0 // pred_region
    _
  $region21: #{conv_block_forward.3} parent=0 // pred_fallthru
    _

// kernel: conv_block_forward.2
$region0: #{conv_block_forward.2}
  #allocation0 [shape = 'u32[]', space=smem, size = 0x4, offset = 0x4, fixed_abs, tag = 'smem constant byte address 0x4 - core index']
  #allocation1 [shape = 'u32[72,128]{1,0:T(1,128)}', space=vmem, size = 0x9000, scoped, tag = 'internal scratch']
  #allocation2 [shape = 'f32[512,128]{1,0:T(8,128)}', space=vmem, size = 0x40000, scoped, tag = 'scratch operand']
  %s0 = inlined_call_operand.vmem [shape: bf16[2048,12], index: 0, kind: input, shape index: {}, may-alias: {0,1,2}]
  %s1 = inlined_call_operand.vmem [shape: bf16[2048,12], index: 1, kind: input, shape index: {}, may-alias: {0,1,2}]
  %s2 = inlined_call_operand.vmem [shape: bf16[2048,12], index: 2, kind: input, shape index: {}, may-alias: {0,1,2}]
  %s3 = inlined_call_operand.vmem [shape: bf16[3,12,128], index: 3, kind: input, shape index: {}]
  %s4 = inlined_call_operand.vmem [shape: f32[2,1,512], index: 4, kind: input, shape index: {}]
  %s5 = inlined_call_operand.vmem [shape: f32[1024,128], index: 5, kind: output, shape index: {0}]
  %s6 = inlined_call_operand.vmem [shape: f32[2,1,128], index: 6, kind: output, shape index: {1}]
  %s7 = inlined_call_operand.vmem [shape: f32[2,1,128], index: 7, kind: output, shape index: {2}]
  %8 = xla_tuple %s5, %s6, %s7
  %s9 = sld [smem:[#allocation0]]
  $region69: #{conv_block_forward.2} parent=0
    _
  %s11 = ssub.s32 1, %s9
  %s12 = scalar_select 0, %s11, %s9
  loop: start=0, step=1, limit=4
  $region2: #{conv_block_forward.2} parent=0 // loop_pre_header
    _
  $region3: #{conv_block_forward.2} parent=0 // loop_header
    %s14 = sphi 0, %s18
    %p15 = scmp.ge.s32.totalorder %s14, 4
    %s30 = sphi 0, %s32
    %s33 = sphi 0, %s30
    %s34 = sphi 0, %s33
    %s50 = sphi 0, %s34
    %s58 = sphi 0, %s60
    %s61 = sphi 0, %s58
    %s62 = sphi 0, %s61
    %s78 = sphi 0, %s62
    %s88 = sphi 0, %s90
    %s91 = sphi 0, %s88
    %s92 = sphi 0, %s91
    %s108 = sphi 0, %s92
    %s112 = sphi 0, %s112
    %s114 = sphi 0, %s112
    %s115 = sphi 0, %s114
    %s129 = sphi 0, %s115
    %s135 = sphi 0, %s137
    %s138 = sphi 0, %s135
    %s139 = sphi 0, %s138
    %s155 = sphi 0, %s139
    %s161 = sphi 0, %s163
    %s164 = sphi 0, %s161
    %s165 = sphi 0, %s164
    %s181 = sphi 0, %s165
    %s187 = sphi 0, %s189
    %s190 = sphi 0, %s187
    %s191 = sphi 0, %s190
    %s207 = sphi 0, %s191
    %s213 = sphi 0, %s215
    %s216 = sphi 0, %s213
    %s217 = sphi 0, %s216
    %s233 = sphi 0, %s217
  $region4: #{conv_block_forward.2} parent=0 // loop_header_branch
    %17 = sbr.rel (%p15) target = $region8
  $region5: #{conv_block_forward.2} parent=0 // loop_body
    %s19 = ssub.s32 %s14, 1
    %s20 = ssub.s32 %s14, 2
    %s21 = sadd.s32 %s14, 1
    %s22 = sadd.s32 %s14, 1
    %s23 = smul.u32 %s22, 32
    %s24 = ssub.s32 %s23, 1
    %s25 = sadd.s32 %s21, 1
    %s26 = smul.u32 %s25, 32
    %s27 = ssub.s32 %s26, 1
    %s28 = ssub.s32 %s24, %s27
    %p29 = scmp.eq.s32.totalorder %s28, 0
    %s31 = sadd.s32 %s30, 1
    %s32 = scalar_select %p29, %s30, %s31
    %p35 = pneg %p29
    %p36 = scmp.eq.s32.totalorder %s14, 1
    %p37 = por %p35, %p36
    %p38 = scmp.ne.s32.totalorder %s30, %s33
    %p39 = scmp.eq.s32.totalorder %s14, 0
    %p40 = por %p38, %p39
    %p41 = scmp.ne.s32.totalorder %s30, %s33
    %p42 = scmp.eq.s32.totalorder %s19, 1
    %p43 = por %p41, %p42
    %p44 = scmp.ne.s32.totalorder %s33, %s34
    %p45 = scmp.eq.s32.totalorder %s19, 0
    %p46 = por %p44, %p45
    %p47 = scmp.ne.s32.totalorder %s33, %s34
    %p48 = scmp.eq.s32.totalorder %s20, 1
    %p49 = por %p47, %p48
    %p51 = scmp.ne.s32.totalorder %s34, %s50
    %p52 = scmp.eq.s32.totalorder %s20, 0
    %p53 = por %p51, %p52
    %s54 = sadd.s32 %s14, 1
    %s55 = sadd.s32 %s21, 1
    %s56 = ssub.s32 %s54, %s55
    %p57 = scmp.eq.s32.totalorder %s56, 0
    %s59 = sadd.s32 %s58, 1
    %s60 = scalar_select %p57, %s58, %s59
    %p63 = pneg %p57
    %p64 = scmp.eq.s32.totalorder %s14, 1
    %p65 = por %p63, %p64
    %p66 = scmp.ne.s32.totalorder %s58, %s61
    %p67 = scmp.eq.s32.totalorder %s14, 0
    %p68 = por %p66, %p67
    %p69 = scmp.ne.s32.totalorder %s58, %s61
    %p70 = scmp.eq.s32.totalorder %s19, 1
    %p71 = por %p69, %p70
    %p72 = scmp.ne.s32.totalorder %s61, %s62
    %p73 = scmp.eq.s32.totalorder %s19, 0
    %p74 = por %p72, %p73
    %p75 = scmp.ne.s32.totalorder %s61, %s62
    %p76 = scmp.eq.s32.totalorder %s20, 1
    %p77 = por %p75, %p76
    %p79 = scmp.ne.s32.totalorder %s62, %s78
    %p80 = scmp.eq.s32.totalorder %s20, 0
    %p81 = por %p79, %p80
    %s82 = sadd.s32 %s14, 2
    %s83 = smul.u32 %s82, 32
    %s84 = sadd.s32 %s21, 2
    %s85 = smul.u32 %s84, 32
    %s86 = ssub.s32 %s83, %s85
    %p87 = scmp.eq.s32.totalorder %s86, 0
    %s89 = sadd.s32 %s88, 1
    %s90 = scalar_select %p87, %s88, %s89
    %p93 = pneg %p87
    %p94 = scmp.eq.s32.totalorder %s14, 1
    %p95 = por %p93, %p94
    %p96 = scmp.ne.s32.totalorder %s88, %s91
    %p97 = scmp.eq.s32.totalorder %s14, 0
    %p98 = por %p96, %p97
    %p99 = scmp.ne.s32.totalorder %s88, %s91
    %p100 = scmp.eq.s32.totalorder %s19, 1
    %p101 = por %p99, %p100
    %p102 = scmp.ne.s32.totalorder %s91, %s92
    %p103 = scmp.eq.s32.totalorder %s19, 0
    %p104 = por %p102, %p103
    %p105 = scmp.ne.s32.totalorder %s91, %s92
    %p106 = scmp.eq.s32.totalorder %s20, 1
    %p107 = por %p105, %p106
    %p109 = scmp.ne.s32.totalorder %s92, %s108
    %p110 = scmp.eq.s32.totalorder %s20, 0
    %p111 = por %p109, %p110
    %s113 = sadd.s32 %s112, 1
    %p116 = scmp.eq.s32.totalorder %s14, 1
    %p117 = scmp.ne.s32.totalorder %s112, %s114
    %p118 = scmp.eq.s32.totalorder %s14, 0
    %p119 = por %p117, %p118
    %p120 = scmp.ne.s32.totalorder %s112, %s114
    %p121 = scmp.eq.s32.totalorder %s19, 1
    %p122 = por %p120, %p121
    %p123 = scmp.ne.s32.totalorder %s114, %s115
    %p124 = scmp.eq.s32.totalorder %s19, 0
    %p125 = por %p123, %p124
    %p126 = scmp.ne.s32.totalorder %s114, %s115
    %p127 = scmp.eq.s32.totalorder %s20, 1
    %p128 = por %p126, %p127
    %p130 = scmp.ne.s32.totalorder %s115, %s129
    %p131 = scmp.eq.s32.totalorder %s20, 0
    %p132 = por %p130, %p131
    %s133 = ssub.s32 %s14, %s21
    %p134 = scmp.eq.s32.totalorder %s133, 0
    %s136 = sadd.s32 %s135, 1
    %s137 = scalar_select %p134, %s135, %s136
    %p140 = pneg %p134
    %p141 = scmp.eq.s32.totalorder %s14, 1
    %p142 = por %p140, %p141
    %p143 = scmp.ne.s32.totalorder %s135, %s138
    %p144 = scmp.eq.s32.totalorder %s14, 0
    %p145 = por %p143, %p144
    %p146 = scmp.ne.s32.totalorder %s135, %s138
    %p147 = scmp.eq.s32.totalorder %s19, 1
    %p148 = por %p146, %p147
    %p149 = scmp.ne.s32.totalorder %s138, %s139
    %p150 = scmp.eq.s32.totalorder %s19, 0
    %p151 = por %p149, %p150
    %p152 = scmp.ne.s32.totalorder %s138, %s139
    %p153 = scmp.eq.s32.totalorder %s20, 1
    %p154 = por %p152, %p153
    %p156 = scmp.ne.s32.totalorder %s139, %s155
    %p157 = scmp.eq.s32.totalorder %s20, 0
    %p158 = por %p156, %p157
    %s159 = ssub.s32 %s14, %s21
    %p160 = scmp.eq.s32.totalorder %s159, 0
    %s162 = sadd.s32 %s161, 1
    %s163 = scalar_select %p160, %s161, %s162
    %p166 = pneg %p160
    %p167 = scmp.eq.s32.totalorder %s14, 1
    %p168 = por %p166, %p167
    %p169 = scmp.ne.s32.totalorder %s161, %s164
    %p170 = scmp.eq.s32.totalorder %s14, 0
    %p171 = por %p169, %p170
    %p172 = scmp.ne.s32.totalorder %s161, %s164
    %p173 = scmp.eq.s32.totalorder %s19, 1
    %p174 = por %p172, %p173
    %p175 = scmp.ne.s32.totalorder %s164, %s165
    %p176 = scmp.eq.s32.totalorder %s19, 0
    %p177 = por %p175, %p176
    %p178 = scmp.ne.s32.totalorder %s164, %s165
    %p179 = scmp.eq.s32.totalorder %s20, 1
    %p180 = por %p178, %p179
    %p182 = scmp.ne.s32.totalorder %s165, %s181
    %p183 = scmp.eq.s32.totalorder %s20, 0
    %p184 = por %p182, %p183
    %s185 = ssub.s32 %s14, %s21
    %p186 = scmp.eq.s32.totalorder %s185, 0
    %s188 = sadd.s32 %s187, 1
    %s189 = scalar_select %p186, %s187, %s188
    %p192 = pneg %p186
    %p193 = scmp.eq.s32.totalorder %s14, 1
    %p194 = por %p192, %p193
    %p195 = scmp.ne.s32.totalorder %s187, %s190
    %p196 = scmp.eq.s32.totalorder %s14, 0
    %p197 = por %p195, %p196
    %p198 = scmp.ne.s32.totalorder %s187, %s190
    %p199 = scmp.eq.s32.totalorder %s19, 1
    %p200 = por %p198, %p199
    %p201 = scmp.ne.s32.totalorder %s190, %s191
    %p202 = scmp.eq.s32.totalorder %s19, 0
    %p203 = por %p201, %p202
    %p204 = scmp.ne.s32.totalorder %s190, %s191
    %p205 = scmp.eq.s32.totalorder %s20, 1
    %p206 = por %p204, %p205
    %p208 = scmp.ne.s32.totalorder %s191, %s207
    %p209 = scmp.eq.s32.totalorder %s20, 0
    %p210 = por %p208, %p209
    %s211 = ssub.s32 %s14, %s21
    %p212 = scmp.eq.s32.totalorder %s211, 0
    %s214 = sadd.s32 %s213, 1
    %s215 = scalar_select %p212, %s213, %s214
    %p218 = pneg %p212
    %p219 = scmp.eq.s32.totalorder %s14, 1
    %p220 = por %p218, %p219
    %p221 = scmp.ne.s32.totalorder %s213, %s216
    %p222 = scmp.eq.s32.totalorder %s14, 0
    %p223 = por %p221, %p222
    %p224 = scmp.ne.s32.totalorder %s213, %s216
    %p225 = scmp.eq.s32.totalorder %s19, 1
    %p226 = por %p224, %p225
    %p227 = scmp.ne.s32.totalorder %s216, %s217
    %p228 = scmp.eq.s32.totalorder %s19, 0
    %p229 = por %p227, %p228
    %p230 = scmp.ne.s32.totalorder %s216, %s217
    %p231 = scmp.eq.s32.totalorder %s20, 1
    %p232 = por %p230, %p231
    %p234 = scmp.ne.s32.totalorder %s217, %s233
    %p235 = scmp.eq.s32.totalorder %s20, 0
    %p236 = por %p234, %p235
    %p237 = scmp.le.s32.totalorder 1, %s14
    %p238 = scmp.lt.s32.totalorder %s14, 3
    %p239 = pnand %p237, %p238
    %p240 = pneg %p239
    // Predicated region
    $region9: #{conv_block_forward.2} parent=5 // pred_check
      _
    $region10: #{conv_block_forward.2} parent=5 // pred_check_branch
      %242 = sbr.rel (%p239) target = $region12
    $region11: #{conv_block_forward.2} parent=5 // pred_region
      %s243 = ssub.s32 %s14, 1
      // Predicated region
      $region13: #{conv_block_forward.2} parent=11 // pred_check
        %p244 = pneg %p125
      $region14: #{conv_block_forward.2} parent=11 // pred_check_branch
        %246 = sbr.rel (%p244) target = $region16
      $region15: #{conv_block_forward.2} parent=11 // pred_region
        _
      $region16: #{conv_block_forward.2} parent=11 // pred_fallthru
        _
    $region12: #{conv_block_forward.2} parent=5 // pred_fallthru
      _
    %p247 = scmp.lt.s32.totalorder %s14, 2
    // Predicated region
    $region17: #{conv_block_forward.2} parent=5 // pred_check
      %p248 = pneg %p247
    $region18: #{conv_block_forward.2} parent=5 // pred_check_branch
      %250 = sbr.rel (%p248) target = $region20
    $region19: #{conv_block_forward.2} parent=5 // pred_region
      // Predicated region
      $region21: #{conv_block_forward.2} parent=19 // pred_check
        %p251 = pneg %p40
      $region22: #{conv_block_forward.2} parent=19 // pred_check_branch
        %253 = sbr.rel (%p251) target = $region24
      $region23: #{conv_block_forward.2} parent=19 // pred_region
        %s254 = sadd.s32 %s14, 1
        %s255 = smul.u32 %s254, 32
        %s256 = ssub.s32 %s255, 1
        %s257 = smul.u32 2, %s256
        %p258 = scmp.lt.s32.totalorder %s257, 255
        %s259 = scalar_select %p258, %s257, 255
        %s260 = smul.addr %s259, 4
        %s261 = scalar_lea.vmem %s0, %s260
        %s262 = sadd.s32 %s14, 1
        %s263 = smul.u32 %s262, 32
        %s264 = ssub.s32 %s263, 1
        %s265 = smul.u32 2, %s264
      $region24: #{conv_block_forward.2} parent=19 // pred_fallthru
        _
      // Predicated region
      $region25: #{conv_block_forward.2} parent=19 // pred_check
        %p266 = pneg %p68
      $region26: #{conv_block_forward.2} parent=19 // pred_check_branch
        %268 = sbr.rel (%p266) target = $region28
      $region27: #{conv_block_forward.2} parent=19 // pred_region
        %s269 = sadd.s32 %s14, 1
        %s270 = smul.u32 64, %s269
        %p271 = scmp.lt.s32.totalorder %s270, 255
        %s272 = scalar_select %p271, %s270, 255
        %s273 = smul.addr %s272, 4
        %s274 = scalar_lea.vmem %s1, %s273
        %s275 = sadd.s32 %s14, 1
        %s276 = smul.u32 64, %s275
      $region28: #{conv_block_forward.2} parent=19 // pred_fallthru
        _
      // Predicated region
      $region29: #{conv_block_forward.2} parent=19 // pred_check
        %p277 = pneg %p98
      $region30: #{conv_block_forward.2} parent=19 // pred_check_branch
        %279 = sbr.rel (%p277) target = $region32
      $region31: #{conv_block_forward.2} parent=19 // pred_region
        %s280 = sadd.s32 %s14, 2
        %s281 = smul.u32 %s280, 32
        %s282 = smul.u32 2, %s281
        %p283 = scmp.lt.s32.totalorder %s282, 255
        %s284 = scalar_select %p283, %s282, 255
        %s285 = smul.addr %s284, 4
        %s286 = scalar_lea.vmem %s2, %s285
        %s287 = sadd.s32 %s14, 2
        %s288 = smul.u32 %s287, 32
        %s289 = smul.u32 2, %s288
      $region32: #{conv_block_forward.2} parent=19 // pred_fallthru
        _
      // Predicated region
      $region33: #{conv_block_forward.2} parent=19 // pred_check
        %p290 = pneg %p145
      $region34: #{conv_block_forward.2} parent=19 // pred_check_branch
        %292 = sbr.rel (%p290) target = $region36
      $region35: #{conv_block_forward.2} parent=19 // pred_region
        %p293 = scmp.lt.s32.totalorder %s14, 1
        %s294 = scalar_select %p293, %s14, 1
        %s295 = smul.addr %s294, 4
        %s296 = scalar_lea.vmem %s4, %s295
      $region36: #{conv_block_forward.2} parent=19 // pred_fallthru
        _
    $region20: #{conv_block_forward.2} parent=5 // pred_fallthru
      _
    %p297 = scmp.le.s32.totalorder 1, %s14
    %p298 = scmp.lt.s32.totalorder %s14, 3
    %p299 = pnand %p297, %p298
    %p300 = pneg %p299
    // Predicated region
    $region37: #{conv_block_forward.2} parent=5 // pred_check
      _
    $region38: #{conv_block_forward.2} parent=5 // pred_check_branch
      %302 = sbr.rel (%p299) target = $region40
    $region39: #{conv_block_forward.2} parent=5 // pred_region
      %s303 = ssub.s32 %s14, 1
      %s304 = sadd.s32 %s19, 1
      %s305 = smul.u32 %s304, 32
      %s306 = ssub.s32 %s305, 1
      %s307 = smul.u32 2, %s306
      %p308 = scmp.lt.s32.totalorder %s307, 255
      %s309 = scalar_select %p308, %s307, 255
      %s310 = smul.addr %s309, 4
      %s311 = scalar_lea.vmem %s0, %s310
      %p312 = pneg %p46
      %p313 = pneg %p43
      %s314 = sadd.s32 %s19, 1
      %s315 = smul.u32 64, %s314
      %p316 = scmp.lt.s32.totalorder %s315, 255
      %s317 = scalar_select %p316, %s315, 255
      %s318 = smul.addr %s317, 4
      %s319 = scalar_lea.vmem %s1, %s318
      %p320 = pneg %p74
      %p321 = pneg %p71
      %s322 = sadd.s32 %s19, 2
      %s323 = smul.u32 %s322, 32
      %s324 = smul.u32 2, %s323
      %p325 = scmp.lt.s32.totalorder %s324, 255
      %s326 = scalar_select %p325, %s324, 255
      %s327 = smul.addr %s326, 4
      %s328 = scalar_lea.vmem %s2, %s327
      %p329 = pneg %p104
      %p330 = pneg %p101
      %p331 = pneg %p125
      %p332 = pneg %p122
      %p333 = scmp.lt.s32.totalorder %s19, 1
      %s334 = scalar_select %p333, %s19, 1
      %s335 = smul.addr %s334, 4
      %s336 = scalar_lea.vmem %s4, %s335
      %p337 = pneg %p151
      %p338 = pneg %p148
      %p339 = pneg %p177
      %p340 = pneg %p174
      %s341 = smul.u32 64, %s19
      %p342 = scmp.lt.s32.totalorder %s341, 127
      %s343 = scalar_select %p342, %s341, 127
      %s344 = smul.addr %s343, 8
      %s345 = scalar_lea.vmem %s5, %s344
      %p346 = pneg %p203
      %p347 = pneg %p200
      %p348 = scmp.lt.s32.totalorder %s19, 1
      %s349 = scalar_select %p348, %s19, 1
      %s350 = scalar_lea.vmem %s6, %s349
      %p351 = pneg %p229
      %p352 = pneg %p226
      %p353 = scmp.lt.s32.totalorder %s19, 1
      %s354 = scalar_select %p353, %s19, 1
      %s355 = scalar_lea.vmem %s7, %s354
      %s356 = sadd.s32 %s19, 1
      %s357 = smul.u32 %s356, 32
      %s358 = ssub.s32 %s357, 1
      %s359 = smul.u32 2, %s358
      %p360 = scmp.lt.s32.totalorder %s359, 255
      %s361 = scalar_select %p360, %s359, 255
      %s362 = smul.addr %s361, 4
      %s363 = scalar_lea.vmem %s0, %s362
      %s364 = sadd.s32 %s19, 1
      %s365 = smul.u32 %s364, 32
      %s366 = ssub.s32 %s365, 1
      %s367 = smul.u32 2, %s366
      %s368 = sadd.s32 %s19, 1
      %s369 = smul.u32 64, %s368
      %p370 = scmp.lt.s32.totalorder %s369, 255
      %s371 = scalar_select %p370, %s369, 255
      %s372 = smul.addr %s371, 4
      %s373 = scalar_lea.vmem %s1, %s372
      %s374 = sadd.s32 %s19, 1
      %s375 = smul.u32 64, %s374
      %s376 = sadd.s32 %s19, 2
      %s377 = smul.u32 %s376, 32
      %s378 = smul.u32 2, %s377
      %p379 = scmp.lt.s32.totalorder %s378, 255
      %s380 = scalar_select %p379, %s378, 255
      %s381 = smul.addr %s380, 4
      %s382 = scalar_lea.vmem %s2, %s381
      %s383 = sadd.s32 %s19, 2
      %s384 = smul.u32 %s383, 32
      %s385 = smul.u32 2, %s384
      %p386 = scmp.lt.s32.totalorder %s19, 1
      %s387 = scalar_select %p386, %s19, 1
      %s388 = smul.addr %s387, 4
      %s389 = scalar_lea.vmem %s4, %s388
      %s390 = smul.u32 64, %s19
      %p391 = scmp.lt.s32.totalorder %s390, 127
      %s392 = scalar_select %p391, %s390, 127
      %s393 = smul.addr %s392, 8
      %s394 = scalar_lea.vmem %s5, %s393
      %s395 = smul.u32 64, %s19
      %p396 = scmp.lt.s32.totalorder %s19, 1
      %s397 = scalar_select %p396, %s19, 1
      %s398 = scalar_lea.vmem %s6, %s397
      %p399 = scmp.lt.s32.totalorder %s19, 1
      %s400 = scalar_select %p399, %s19, 1
      %s401 = scalar_lea.vmem %s7, %s400
      %v403 = vld [vmem:[%s373] sm:$0xf]
      %v404 = vld [vmem:[%s373 + $0x4] sm:$0xf]
      %v405 = vld [vmem:[%s373 + $0x8] sm:$0xf]
      %v406 = vld [vmem:[%s373 + $0xc] sm:$0xf]
      %v407 = vld [vmem:[%s373 + $0x10] sm:$0xf]
      %v408 = vld [vmem:[%s373 + $0x14] sm:$0xf]
      %v409 = vld [vmem:[%s373 + $0x18] sm:$0xf]
      %v410 = vld [vmem:[%s373 + $0x1c] sm:$0xf]
      %v411 = vld [vmem:[%s373 + $0x20] sm:$0xf]
      %v412 = vld [vmem:[%s373 + $0x24] sm:$0xf]
      %v413 = vld [vmem:[%s373 + $0x28] sm:$0xf]
      %v414 = vld [vmem:[%s373 + $0x2c] sm:$0xf]
      %v415 = vld [vmem:[%s373 + $0x30] sm:$0xf]
      %v416 = vld [vmem:[%s373 + $0x34] sm:$0xf]
      %v417 = vld [vmem:[%s373 + $0x38] sm:$0xf]
      %v418 = vld [vmem:[%s373 + $0x3c] sm:$0xf]
      %v419 = vld [vmem:[%s373 + $0x40] sm:$0xf]
      %v420 = vld [vmem:[%s373 + $0x44] sm:$0xf]
      %v421 = vld [vmem:[%s373 + $0x48] sm:$0xf]
      %v422 = vld [vmem:[%s373 + $0x4c] sm:$0xf]
      %v423 = vld [vmem:[%s373 + $0x50] sm:$0xf]
      %v424 = vld [vmem:[%s373 + $0x54] sm:$0xf]
      %v425 = vld [vmem:[%s373 + $0x58] sm:$0xf]
      %v426 = vld [vmem:[%s373 + $0x5c] sm:$0xf]
      %v427 = vld [vmem:[%s373 + $0x60] sm:$0xf]
      %v428 = vld [vmem:[%s373 + $0x64] sm:$0xf]
      %v429 = vld [vmem:[%s373 + $0x68] sm:$0xf]
      %v430 = vld [vmem:[%s373 + $0x6c] sm:$0xf]
      %v431 = vld [vmem:[%s373 + $0x70] sm:$0xf]
      %v432 = vld [vmem:[%s373 + $0x74] sm:$0xf]
      %v433 = vld [vmem:[%s373 + $0x78] sm:$0xf]
      %v434 = vld [vmem:[%s373 + $0x7c] sm:$0xf]
      %v435 = vld [vmem:[%s373 + $0x80] sm:$0xf]
      %v436 = vld [vmem:[%s373 + $0x84] sm:$0xf]
      %v437 = vld [vmem:[%s373 + $0x88] sm:$0xf]
      %v438 = vld [vmem:[%s373 + $0x8c] sm:$0xf]
      %v439 = vld [vmem:[%s373 + $0x90] sm:$0xf]
      %v440 = vld [vmem:[%s373 + $0x94] sm:$0xf]
      %v441 = vld [vmem:[%s373 + $0x98] sm:$0xf]
      %v442 = vld [vmem:[%s373 + $0x9c] sm:$0xf]
      %v443 = vld [vmem:[%s373 + $0xa0] sm:$0xf]
      %v444 = vld [vmem:[%s373 + $0xa4] sm:$0xf]
      %v445 = vld [vmem:[%s373 + $0xa8] sm:$0xf]
      %v446 = vld [vmem:[%s373 + $0xac] sm:$0xf]
      %v447 = vld [vmem:[%s373 + $0xb0] sm:$0xf]
      %v448 = vld [vmem:[%s373 + $0xb4] sm:$0xf]
      %v449 = vld [vmem:[%s373 + $0xb8] sm:$0xf]
      %v450 = vld [vmem:[%s373 + $0xbc] sm:$0xf]
      %v451 = vld [vmem:[%s373 + $0xc0] sm:$0xf]
      %v452 = vld [vmem:[%s373 + $0xc4] sm:$0xf]
      %v453 = vld [vmem:[%s373 + $0xc8] sm:$0xf]
      %v454 = vld [vmem:[%s373 + $0xcc] sm:$0xf]
      %v455 = vld [vmem:[%s373 + $0xd0] sm:$0xf]
      %v456 = vld [vmem:[%s373 + $0xd4] sm:$0xf]
      %v457 = vld [vmem:[%s373 + $0xd8] sm:$0xf]
      %v458 = vld [vmem:[%s373 + $0xdc] sm:$0xf]
      %v459 = vld [vmem:[%s373 + $0xe0] sm:$0xf]
      %v460 = vld [vmem:[%s373 + $0xe4] sm:$0xf]
      %v461 = vld [vmem:[%s373 + $0xe8] sm:$0xf]
      %v462 = vld [vmem:[%s373 + $0xec] sm:$0xf]
      %v463 = vld [vmem:[%s373 + $0xf0] sm:$0xf]
      %v464 = vld [vmem:[%s373 + $0xf4] sm:$0xf]
      %v465 = vld [vmem:[%s373 + $0xf8] sm:$0xf]
      %v466 = vld [vmem:[%s373 + $0xfc] sm:$0xf]
      %s467 = scalar_lea.vmem %s3, 8
      %v468 = vld [vmem:[%s467] sm:$0xf]
      %v469 = vld [vmem:[%s467 + $0x4] sm:$0x3]
      %v534 = vunpack.c.l.b16 %v403
      %v535 = vunpack.c.l.b16 %v404
      %v536 = vunpack.c.l.b16 %v405
      %v537 = vunpack.c.l.b16 %v406
      %v538 = vunpack.c.l.b16 %v407
      %v539 = vunpack.c.l.b16 %v408
      %v540 = vunpack.c.l.b16 %v409
      %v541 = vunpack.c.l.b16 %v410
      %v542 = vunpack.c.l.b16 %v411
      %v543 = vunpack.c.l.b16 %v412
      %v544 = vunpack.c.l.b16 %v413
      %v545 = vunpack.c.l.b16 %v414
      %v546 = vunpack.c.l.b16 %v415
      %v547 = vunpack.c.l.b16 %v416
      %v548 = vunpack.c.l.b16 %v417
      %v549 = vunpack.c.l.b16 %v418
      %v550 = vunpack.c.l.b16 %v419
      %v551 = vunpack.c.l.b16 %v420
      %v552 = vunpack.c.l.b16 %v421
      %v553 = vunpack.c.l.b16 %v422
      %v554 = vunpack.c.l.b16 %v423
      %v555 = vunpack.c.l.b16 %v424
      %v556 = vunpack.c.l.b16 %v425
      %v557 = vunpack.c.l.b16 %v426
      %v558 = vunpack.c.l.b16 %v427
      %v559 = vunpack.c.l.b16 %v428
      %v560 = vunpack.c.l.b16 %v429
      %v561 = vunpack.c.l.b16 %v430
      %v562 = vunpack.c.l.b16 %v431
      %v563 = vunpack.c.l.b16 %v432
      %v564 = vunpack.c.l.b16 %v433
      %v565 = vunpack.c.l.b16 %v434
      %v566 = vunpack.c.l.b16 %v435
      %v567 = vunpack.c.l.b16 %v436
      %v568 = vunpack.c.l.b16 %v437
      %v569 = vunpack.c.l.b16 %v438
      %v570 = vunpack.c.l.b16 %v439
      %v571 = vunpack.c.l.b16 %v440
      %v572 = vunpack.c.l.b16 %v441
      %v573 = vunpack.c.l.b16 %v442
      %v574 = vunpack.c.l.b16 %v443
      %v575 = vunpack.c.l.b16 %v444
      %v576 = vunpack.c.l.b16 %v445
      %v577 = vunpack.c.l.b16 %v446
      %v578 = vunpack.c.l.b16 %v447
      %v579 = vunpack.c.l.b16 %v448
      %v580 = vunpack.c.l.b16 %v449
      %v581 = vunpack.c.l.b16 %v450
      %v582 = vunpack.c.l.b16 %v451
      %v583 = vunpack.c.l.b16 %v452
      %v584 = vunpack.c.l.b16 %v453
      %v585 = vunpack.c.l.b16 %v454
      %v586 = vunpack.c.l.b16 %v455
      %v587 = vunpack.c.l.b16 %v456
      %v588 = vunpack.c.l.b16 %v457
      %v589 = vunpack.c.l.b16 %v458
      %v590 = vunpack.c.l.b16 %v459
      %v591 = vunpack.c.l.b16 %v460
      %v592 = vunpack.c.l.b16 %v461
      %v593 = vunpack.c.l.b16 %v462
      %v594 = vunpack.c.l.b16 %v463
      %v595 = vunpack.c.l.b16 %v464
      %v596 = vunpack.c.l.b16 %v465
      %v597 = vunpack.c.l.b16 %v466
      %v598 = vpack.c.b16 %v535, %v534
      %v599 = vpack.c.b16 %v537, %v536
      %v600 = vpack.c.b16 %v539, %v538
      %v601 = vpack.c.b16 %v541, %v540
      %v602 = vpack.c.b16 %v543, %v542
      %v603 = vpack.c.b16 %v545, %v544
      %v604 = vpack.c.b16 %v547, %v546
      %v605 = vpack.c.b16 %v549, %v548
      %v606 = vpack.c.b16 %v551, %v550
      %v607 = vpack.c.b16 %v553, %v552
      %v608 = vpack.c.b16 %v555, %v554
      %v609 = vpack.c.b16 %v557, %v556
      %v610 = vpack.c.b16 %v559, %v558
      %v611 = vpack.c.b16 %v561, %v560
      %v612 = vpack.c.b16 %v563, %v562
      %v613 = vpack.c.b16 %v565, %v564
      %v614 = vpack.c.b16 %v567, %v566
      %v615 = vpack.c.b16 %v569, %v568
      %v616 = vpack.c.b16 %v571, %v570
      %v617 = vpack.c.b16 %v573, %v572
      %v618 = vpack.c.b16 %v575, %v574
      %v619 = vpack.c.b16 %v577, %v576
      %v620 = vpack.c.b16 %v579, %v578
      %v621 = vpack.c.b16 %v581, %v580
      %v622 = vpack.c.b16 %v583, %v582
      %v623 = vpack.c.b16 %v585, %v584
      %v624 = vpack.c.b16 %v587, %v586
      %v625 = vpack.c.b16 %v589, %v588
      %v626 = vpack.c.b16 %v591, %v590
      %v627 = vpack.c.b16 %v593, %v592
      %v628 = vpack.c.b16 %v595, %v594
      %v629 = vpack.c.b16 %v597, %v596
      %v632 = vunpack.c.l.b16 %v468
      %v633 = vunpack.c.l.b16 %v469
      %v634 = vpack.c.b16 %v633, %v632
      %vm635 = vcmask 97280
      %v637 = vsel %vm635, %v598, 0
      %v640 = vsel %vm635, %v599, 0
      %v643 = vsel %vm635, %v600, 0
      %v646 = vsel %vm635, %v601, 0
      %v649 = vsel %vm635, %v602, 0
      %v652 = vsel %vm635, %v603, 0
      %v655 = vsel %vm635, %v604, 0
      %v658 = vsel %vm635, %v605, 0
      %v661 = vsel %vm635, %v606, 0
      %v664 = vsel %vm635, %v607, 0
      %v667 = vsel %vm635, %v608, 0
      %v670 = vsel %vm635, %v609, 0
      %v673 = vsel %vm635, %v610, 0
      %v676 = vsel %vm635, %v611, 0
      %v679 = vsel %vm635, %v612, 0
      %v682 = vsel %vm635, %v613, 0
      %v685 = vsel %vm635, %v614, 0
      %v688 = vsel %vm635, %v615, 0
      %v691 = vsel %vm635, %v616, 0
      %v694 = vsel %vm635, %v617, 0
      %v697 = vsel %vm635, %v618, 0
      %v700 = vsel %vm635, %v619, 0
      %v703 = vsel %vm635, %v620, 0
      %v706 = vsel %vm635, %v621, 0
      %v709 = vsel %vm635, %v622, 0
      %v712 = vsel %vm635, %v623, 0
      %v715 = vsel %vm635, %v624, 0
      %v718 = vsel %vm635, %v625, 0
      %v721 = vsel %vm635, %v626, 0
      %v724 = vsel %vm635, %v627, 0
      %v727 = vsel %vm635, %v628, 0
      %v730 = vsel %vm635, %v629, 0
      %vm732 = vcmask 1045504
      %v734 = vsel %vm732, %v634, 0
      %736 = vmatpush.bf16.msra.mxu0 0
      %737 = vmatpush.bf16.msra.mxu0 0
      %738 = vmatpush.bf16.msra.mxu0 0
      %739 = vmatpush.bf16.msra.mxu0 0
      %740 = vmatpush.bf16.msra.mxu0 0
      %741 = vmatpush.bf16.msra.mxu0 0
      %742 = vmatpush.bf16.msra.mxu0 0
      %743 = vmatpush.bf16.msra.mxu0 %v734
      %744 = vmatmul.bf16.gmra.mxu0 %v637
      %v745 = vpop.f32.mrf.mxu0
      %v746 = vadd.f32 0.0, %v745
      %v747 = vpop.f32.mrf.mxu0
      %v748 = vadd.f32 0.0, %v747
      %749 = vmatmul.bf16.gmra.mxu0 %v640
      %v750 = vpop.f32.mrf.mxu0
      %v751 = vadd.f32 0.0, %v750
      %v752 = vpop.f32.mrf.mxu0
      %v753 = vadd.f32 0.0, %v752
      %754 = vmatmul.bf16.gmra.mxu0 %v643
      %v755 = vpop.f32.mrf.mxu0
      %v756 = vadd.f32 0.0, %v755
      %v757 = vpop.f32.mrf.mxu0
      %v758 = vadd.f32 0.0, %v757
      %759 = vmatmul.bf16.gmra.mxu0 %v646
      %v760 = vpop.f32.mrf.mxu0
      %v761 = vadd.f32 0.0, %v760
      %v762 = vpop.f32.mrf.mxu0
      %v763 = vadd.f32 0.0, %v762
      %764 = vmatmul.bf16.gmra.mxu0 %v649
      %v765 = vpop.f32.mrf.mxu0
      %v766 = vadd.f32 0.0, %v765
      %v767 = vpop.f32.mrf.mxu0
      %v768 = vadd.f32 0.0, %v767
      %769 = vmatmul.bf16.gmra.mxu0 %v652
      %v770 = vpop.f32.mrf.mxu0
      %v771 = vadd.f32 0.0, %v770
      %v772 = vpop.f32.mrf.mxu0
      %v773 = vadd.f32 0.0, %v772
      %774 = vmatmul.bf16.gmra.mxu0 %v655
      %v775 = vpop.f32.mrf.mxu0
      %v776 = vadd.f32 0.0, %v775
      %v777 = vpop.f32.mrf.mxu0
      %v778 = vadd.f32 0.0, %v777
      %779 = vmatmul.bf16.gmra.mxu0 %v658
      %v780 = vpop.f32.mrf.mxu0
      %v781 = vadd.f32 0.0, %v780
      %v782 = vpop.f32.mrf.mxu0
      %v783 = vadd.f32 0.0, %v782
      %784 = vmatmul.bf16.gmra.mxu0 %v661
      %v785 = vpop.f32.mrf.mxu0
      %v786 = vadd.f32 0.0, %v785
      %v787 = vpop.f32.mrf.mxu0
      %v788 = vadd.f32 0.0, %v787
      %789 = vmatmul.bf16.gmra.mxu0 %v664
      %v790 = vpop.f32.mrf.mxu0
      %v791 = vadd.f32 0.0, %v790
      %v792 = vpop.f32.mrf.mxu0
      %v793 = vadd.f32 0.0, %v792
      %794 = vmatmul.bf16.gmra.mxu0 %v667
      %v795 = vpop.f32.mrf.mxu0
      %v796 = vadd.f32 0.0, %v795
      %v797 = vpop.f32.mrf.mxu0
      %v798 = vadd.f32 0.0, %v797
      %799 = vmatmul.bf16.gmra.mxu0 %v670
      %v800 = vpop.f32.mrf.mxu0
      %v801 = vadd.f32 0.0, %v800
      %v802 = vpop.f32.mrf.mxu0
      %v803 = vadd.f32 0.0, %v802
      %804 = vmatmul.bf16.gmra.mxu0 %v673
      %v805 = vpop.f32.mrf.mxu0
      %v806 = vadd.f32 0.0, %v805
      %v807 = vpop.f32.mrf.mxu0
      %v808 = vadd.f32 0.0, %v807
      %809 = vmatmul.bf16.gmra.mxu0 %v676
      %v810 = vpop.f32.mrf.mxu0
      %v811 = vadd.f32 0.0, %v810
      %v812 = vpop.f32.mrf.mxu0
      %v813 = vadd.f32 0.0, %v812
      %814 = vmatmul.bf16.gmra.mxu0 %v679
      %v815 = vpop.f32.mrf.mxu0
      %v816 = vadd.f32 0.0, %v815
      %v817 = vpop.f32.mrf.mxu0
      %v818 = vadd.f32 0.0, %v817
      %819 = vmatmul.bf16.gmra.mxu0 %v682
      %v820 = vpop.f32.mrf.mxu0
      %v821 = vadd.f32 0.0, %v820
      %v822 = vpop.f32.mrf.mxu0
      %v823 = vadd.f32 0.0, %v822
      %824 = vmatmul.bf16.gmra.mxu0 %v685
      %v825 = vpop.f32.mrf.mxu0
      %v826 = vadd.f32 0.0, %v825
      %v827 = vpop.f32.mrf.mxu0
      %v828 = vadd.f32 0.0, %v827
      %829 = vmatmul.bf16.gmra.mxu0 %v688
      %v830 = vpop.f32.mrf.mxu0
      %v831 = vadd.f32 0.0, %v830
      %v832 = vpop.f32.mrf.mxu0
      %v833 = vadd.f32 0.0, %v832
      %834 = vmatmul.bf16.gmra.mxu0 %v691
      %v835 = vpop.f32.mrf.mxu0
      %v836 = vadd.f32 0.0, %v835
      %v837 = vpop.f32.mrf.mxu0
      %v838 = vadd.f32 0.0, %v837
      %839 = vmatmul.bf16.gmra.mxu0 %v694
      %v840 = vpop.f32.mrf.mxu0
      %v841 = vadd.f32 0.0, %v840
      %v842 = vpop.f32.mrf.mxu0
      %v843 = vadd.f32 0.0, %v842
      %844 = vmatmul.bf16.gmra.mxu0 %v697
      %v845 = vpop.f32.mrf.mxu0
      %v846 = vadd.f32 0.0, %v845
      %v847 = vpop.f32.mrf.mxu0
      %v848 = vadd.f32 0.0, %v847
      %849 = vmatmul.bf16.gmra.mxu0 %v700
      %v850 = vpop.f32.mrf.mxu0
      %v851 = vadd.f32 0.0, %v850
      %v852 = vpop.f32.mrf.mxu0
      %v853 = vadd.f32 0.0, %v852
      %854 = vmatmul.bf16.gmra.mxu0 %v703
      %v855 = vpop.f32.mrf.mxu0
      %v856 = vadd.f32 0.0, %v855
      %v857 = vpop.f32.mrf.mxu0
      %v858 = vadd.f32 0.0, %v857
      %859 = vmatmul.bf16.gmra.mxu0 %v706
      %v860 = vpop.f32.mrf.mxu0
      %v861 = vadd.f32 0.0, %v860
      %v862 = vpop.f32.mrf.mxu0
      %v863 = vadd.f32 0.0, %v862
      %864 = vmatmul.bf16.gmra.mxu0 %v709
      %v865 = vpop.f32.mrf.mxu0
      %v866 = vadd.f32 0.0, %v865
      %v867 = vpop.f32.mrf.mxu0
      %v868 = vadd.f32 0.0, %v867
      %869 = vmatmul.bf16.gmra.mxu0 %v712
      %v870 = vpop.f32.mrf.mxu0
      %v871 = vadd.f32 0.0, %v870
      %v872 = vpop.f32.mrf.mxu0
      %v873 = vadd.f32 0.0, %v872
      %874 = vmatmul.bf16.gmra.mxu0 %v715
      %v875 = vpop.f32.mrf.mxu0
      %v876 = vadd.f32 0.0, %v875
      %v877 = vpop.f32.mrf.mxu0
      %v878 = vadd.f32 0.0, %v877
      %879 = vmatmul.bf16.gmra.mxu0 %v718
      %v880 = vpop.f32.mrf.mxu0
      %v881 = vadd.f32 0.0, %v880
      %v882 = vpop.f32.mrf.mxu0
      %v883 = vadd.f32 0.0, %v882
      %884 = vmatmul.bf16.gmra.mxu0 %v721
      %v885 = vpop.f32.mrf.mxu0
      %v886 = vadd.f32 0.0, %v885
      %v887 = vpop.f32.mrf.mxu0
      %v888 = vadd.f32 0.0, %v887
      %889 = vmatmul.bf16.gmra.mxu0 %v724
      %v890 = vpop.f32.mrf.mxu0
      %v891 = vadd.f32 0.0, %v890
      %v892 = vpop.f32.mrf.mxu0
      %v893 = vadd.f32 0.0, %v892
      %894 = vmatmul.bf16.gmra.mxu0 %v727
      %v895 = vpop.f32.mrf.mxu0
      %v896 = vadd.f32 0.0, %v895
      %v897 = vpop.f32.mrf.mxu0
      %v898 = vadd.f32 0.0, %v897
      %899 = vmatmul.bf16.gmra.mxu0 %v730
      %v900 = vpop.f32.mrf.mxu0
      %v901 = vadd.f32 0.0, %v900
      %v902 = vpop.f32.mrf.mxu0
      %v903 = vadd.f32 0.0, %v902
      %904 = vdwg.mxu0
      %905 = vst [vmem:[#allocation2] sm:$0xff] %v746
      %906 = vst [vmem:[#allocation2 + $0x8] sm:$0xff] %v748
      %907 = vst [vmem:[#allocation2 + $0x10] sm:$0xff] %v751
      %908 = vst [vmem:[#allocation2 + $0x18] sm:$0xff] %v753
      %909 = vst [vmem:[#allocation2 + $0x20] sm:$0xff] %v756
      %910 = vst [vmem:[#allocation2 + $0x28] sm:$0xff] %v758
      %911 = vst [vmem:[#allocation2 + $0x30] sm:$0xff] %v761
      %912 = vst [vmem:[#allocation2 + $0x38] sm:$0xff] %v763
      %913 = vst [vmem:[#allocation2 + $0x40] sm:$0xff] %v766
      %914 = vst [vmem:[#allocation2 + $0x48] sm:$0xff] %v768
      %915 = vst [vmem:[#allocation2 + $0x50] sm:$0xff] %v771
      %916 = vst [vmem:[#allocation2 + $0x58] sm:$0xff] %v773
      %917 = vst [vmem:[#allocation2 + $0x60] sm:$0xff] %v776
      %918 = vst [vmem:[#allocation2 + $0x68] sm:$0xff] %v778
      %919 = vst [vmem:[#allocation2 + $0x70] sm:$0xff] %v781
      %920 = vst [vmem:[#allocation2 + $0x78] sm:$0xff] %v783
      %921 = vst [vmem:[#allocation2 + $0x80] sm:$0xff] %v786
      %922 = vst [vmem:[#allocation2 + $0x88] sm:$0xff] %v788
      %923 = vst [vmem:[#allocation2 + $0x90] sm:$0xff] %v791
      %924 = vst [vmem:[#allocation2 + $0x98] sm:$0xff] %v793
      %925 = vst [vmem:[#allocation2 + $0xa0] sm:$0xff] %v796
      %926 = vst [vmem:[#allocation2 + $0xa8] sm:$0xff] %v798
      %927 = vst [vmem:[#allocation2 + $0xb0] sm:$0xff] %v801
      %928 = vst [vmem:[#allocation2 + $0xb8] sm:$0xff] %v803
      %929 = vst [vmem:[#allocation2 + $0xc0] sm:$0xff] %v806
      %930 = vst [vmem:[#allocation2 + $0xc8] sm:$0xff] %v808
      %931 = vst [vmem:[#allocation2 + $0xd0] sm:$0xff] %v811
      %932 = vst [vmem:[#allocation2 + $0xd8] sm:$0xff] %v813
      %933 = vst [vmem:[#allocation2 + $0xe0] sm:$0xff] %v816
      %934 = vst [vmem:[#allocation2 + $0xe8] sm:$0xff] %v818
      %935 = vst [vmem:[#allocation2 + $0xf0] sm:$0xff] %v821
      %936 = vst [vmem:[#allocation2 + $0xf8] sm:$0xff] %v823
      %937 = vst [vmem:[#allocation2 + $0x100] sm:$0xff] %v826
      %938 = vst [vmem:[#allocation2 + $0x108] sm:$0xff] %v828
      %939 = vst [vmem:[#allocation2 + $0x110] sm:$0xff] %v831
      %940 = vst [vmem:[#allocation2 + $0x118] sm:$0xff] %v833
      %941 = vst [vmem:[#allocation2 + $0x120] sm:$0xff] %v836
      %942 = vst [vmem:[#allocation2 + $0x128] sm:$0xff] %v838
      %943 = vst [vmem:[#allocation2 + $0x130] sm:$0xff] %v841
      %944 = vst [vmem:[#allocation2 + $0x138] sm:$0xff] %v843
      %945 = vst [vmem:[#allocation2 + $0x140] sm:$0xff] %v846
      %946 = vst [vmem:[#allocation2 + $0x148] sm:$0xff] %v848
      %947 = vst [vmem:[#allocation2 + $0x150] sm:$0xff] %v851
      %948 = vst [vmem:[#allocation2 + $0x158] sm:$0xff] %v853
      %949 = vst [vmem:[#allocation2 + $0x160] sm:$0xff] %v856
      %950 = vst [vmem:[#allocation2 + $0x168] sm:$0xff] %v858
      %951 = vst [vmem:[#allocation2 + $0x170] sm:$0xff] %v861
      %952 = vst [vmem:[#allocation2 + $0x178] sm:$0xff] %v863
      %953 = vst [vmem:[#allocation2 + $0x180] sm:$0xff] %v866
      %954 = vst [vmem:[#allocation2 + $0x188] sm:$0xff] %v868
      %955 = vst [vmem:[#allocation2 + $0x190] sm:$0xff] %v871
      %956 = vst [vmem:[#allocation2 + $0x198] sm:$0xff] %v873
      %957 = vst [vmem:[#allocation2 + $0x1a0] sm:$0xff] %v876
      %958 = vst [vmem:[#allocation2 + $0x1a8] sm:$0xff] %v878
      %959 = vst [vmem:[#allocation2 + $0x1b0] sm:$0xff] %v881
      %960 = vst [vmem:[#allocation2 + $0x1b8] sm:$0xff] %v883
      %961 = vst [vmem:[#allocation2 + $0x1c0] sm:$0xff] %v886
      %962 = vst [vmem:[#allocation2 + $0x1c8] sm:$0xff] %v888
      %963 = vst [vmem:[#allocation2 + $0x1d0] sm:$0xff] %v891
      %964 = vst [vmem:[#allocation2 + $0x1d8] sm:$0xff] %v893
      %965 = vst [vmem:[#allocation2 + $0x1e0] sm:$0xff] %v896
      %966 = vst [vmem:[#allocation2 + $0x1e8] sm:$0xff] %v898
      %967 = vst [vmem:[#allocation2 + $0x1f0] sm:$0xff] %v901
      %968 = vst [vmem:[#allocation2 + $0x1f8] sm:$0xff] %v903
      %v969 = vld [vmem:[#allocation2] sm:$0xff]
      %v970 = vld [vmem:[#allocation2 + $0x8] sm:$0xff]
      %v971 = vld [vmem:[%s363] sm:$0xf]
      %v972 = vld [vmem:[%s363 + $0x4] sm:$0xf]
      %v973 = vld [vmem:[%s3] sm:$0xf]
      %v974 = vld [vmem:[%s3 + $0x4] sm:$0x3]
      %v977 = vunpack.c.l.b16 %v971
      %v978 = vunpack.c.l.b16 %v972
      %v979 = vpack.c.b16 %v978, %v977
      %v982 = vunpack.c.l.b16 %v973
      %v983 = vunpack.c.l.b16 %v974
      %v984 = vpack.c.b16 %v983, %v982
      %v986 = vsel %vm635, %v979, 0
      %v989 = vsel %vm732, %v984, 0
      %991 = vmatpush.bf16.msra.mxu0 0
      %992 = vmatpush.bf16.msra.mxu0 0
      %993 = vmatpush.bf16.msra.mxu0 0
      %994 = vmatpush.bf16.msra.mxu0 0
      %995 = vmatpush.bf16.msra.mxu0 0
      %996 = vmatpush.bf16.msra.mxu0 0
      %997 = vmatpush.bf16.msra.mxu0 0
      %998 = vmatpush.bf16.msra.mxu0 %v989
      %999 = vmatmul.bf16.gmra.mxu0 %v986
      %v1000 = vpop.f32.mrf.mxu0
      %v1001 = vadd.f32 0.0, %v1000
      %v1002 = vpop.f32.mrf.mxu0
      %v1003 = vadd.f32 0.0, %v1002
      %1004 = vdwg.mxu0
      %v1005 = vadd.f32 %v969, %v1001
      %v1006 = vadd.f32 %v970, %v1003
      %1007 = vst [vmem:[#allocation2] sm:$0xff] %v1005
      %1008 = vst [vmem:[#allocation2 + $0x8] sm:$0xff] %v1006
      %v1009 = vld [vmem:[#allocation2 + $0x10] sm:$0xff]
      %v1010 = vld [vmem:[#allocation2 + $0x18] sm:$0xff]
      %v1011 = vld [vmem:[#allocation2 + $0x20] sm:$0xff]
      %v1012 = vld [vmem:[#allocation2 + $0x28] sm:$0xff]
      %v1013 = vld [vmem:[#allocation2 + $0x30] sm:$0xff]
      %v1014 = vld [vmem:[#allocation2 + $0x38] sm:$0xff]
      %v1015 = vld [vmem:[#allocation2 + $0x40] sm:$0xff]
      %v1016 = vld [vmem:[#allocation2 + $0x48] sm:$0xff]
      %v1017 = vld [vmem:[#allocation2 + $0x50] sm:$0xff]
      %v1018 = vld [vmem:[#allocation2 + $0x58] sm:$0xff]
      %v1019 = vld [vmem:[#allocation2 + $0x60] sm:$0xff]
      %v1020 = vld [vmem:[#allocation2 + $0x68] sm:$0xff]
      %v1021 = vld [vmem:[#allocation2 + $0x70] sm:$0xff]
      %v1022 = vld [vmem:[#allocation2 + $0x78] sm:$0xff]
      %v1023 = vld [vmem:[#allocation2 + $0x80] sm:$0xff]
      %v1024 = vld [vmem:[#allocation2 + $0x88] sm:$0xff]
      %v1025 = vld [vmem:[#allocation2 + $0x90] sm:$0xff]
      %v1026 = vld [vmem:[#allocation2 + $0x98] sm:$0xff]
      %v1027 = vld [vmem:[#allocation2 + $0xa0] sm:$0xff]
      %v1028 = vld [vmem:[#allocation2 + $0xa8] sm:$0xff]
      %v1029 = vld [vmem:[#allocation2 + $0xb0] sm:$0xff]
      %v1030 = vld [vmem:[#allocation2 + $0xb8] sm:$0xff]
      %v1031 = vld [vmem:[#allocation2 + $0xc0] sm:$0xff]
      %v1032 = vld [vmem:[#allocation2 + $0xc8] sm:$0xff]
      %v1033 = vld [vmem:[#allocation2 + $0xd0] sm:$0xff]
      %v1034 = vld [vmem:[#allocation2 + $0xd8] sm:$0xff]
      %v1035 = vld [vmem:[#allocation2 + $0xe0] sm:$0xff]
      %v1036 = vld [vmem:[#allocation2 + $0xe8] sm:$0xff]
      %v1037 = vld [vmem:[#allocation2 + $0xf0] sm:$0xff]
      %v1038 = vld [vmem:[#allocation2 + $0xf8] sm:$0xff]
      %v1039 = vld [vmem:[#allocation2 + $0x100] sm:$0xff]
      %v1040 = vld [vmem:[#allocation2 + $0x108] sm:$0xff]
      %v1041 = vld [vmem:[#allocation2 + $0x110] sm:$0xff]
      %v1042 = vld [vmem:[#allocation2 + $0x118] sm:$0xff]
      %v1043 = vld [vmem:[#allocation2 + $0x120] sm:$0xff]
      %v1044 = vld [vmem:[#allocation2 + $0x128] sm:$0xff]
      %v1045 = vld [vmem:[#allocation2 + $0x130] sm:$0xff]
      %v1046 = vld [vmem:[#allocation2 + $0x138] sm:$0xff]
      %v1047 = vld [vmem:[#allocation2 + $0x140] sm:$0xff]
      %v1048 = vld [vmem:[#allocation2 + $0x148] sm:$0xff]
      %v1049 = vld [vmem:[#allocation2 + $0x150] sm:$0xff]
      %v1050 = vld [vmem:[#allocation2 + $0x158] sm:$0xff]
      %v1051 = vld [vmem:[#allocation2 + $0x160] sm:$0xff]
      %v1052 = vld [vmem:[#allocation2 + $0x168] sm:$0xff]
      %v1053 = vld [vmem:[#allocation2 + $0x170] sm:$0xff]
      %v1054 = vld [vmem:[#allocation2 + $0x178] sm:$0xff]
      %v1055 = vld [vmem:[#allocation2 + $0x180] sm:$0xff]
      %v1056 = vld [vmem:[#allocation2 + $0x188] sm:$0xff]
      %v1057 = vld [vmem:[#allocation2 + $0x190] sm:$0xff]
      %v1058 = vld [vmem:[#allocation2 + $0x198] sm:$0xff]
      %v1059 = vld [vmem:[#allocation2 + $0x1a0] sm:$0xff]
      %v1060 = vld [vmem:[#allocation2 + $0x1a8] sm:$0xff]
      %v1061 = vld [vmem:[#allocation2 + $0x1b0] sm:$0xff]
      %v1062 = vld [vmem:[#allocation2 + $0x1b8] sm:$0xff]
      %v1063 = vld [vmem:[#allocation2 + $0x1c0] sm:$0xff]
      %v1064 = vld [vmem:[#allocation2 + $0x1c8] sm:$0xff]
      %v1065 = vld [vmem:[#allocation2 + $0x1d0] sm:$0xff]
      %v1066 = vld [vmem:[#allocation2 + $0x1d8] sm:$0xff]
      %v1067 = vld [vmem:[#allocation2 + $0x1e0] sm:$0xff]
      %v1068 = vld [vmem:[#allocation2 + $0x1e8] sm:$0xff]
      %v1069 = vld [vmem:[#allocation2 + $0x1f0] sm:$0xff]
      %v1070 = vld [vmem:[#allocation2 + $0x1f8] sm:$0xff]
      %v1071 = vld [vmem:[%s373] sm:$0xf]
      %v1072 = vld [vmem:[%s373 + $0x4] sm:$0xf]
      %v1073 = vld [vmem:[%s373 + $0x8] sm:$0xf]
      %v1074 = vld [vmem:[%s373 + $0xc] sm:$0xf]
      %v1075 = vld [vmem:[%s373 + $0x10] sm:$0xf]
      %v1076 = vld [vmem:[%s373 + $0x14] sm:$0xf]
      %v1077 = vld [vmem:[%s373 + $0x18] sm:$0xf]
      %v1078 = vld [vmem:[%s373 + $0x1c] sm:$0xf]
      %v1079 = vld [vmem:[%s373 + $0x20] sm:$0xf]
      %v1080 = vld [vmem:[%s373 + $0x24] sm:$0xf]
      %v1081 = vld [vmem:[%s373 + $0x28] sm:$0xf]
      %v1082 = vld [vmem:[%s373 + $0x2c] sm:$0xf]
      %v1083 = vld [vmem:[%s373 + $0x30] sm:$0xf]
      %v1084 = vld [vmem:[%s373 + $0x34] sm:$0xf]
      %v1085 = vld [vmem:[%s373 + $0x38] sm:$0xf]
      %v1086 = vld [vmem:[%s373 + $0x3c] sm:$0xf]
      %v1087 = vld [vmem:[%s373 + $0x40] sm:$0xf]
      %v1088 = vld [vmem:[%s373 + $0x44] sm:$0xf]
      %v1089 = vld [vmem:[%s373 + $0x48] sm:$0xf]
      %v1090 = vld [vmem:[%s373 + $0x4c] sm:$0xf]
      %v1091 = vld [vmem:[%s373 + $0x50] sm:$0xf]
      %v1092 = vld [vmem:[%s373 + $0x54] sm:$0xf]
      %v1093 = vld [vmem:[%s373 + $0x58] sm:$0xf]
      %v1094 = vld [vmem:[%s373 + $0x5c] sm:$0xf]
      %v1095 = vld [vmem:[%s373 + $0x60] sm:$0xf]
      %v1096 = vld [vmem:[%s373 + $0x64] sm:$0xf]
      %v1097 = vld [vmem:[%s373 + $0x68] sm:$0xf]
      %v1098 = vld [vmem:[%s373 + $0x6c] sm:$0xf]
      %v1099 = vld [vmem:[%s373 + $0x70] sm:$0xf]
      %v1100 = vld [vmem:[%s373 + $0x74] sm:$0xf]
      %v1101 = vld [vmem:[%s373 + $0x78] sm:$0xf]
      %v1102 = vld [vmem:[%s373 + $0x7c] sm:$0xf]
      %v1103 = vld [vmem:[%s373 + $0x80] sm:$0xf]
      %v1104 = vld [vmem:[%s373 + $0x84] sm:$0xf]
      %v1105 = vld [vmem:[%s373 + $0x88] sm:$0xf]
      %v1106 = vld [vmem:[%s373 + $0x8c] sm:$0xf]
      %v1107 = vld [vmem:[%s373 + $0x90] sm:$0xf]
      %v1108 = vld [vmem:[%s373 + $0x94] sm:$0xf]
      %v1109 = vld [vmem:[%s373 + $0x98] sm:$0xf]
      %v1110 = vld [vmem:[%s373 + $0x9c] sm:$0xf]
      %v1111 = vld [vmem:[%s373 + $0xa0] sm:$0xf]
      %v1112 = vld [vmem:[%s373 + $0xa4] sm:$0xf]
      %v1113 = vld [vmem:[%s373 + $0xa8] sm:$0xf]
      %v1114 = vld [vmem:[%s373 + $0xac] sm:$0xf]
      %v1115 = vld [vmem:[%s373 + $0xb0] sm:$0xf]
      %v1116 = vld [vmem:[%s373 + $0xb4] sm:$0xf]
      %v1117 = vld [vmem:[%s373 + $0xb8] sm:$0xf]
      %v1118 = vld [vmem:[%s373 + $0xbc] sm:$0xf]
      %v1119 = vld [vmem:[%s373 + $0xc0] sm:$0xf]
      %v1120 = vld [vmem:[%s373 + $0xc4] sm:$0xf]
      %v1121 = vld [vmem:[%s373 + $0xc8] sm:$0xf]
      %v1122 = vld [vmem:[%s373 + $0xcc] sm:$0xf]
      %v1123 = vld [vmem:[%s373 + $0xd0] sm:$0xf]
      %v1124 = vld [vmem:[%s373 + $0xd4] sm:$0xf]
      %v1125 = vld [vmem:[%s373 + $0xd8] sm:$0xf]
      %v1126 = vld [vmem:[%s373 + $0xdc] sm:$0xf]
      %v1127 = vld [vmem:[%s373 + $0xe0] sm:$0xf]
      %v1128 = vld [vmem:[%s373 + $0xe4] sm:$0xf]
      %v1129 = vld [vmem:[%s373 + $0xe8] sm:$0xf]
      %v1130 = vld [vmem:[%s373 + $0xec] sm:$0xf]
      %v1131 = vld [vmem:[%s373 + $0xf0] sm:$0xf]
      %v1132 = vld [vmem:[%s373 + $0xf4] sm:$0xf]
      %v1133 = vld [vmem:[%s3] sm:$0xf]
      %v1134 = vld [vmem:[%s3 + $0x4] sm:$0x3]
      %v1197 = vunpack.c.l.b16 %v1071
      %v1198 = vunpack.c.l.b16 %v1072
      %v1199 = vunpack.c.l.b16 %v1073
      %v1200 = vunpack.c.l.b16 %v1074
      %v1201 = vunpack.c.l.b16 %v1075
      %v1202 = vunpack.c.l.b16 %v1076
      %v1203 = vunpack.c.l.b16 %v1077
      %v1204 = vunpack.c.l.b16 %v1078
      %v1205 = vunpack.c.l.b16 %v1079
      %v1206 = vunpack.c.l.b16 %v1080
      %v1207 = vunpack.c.l.b16 %v1081
      %v1208 = vunpack.c.l.b16 %v1082
      %v1209 = vunpack.c.l.b16 %v1083
      %v1210 = vunpack.c.l.b16 %v1084
      %v1211 = vunpack.c.l.b16 %v1085
      %v1212 = vunpack.c.l.b16 %v1086
      %v1213 = vunpack.c.l.b16 %v1087
      %v1214 = vunpack.c.l.b16 %v1088
      %v1215 = vunpack.c.l.b16 %v1089
      %v1216 = vunpack.c.l.b16 %v1090
      %v1217 = vunpack.c.l.b16 %v1091
      %v1218 = vunpack.c.l.b16 %v1092
      %v1219 = vunpack.c.l.b16 %v1093
      %v1220 = vunpack.c.l.b16 %v1094
      %v1221 = vunpack.c.l.b16 %v1095
      %v1222 = vunpack.c.l.b16 %v1096
      %v1223 = vunpack.c.l.b16 %v1097
      %v1224 = vunpack.c.l.b16 %v1098
      %v1225 = vunpack.c.l.b16 %v1099
      %v1226 = vunpack.c.l.b16 %v1100
      %v1227 = vunpack.c.l.b16 %v1101
      %v1228 = vunpack.c.l.b16 %v1102
      %v1229 = vunpack.c.l.b16 %v1103
      %v1230 = vunpack.c.l.b16 %v1104
      %v1231 = vunpack.c.l.b16 %v1105
      %v1232 = vunpack.c.l.b16 %v1106
      %v1233 = vunpack.c.l.b16 %v1107
      %v1234 = vunpack.c.l.b16 %v1108
      %v1235 = vunpack.c.l.b16 %v1109
      %v1236 = vunpack.c.l.b16 %v1110
      %v1237 = vunpack.c.l.b16 %v1111
      %v1238 = vunpack.c.l.b16 %v1112
      %v1239 = vunpack.c.l.b16 %v1113
      %v1240 = vunpack.c.l.b16 %v1114
      %v1241 = vunpack.c.l.b16 %v1115
      %v1242 = vunpack.c.l.b16 %v1116
      %v1243 = vunpack.c.l.b16 %v1117
      %v1244 = vunpack.c.l.b16 %v1118
      %v1245 = vunpack.c.l.b16 %v1119
      %v1246 = vunpack.c.l.b16 %v1120
      %v1247 = vunpack.c.l.b16 %v1121
      %v1248 = vunpack.c.l.b16 %v1122
      %v1249 = vunpack.c.l.b16 %v1123
      %v1250 = vunpack.c.l.b16 %v1124
      %v1251 = vunpack.c.l.b16 %v1125
      %v1252 = vunpack.c.l.b16 %v1126
      %v1253 = vunpack.c.l.b16 %v1127
      %v1254 = vunpack.c.l.b16 %v1128
      %v1255 = vunpack.c.l.b16 %v1129
      %v1256 = vunpack.c.l.b16 %v1130
      %v1257 = vunpack.c.l.b16 %v1131
      %v1258 = vunpack.c.l.b16 %v1132
      %v1259 = vpack.c.b16 %v1198, %v1197
      %v1260 = vpack.c.b16 %v1200, %v1199
      %v1261 = vpack.c.b16 %v1202, %v1201
      %v1262 = vpack.c.b16 %v1204, %v1203
      %v1263 = vpack.c.b16 %v1206, %v1205
      %v1264 = vpack.c.b16 %v1208, %v1207
      %v1265 = vpack.c.b16 %v1210, %v1209
      %v1266 = vpack.c.b16 %v1212, %v1211
      %v1267 = vpack.c.b16 %v1214, %v1213
      %v1268 = vpack.c.b16 %v1216, %v1215
      %v1269 = vpack.c.b16 %v1218, %v1217
      %v1270 = vpack.c.b16 %v1220, %v1219
      %v1271 = vpack.c.b16 %v1222, %v1221
      %v1272 = vpack.c.b16 %v1224, %v1223
      %v1273 = vpack.c.b16 %v1226, %v1225
      %v1274 = vpack.c.b16 %v1228, %v1227
      %v1275 = vpack.c.b16 %v1230, %v1229
      %v1276 = vpack.c.b16 %v1232, %v1231
      %v1277 = vpack.c.b16 %v1234, %v1233
      %v1278 = vpack.c.b16 %v1236, %v1235
      %v1279 = vpack.c.b16 %v1238, %v1237
      %v1280 = vpack.c.b16 %v1240, %v1239
      %v1281 = vpack.c.b16 %v1242, %v1241
      %v1282 = vpack.c.b16 %v1244, %v1243
      %v1283 = vpack.c.b16 %v1246, %v1245
      %v1284 = vpack.c.b16 %v1248, %v1247
      %v1285 = vpack.c.b16 %v1250, %v1249
      %v1286 = vpack.c.b16 %v1252, %v1251
      %v1287 = vpack.c.b16 %v1254, %v1253
      %v1288 = vpack.c.b16 %v1256, %v1255
      %v1289 = vpack.c.b16 %v1258, %v1257
      %v1292 = vunpack.c.l.b16 %v1133
      %v1293 = vunpack.c.l.b16 %v1134
      %v1294 = vpack.c.b16 %v1293, %v1292
      %v1296 = vsel %vm635, %v1259, 0
      %v1299 = vsel %vm635, %v1260, 0
      %v1302 = vsel %vm635, %v1261, 0
      %v1305 = vsel %vm635, %v1262, 0
      %v1308 = vsel %vm635, %v1263, 0
      %v1311 = vsel %vm635, %v1264, 0
      %v1314 = vsel %vm635, %v1265, 0
      %v1317 = vsel %vm635, %v1266, 0
      %v1320 = vsel %vm635, %v1267, 0
      %v1323 = vsel %vm635, %v1268, 0
      %v1326 = vsel %vm635, %v1269, 0
      %v1329 = vsel %vm635, %v1270, 0
      %v1332 = vsel %vm635, %v1271, 0
      %v1335 = vsel %vm635, %v1272, 0
      %v1338 = vsel %vm635, %v1273, 0
      %v1341 = vsel %vm635, %v1274, 0
      %v1344 = vsel %vm635, %v1275, 0
      %v1347 = vsel %vm635, %v1276, 0
      %v1350 = vsel %vm635, %v1277, 0
      %v1353 = vsel %vm635, %v1278, 0
      %v1356 = vsel %vm635, %v1279, 0
      %v1359 = vsel %vm635, %v1280, 0
      %v1362 = vsel %vm635, %v1281, 0
      %v1365 = vsel %vm635, %v1282, 0
      %v1368 = vsel %vm635, %v1283, 0
      %v1371 = vsel %vm635, %v1284, 0
      %v1374 = vsel %vm635, %v1285, 0
      %v1377 = vsel %vm635, %v1286, 0
      %v1380 = vsel %vm635, %v1287, 0
      %v1383 = vsel %vm635, %v1288, 0
      %v1386 = vsel %vm635, %v1289, 0
      %v1389 = vsel %vm732, %v1294, 0
      %1391 = vmatpush.bf16.msra.mxu0 0
      %1392 = vmatpush.bf16.msra.mxu0 0
      %1393 = vmatpush.bf16.msra.mxu0 0
      %1394 = vmatpush.bf16.msra.mxu0 0
      %1395 = vmatpush.bf16.msra.mxu0 0
      %1396 = vmatpush.bf16.msra.mxu0 0
      %1397 = vmatpush.bf16.msra.mxu0 0
      %1398 = vmatpush.bf16.msra.mxu0 %v1389
      %1399 = vmatmul.bf16.gmra.mxu0 %v1296
      %v1400 = vpop.f32.mrf.mxu0
      %v1401 = vadd.f32 0.0, %v1400
      %v1402 = vpop.f32.mrf.mxu0
      %v1403 = vadd.f32 0.0, %v1402
      %1404 = vmatmul.bf16.gmra.mxu0 %v1299
      %v1405 = vpop.f32.mrf.mxu0
      %v1406 = vadd.f32 0.0, %v1405
      %v1407 = vpop.f32.mrf.mxu0
      %v1408 = vadd.f32 0.0, %v1407
      %1409 = vmatmul.bf16.gmra.mxu0 %v1302
      %v1410 = vpop.f32.mrf.mxu0
      %v1411 = vadd.f32 0.0, %v1410
      %v1412 = vpop.f32.mrf.mxu0
      %v1413 = vadd.f32 0.0, %v1412
      %1414 = vmatmul.bf16.gmra.mxu0 %v1305
      %v1415 = vpop.f32.mrf.mxu0
      %v1416 = vadd.f32 0.0, %v1415
      %v1417 = vpop.f32.mrf.mxu0
      %v1418 = vadd.f32 0.0, %v1417
      %1419 = vmatmul.bf16.gmra.mxu0 %v1308
      %v1420 = vpop.f32.mrf.mxu0
      %v1421 = vadd.f32 0.0, %v1420
      %v1422 = vpop.f32.mrf.mxu0
      %v1423 = vadd.f32 0.0, %v1422
      %1424 = vmatmul.bf16.gmra.mxu0 %v1311
      %v1425 = vpop.f32.mrf.mxu0
      %v1426 = vadd.f32 0.0, %v1425
      %v1427 = vpop.f32.mrf.mxu0
      %v1428 = vadd.f32 0.0, %v1427
      %1429 = vmatmul.bf16.gmra.mxu0 %v1314
      %v1430 = vpop.f32.mrf.mxu0
      %v1431 = vadd.f32 0.0, %v1430
      %v1432 = vpop.f32.mrf.mxu0
      %v1433 = vadd.f32 0.0, %v1432
      %1434 = vmatmul.bf16.gmra.mxu0 %v1317
      %v1435 = vpop.f32.mrf.mxu0
      %v1436 = vadd.f32 0.0, %v1435
      %v1437 = vpop.f32.mrf.mxu0
      %v1438 = vadd.f32 0.0, %v1437
      %1439 = vmatmul.bf16.gmra.mxu0 %v1320
      %v1440 = vpop.f32.mrf.mxu0
      %v1441 = vadd.f32 0.0, %v1440
      %v1442 = vpop.f32.mrf.mxu0
      %v1443 = vadd.f32 0.0, %v1442
      %1444 = vmatmul.bf16.gmra.mxu0 %v1323
      %v1445 = vpop.f32.mrf.mxu0
      %v1446 = vadd.f32 0.0, %v1445
      %v1447 = vpop.f32.mrf.mxu0
      %v1448 = vadd.f32 0.0, %v1447
      %1449 = vmatmul.bf16.gmra.mxu0 %v1326
      %v1450 = vpop.f32.mrf.mxu0
      %v1451 = vadd.f32 0.0, %v1450
      %v1452 = vpop.f32.mrf.mxu0
      %v1453 = vadd.f32 0.0, %v1452
      %1454 = vmatmul.bf16.gmra.mxu0 %v1329
      %v1455 = vpop.f32.mrf.mxu0
      %v1456 = vadd.f32 0.0, %v1455
      %v1457 = vpop.f32.mrf.mxu0
      %v1458 = vadd.f32 0.0, %v1457
      %1459 = vmatmul.bf16.gmra.mxu0 %v1332
      %v1460 = vpop.f32.mrf.mxu0
      %v1461 = vadd.f32 0.0, %v1460
      %v1462 = vpop.f32.mrf.mxu0
      %v1463 = vadd.f32 0.0, %v1462
      %1464 = vmatmul.bf16.gmra.mxu0 %v1335
      %v1465 = vpop.f32.mrf.mxu0
      %v1466 = vadd.f32 0.0, %v1465
      %v1467 = vpop.f32.mrf.mxu0
      %v1468 = vadd.f32 0.0, %v1467
      %1469 = vmatmul.bf16.gmra.mxu0 %v1338
      %v1470 = vpop.f32.mrf.mxu0
      %v1471 = vadd.f32 0.0, %v1470
      %v1472 = vpop.f32.mrf.mxu0
      %v1473 = vadd.f32 0.0, %v1472
      %1474 = vmatmul.bf16.gmra.mxu0 %v1341
      %v1475 = vpop.f32.mrf.mxu0
      %v1476 = vadd.f32 0.0, %v1475
      %v1477 = vpop.f32.mrf.mxu0
      %v1478 = vadd.f32 0.0, %v1477
      %1479 = vmatmul.bf16.gmra.mxu0 %v1344
      %v1480 = vpop.f32.mrf.mxu0
      %v1481 = vadd.f32 0.0, %v1480
      %v1482 = vpop.f32.mrf.mxu0
      %v1483 = vadd.f32 0.0, %v1482
      %1484 = vmatmul.bf16.gmra.mxu0 %v1347
      %v1485 = vpop.f32.mrf.mxu0
      %v1486 = vadd.f32 0.0, %v1485
      %v1487 = vpop.f32.mrf.mxu0
      %v1488 = vadd.f32 0.0, %v1487
      %1489 = vmatmul.bf16.gmra.mxu0 %v1350
      %v1490 = vpop.f32.mrf.mxu0
      %v1491 = vadd.f32 0.0, %v1490
      %v1492 = vpop.f32.mrf.mxu0
      %v1493 = vadd.f32 0.0, %v1492
      %1494 = vmatmul.bf16.gmra.mxu0 %v1353
      %v1495 = vpop.f32.mrf.mxu0
      %v1496 = vadd.f32 0.0, %v1495
      %v1497 = vpop.f32.mrf.mxu0
      %v1498 = vadd.f32 0.0, %v1497
      %1499 = vmatmul.bf16.gmra.mxu0 %v1356
      %v1500 = vpop.f32.mrf.mxu0
      %v1501 = vadd.f32 0.0, %v1500
      %v1502 = vpop.f32.mrf.mxu0
      %v1503 = vadd.f32 0.0, %v1502
      %1504 = vmatmul.bf16.gmra.mxu0 %v1359
      %v1505 = vpop.f32.mrf.mxu0
      %v1506 = vadd.f32 0.0, %v1505
      %v1507 = vpop.f32.mrf.mxu0
      %v1508 = vadd.f32 0.0, %v1507
      %1509 = vmatmul.bf16.gmra.mxu0 %v1362
      %v1510 = vpop.f32.mrf.mxu0
      %v1511 = vadd.f32 0.0, %v1510
      %v1512 = vpop.f32.mrf.mxu0
      %v1513 = vadd.f32 0.0, %v1512
      %1514 = vmatmul.bf16.gmra.mxu0 %v1365
      %v1515 = vpop.f32.mrf.mxu0
      %v1516 = vadd.f32 0.0, %v1515
      %v1517 = vpop.f32.mrf.mxu0
      %v1518 = vadd.f32 0.0, %v1517
      %1519 = vmatmul.bf16.gmra.mxu0 %v1368
      %v1520 = vpop.f32.mrf.mxu0
      %v1521 = vadd.f32 0.0, %v1520
      %v1522 = vpop.f32.mrf.mxu0
      %v1523 = vadd.f32 0.0, %v1522
      %1524 = vmatmul.bf16.gmra.mxu0 %v1371
      %v1525 = vpop.f32.mrf.mxu0
      %v1526 = vadd.f32 0.0, %v1525
      %v1527 = vpop.f32.mrf.mxu0
      %v1528 = vadd.f32 0.0, %v1527
      %1529 = vmatmul.bf16.gmra.mxu0 %v1374
      %v1530 = vpop.f32.mrf.mxu0
      %v1531 = vadd.f32 0.0, %v1530
      %v1532 = vpop.f32.mrf.mxu0
      %v1533 = vadd.f32 0.0, %v1532
      %1534 = vmatmul.bf16.gmra.mxu0 %v1377
      %v1535 = vpop.f32.mrf.mxu0
      %v1536 = vadd.f32 0.0, %v1535
      %v1537 = vpop.f32.mrf.mxu0
      %v1538 = vadd.f32 0.0, %v1537
      %1539 = vmatmul.bf16.gmra.mxu0 %v1380
      %v1540 = vpop.f32.mrf.mxu0
      %v1541 = vadd.f32 0.0, %v1540
      %v1542 = vpop.f32.mrf.mxu0
      %v1543 = vadd.f32 0.0, %v1542
      %1544 = vmatmul.bf16.gmra.mxu0 %v1383
      %v1545 = vpop.f32.mrf.mxu0
      %v1546 = vadd.f32 0.0, %v1545
      %v1547 = vpop.f32.mrf.mxu0
      %v1548 = vadd.f32 0.0, %v1547
      %1549 = vmatmul.bf16.gmra.mxu0 %v1386
      %v1550 = vpop.f32.mrf.mxu0
      %v1551 = vadd.f32 0.0, %v1550
      %v1552 = vpop.f32.mrf.mxu0
      %v1553 = vadd.f32 0.0, %v1552
      %1554 = vdwg.mxu0
      %v1555 = vadd.f32 %v1009, %v1401
      %v1556 = vadd.f32 %v1010, %v1403
      %v1557 = vadd.f32 %v1011, %v1406
      %v1558 = vadd.f32 %v1012, %v1408
      %v1559 = vadd.f32 %v1013, %v1411
      %v1560 = vadd.f32 %v1014, %v1413
      %v1561 = vadd.f32 %v1015, %v1416
      %v1562 = vadd.f32 %v1016, %v1418
      %v1563 = vadd.f32 %v1017, %v1421
      %v1564 = vadd.f32 %v1018, %v1423
      %v1565 = vadd.f32 %v1019, %v1426
      %v1566 = vadd.f32 %v1020, %v1428
      %v1567 = vadd.f32 %v1021, %v1431
      %v1568 = vadd.f32 %v1022, %v1433
      %v1569 = vadd.f32 %v1023, %v1436
      %v1570 = vadd.f32 %v1024, %v1438
      %v1571 = vadd.f32 %v1025, %v1441
      %v1572 = vadd.f32 %v1026, %v1443
      %v1573 = vadd.f32 %v1027, %v1446
      %v1574 = vadd.f32 %v1028, %v1448
      %v1575 = vadd.f32 %v1029, %v1451
      %v1576 = vadd.f32 %v1030, %v1453
      %v1577 = vadd.f32 %v1031, %v1456
      %v1578 = vadd.f32 %v1032, %v1458
      %v1579 = vadd.f32 %v1033, %v1461
      %v1580 = vadd.f32 %v1034, %v1463
      %v1581 = vadd.f32 %v1035, %v1466
      %v1582 = vadd.f32 %v1036, %v1468
      %v1583 = vadd.f32 %v1037, %v1471
      %v1584 = vadd.f32 %v1038, %v1473
      %v1585 = vadd.f32 %v1039, %v1476
      %v1586 = vadd.f32 %v1040, %v1478
      %v1587 = vadd.f32 %v1041, %v1481
      %v1588 = vadd.f32 %v1042, %v1483
      %v1589 = vadd.f32 %v1043, %v1486
      %v1590 = vadd.f32 %v1044, %v1488
      %v1591 = vadd.f32 %v1045, %v1491
      %v1592 = vadd.f32 %v1046, %v1493
      %v1593 = vadd.f32 %v1047, %v1496
      %v1594 = vadd.f32 %v1048, %v1498
      %v1595 = vadd.f32 %v1049, %v1501
      %v1596 = vadd.f32 %v1050, %v1503
      %v1597 = vadd.f32 %v1051, %v1506
      %v1598 = vadd.f32 %v1052, %v1508
      %v1599 = vadd.f32 %v1053, %v1511
      %v1600 = vadd.f32 %v1054, %v1513
      %v1601 = vadd.f32 %v1055, %v1516
      %v1602 = vadd.f32 %v1056, %v1518
      %v1603 = vadd.f32 %v1057, %v1521
      %v1604 = vadd.f32 %v1058, %v1523
      %v1605 = vadd.f32 %v1059, %v1526
      %v1606 = vadd.f32 %v1060, %v1528
      %v1607 = vadd.f32 %v1061, %v1531
      %v1608 = vadd.f32 %v1062, %v1533
      %v1609 = vadd.f32 %v1063, %v1536
      %v1610 = vadd.f32 %v1064, %v1538
      %v1611 = vadd.f32 %v1065, %v1541
      %v1612 = vadd.f32 %v1066, %v1543
      %v1613 = vadd.f32 %v1067, %v1546
      %v1614 = vadd.f32 %v1068, %v1548
      %v1615 = vadd.f32 %v1069, %v1551
      %v1616 = vadd.f32 %v1070, %v1553
      %1617 = vst [vmem:[#allocation2 + $0x10] sm:$0xff] %v1555
      %1618 = vst [vmem:[#allocation2 + $0x18] sm:$0xff] %v1556
      %1619 = vst [vmem:[#allocation2 + $0x20] sm:$0xff] %v1557
      %1620 = vst [vmem:[#allocation2 + $0x28] sm:$0xff] %v1558
      %1621 = vst [vmem:[#allocation2 + $0x30] sm:$0xff] %v1559
      %1622 = vst [vmem:[#allocation2 + $0x38] sm:$0xff] %v1560
      %1623 = vst [vmem:[#allocation2 + $0x40] sm:$0xff] %v1561
      %1624 = vst [vmem:[#allocation2 + $0x48] sm:$0xff] %v1562
      %1625 = vst [vmem:[#allocation2 + $0x50] sm:$0xff] %v1563
      %1626 = vst [vmem:[#allocation2 + $0x58] sm:$0xff] %v1564
      %1627 = vst [vmem:[#allocation2 + $0x60] sm:$0xff] %v1565
      %1628 = vst [vmem:[#allocation2 + $0x68] sm:$0xff] %v1566
      %1629 = vst [vmem:[#allocation2 + $0x70] sm:$0xff] %v1567
      %1630 = vst [vmem:[#allocation2 + $0x78] sm:$0xff] %v1568
      %1631 = vst [vmem:[#allocation2 + $0x80] sm:$0xff] %v1569
      %1632 = vst [vmem:[#allocation2 + $0x88] sm:$0xff] %v1570
      %1633 = vst [vmem:[#allocation2 + $0x90] sm:$0xff] %v1571
      %1634 = vst [vmem:[#allocation2 + $0x98] sm:$0xff] %v1572
      %1635 = vst [vmem:[#allocation2 + $0xa0] sm:$0xff] %v1573
      %1636 = vst [vmem:[#allocation2 + $0xa8] sm:$0xff] %v1574
      %1637 = vst [vmem:[#allocation2 + $0xb0] sm:$0xff] %v1575
      %1638 = vst [vmem:[#allocation2 + $0xb8] sm:$0xff] %v1576
      %1639 = vst [vmem:[#allocation2 + $0xc0] sm:$0xff] %v1577
      %1640 = vst [vmem:[#allocation2 + $0xc8] sm:$0xff] %v1578
      %1641 = vst [vmem:[#allocation2 + $0xd0] sm:$0xff] %v1579
      %1642 = vst [vmem:[#allocation2 + $0xd8] sm:$0xff] %v1580
      %1643 = vst [vmem:[#allocation2 + $0xe0] sm:$0xff] %v1581
      %1644 = vst [vmem:[#allocation2 + $0xe8] sm:$0xff] %v1582
      %1645 = vst [vmem:[#allocation2 + $0xf0] sm:$0xff] %v1583
      %1646 = vst [vmem:[#allocation2 + $0xf8] sm:$0xff] %v1584
      %1647 = vst [vmem:[#allocation2 + $0x100] sm:$0xff] %v1585
      %1648 = vst [vmem:[#allocation2 + $0x108] sm:$0xff] %v1586
      %1649 = vst [vmem:[#allocation2 + $0x110] sm:$0xff] %v1587
      %1650 = vst [vmem:[#allocation2 + $0x118] sm:$0xff] %v1588
      %1651 = vst [vmem:[#allocation2 + $0x120] sm:$0xff] %v1589
      %1652 = vst [vmem:[#allocation2 + $0x128] sm:$0xff] %v1590
      %1653 = vst [vmem:[#allocation2 + $0x130] sm:$0xff] %v1591
      %1654 = vst [vmem:[#allocation2 + $0x138] sm:$0xff] %v1592
      %1655 = vst [vmem:[#allocation2 + $0x140] sm:$0xff] %v1593
      %1656 = vst [vmem:[#allocation2 + $0x148] sm:$0xff] %v1594
      %1657 = vst [vmem:[#allocation2 + $0x150] sm:$0xff] %v1595
      %1658 = vst [vmem:[#allocation2 + $0x158] sm:$0xff] %v1596
      %1659 = vst [vmem:[#allocation2 + $0x160] sm:$0xff] %v1597
      %1660 = vst [vmem:[#allocation2 + $0x168] sm:$0xff] %v1598
      %1661 = vst [vmem:[#allocation2 + $0x170] sm:$0xff] %v1599
      %1662 = vst [vmem:[#allocation2 + $0x178] sm:$0xff] %v1600
      %1663 = vst [vmem:[#allocation2 + $0x180] sm:$0xff] %v1601
      %1664 = vst [vmem:[#allocation2 + $0x188] sm:$0xff] %v1602
      %1665 = vst [vmem:[#allocation2 + $0x190] sm:$0xff] %v1603
      %1666 = vst [vmem:[#allocation2 + $0x198] sm:$0xff] %v1604
      %1667 = vst [vmem:[#allocation2 + $0x1a0] sm:$0xff] %v1605
      %1668 = vst [vmem:[#allocation2 + $0x1a8] sm:$0xff] %v1606
      %1669 = vst [vmem:[#allocation2 + $0x1b0] sm:$0xff] %v1607
      %1670 = vst [vmem:[#allocation2 + $0x1b8] sm:$0xff] %v1608
      %1671 = vst [vmem:[#allocation2 + $0x1c0] sm:$0xff] %v1609
      %1672 = vst [vmem:[#allocation2 + $0x1c8] sm:$0xff] %v1610
      %1673 = vst [vmem:[#allocation2 + $0x1d0] sm:$0xff] %v1611
      %1674 = vst [vmem:[#allocation2 + $0x1d8] sm:$0xff] %v1612
      %1675 = vst [vmem:[#allocation2 + $0x1e0] sm:$0xff] %v1613
      %1676 = vst [vmem:[#allocation2 + $0x1e8] sm:$0xff] %v1614
      %1677 = vst [vmem:[#allocation2 + $0x1f0] sm:$0xff] %v1615
      %1678 = vst [vmem:[#allocation2 + $0x1f8] sm:$0xff] %v1616
      %v1679 = vld [vmem:[#allocation2] sm:$0xff]
      %v1680 = vld [vmem:[#allocation2 + $0x8] sm:$0xff]
      %v1681 = vld [vmem:[#allocation2 + $0x10] sm:$0xff]
      %v1682 = vld [vmem:[#allocation2 + $0x18] sm:$0xff]
      %v1683 = vld [vmem:[#allocation2 + $0x20] sm:$0xff]
      %v1684 = vld [vmem:[#allocation2 + $0x28] sm:$0xff]
      %v1685 = vld [vmem:[#allocation2 + $0x30] sm:$0xff]
      %v1686 = vld [vmem:[#allocation2 + $0x38] sm:$0xff]
      %v1687 = vld [vmem:[#allocation2 + $0x40] sm:$0xff]
      %v1688 = vld [vmem:[#allocation2 + $0x48] sm:$0xff]
      %v1689 = vld [vmem:[#allocation2 + $0x50] sm:$0xff]
      %v1690 = vld [vmem:[#allocation2 + $0x58] sm:$0xff]
      %v1691 = vld [vmem:[#allocation2 + $0x60] sm:$0xff]
      %v1692 = vld [vmem:[#allocation2 + $0x68] sm:$0xff]
      %v1693 = vld [vmem:[#allocation2 + $0x70] sm:$0xff]
      %v1694 = vld [vmem:[#allocation2 + $0x78] sm:$0xff]
      %v1695 = vld [vmem:[#allocation2 + $0x80] sm:$0xff]
      %v1696 = vld [vmem:[#allocation2 + $0x88] sm:$0xff]
      %v1697 = vld [vmem:[#allocation2 + $0x90] sm:$0xff]
      %v1698 = vld [vmem:[#allocation2 + $0x98] sm:$0xff]
      %v1699 = vld [vmem:[#allocation2 + $0xa0] sm:$0xff]
      %v1700 = vld [vmem:[#allocation2 + $0xa8] sm:$0xff]
      %v1701 = vld [vmem:[#allocation2 + $0xb0] sm:$0xff]
      %v1702 = vld [vmem:[#allocation2 + $0xb8] sm:$0xff]
      %v1703 = vld [vmem:[#allocation2 + $0xc0] sm:$0xff]
      %v1704 = vld [vmem:[#allocation2 + $0xc8] sm:$0xff]
      %v1705 = vld [vmem:[#allocation2 + $0xd0] sm:$0xff]
      %v1706 = vld [vmem:[#allocation2 + $0xd8] sm:$0xff]
      %v1707 = vld [vmem:[#allocation2 + $0xe0] sm:$0xff]
      %v1708 = vld [vmem:[#allocation2 + $0xe8] sm:$0xff]
      %v1709 = vld [vmem:[#allocation2 + $0xf0] sm:$0xff]
      %v1710 = vld [vmem:[#allocation2 + $0xf8] sm:$0xff]
      %v1711 = vld [vmem:[#allocation2 + $0x100] sm:$0xff]
      %v1712 = vld [vmem:[#allocation2 + $0x108] sm:$0xff]
      %v1713 = vld [vmem:[#allocation2 + $0x110] sm:$0xff]
      %v1714 = vld [vmem:[#allocation2 + $0x118] sm:$0xff]
      %v1715 = vld [vmem:[#allocation2 + $0x120] sm:$0xff]
      %v1716 = vld [vmem:[#allocation2 + $0x128] sm:$0xff]
      %v1717 = vld [vmem:[#allocation2 + $0x130] sm:$0xff]
      %v1718 = vld [vmem:[#allocation2 + $0x138] sm:$0xff]
      %v1719 = vld [vmem:[#allocation2 + $0x140] sm:$0xff]
      %v1720 = vld [vmem:[#allocation2 + $0x148] sm:$0xff]
      %v1721 = vld [vmem:[#allocation2 + $0x150] sm:$0xff]
      %v1722 = vld [vmem:[#allocation2 + $0x158] sm:$0xff]
      %v1723 = vld [vmem:[#allocation2 + $0x160] sm:$0xff]
      %v1724 = vld [vmem:[#allocation2 + $0x168] sm:$0xff]
      %v1725 = vld [vmem:[#allocation2 + $0x170] sm:$0xff]
      %v1726 = vld [vmem:[#allocation2 + $0x178] sm:$0xff]
      %v1727 = vld [vmem:[#allocation2 + $0x180] sm:$0xff]
      %v1728 = vld [vmem:[#allocation2 + $0x188] sm:$0xff]
      %v1729 = vld [vmem:[#allocation2 + $0x190] sm:$0xff]
      %v1730 = vld [vmem:[#allocation2 + $0x198] sm:$0xff]
      %v1731 = vld [vmem:[#allocation2 + $0x1a0] sm:$0xff]
      %v1732 = vld [vmem:[#allocation2 + $0x1a8] sm:$0xff]
      %v1733 = vld [vmem:[#allocation2 + $0x1b0] sm:$0xff]
      %v1734 = vld [vmem:[#allocation2 + $0x1b8] sm:$0xff]
      %v1735 = vld [vmem:[#allocation2 + $0x1c0] sm:$0xff]
      %v1736 = vld [vmem:[#allocation2 + $0x1c8] sm:$0xff]
      %v1737 = vld [vmem:[#allocation2 + $0x1d0] sm:$0xff]
      %v1738 = vld [vmem:[#allocation2 + $0x1d8] sm:$0xff]
      %v1739 = vld [vmem:[#allocation2 + $0x1e0] sm:$0xff]
      %v1740 = vld [vmem:[#allocation2 + $0x1e8] sm:$0xff]
      %v1741 = vld [vmem:[%s373 + $0x8] sm:$0xf]
      %v1742 = vld [vmem:[%s373 + $0xc] sm:$0xf]
      %v1743 = vld [vmem:[%s373 + $0x10] sm:$0xf]
      %v1744 = vld [vmem:[%s373 + $0x14] sm:$0xf]
      %v1745 = vld [vmem:[%s373 + $0x18] sm:$0xf]
      %v1746 = vld [vmem:[%s373 + $0x1c] sm:$0xf]
      %v1747 = vld [vmem:[%s373 + $0x20] sm:$0xf]
      %v1748 = vld [vmem:[%s373 + $0x24] sm:$0xf]
      %v1749 = vld [vmem:[%s373 + $0x28] sm:$0xf]
      %v1750 = vld [vmem:[%s373 + $0x2c] sm:$0xf]
      %v1751 = vld [vmem:[%s373 + $0x30] sm:$0xf]
      %v1752 = vld [vmem:[%s373 + $0x34] sm:$0xf]
      %v1753 = vld [vmem:[%s373 + $0x38] sm:$0xf]
      %v1754 = vld [vmem:[%s373 + $0x3c] sm:$0xf]
      %v1755 = vld [vmem:[%s373 + $0x40] sm:$0xf]
      %v1756 = vld [vmem:[%s373 + $0x44] sm:$0xf]
      %v1757 = vld [vmem:[%s373 + $0x48] sm:$0xf]
      %v1758 = vld [vmem:[%s373 + $0x4c] sm:$0xf]
      %v1759 = vld [vmem:[%s373 + $0x50] sm:$0xf]
      %v1760 = vld [vmem:[%s373 + $0x54] sm:$0xf]
      %v1761 = vld [vmem:[%s373 + $0x58] sm:$0xf]
      %v1762 = vld [vmem:[%s373 + $0x5c] sm:$0xf]
      %v1763 = vld [vmem:[%s373 + $0x60] sm:$0xf]
      %v1764 = vld [vmem:[%s373 + $0x64] sm:$0xf]
      %v1765 = vld [vmem:[%s373 + $0x68] sm:$0xf]
      %v1766 = vld [vmem:[%s373 + $0x6c] sm:$0xf]
      %v1767 = vld [vmem:[%s373 + $0x70] sm:$0xf]
      %v1768 = vld [vmem:[%s373 + $0x74] sm:$0xf]
      %v1769 = vld [vmem:[%s373 + $0x78] sm:$0xf]
      %v1770 = vld [vmem:[%s373 + $0x7c] sm:$0xf]
      %v1771 = vld [vmem:[%s373 + $0x80] sm:$0xf]
      %v1772 = vld [vmem:[%s373 + $0x84] sm:$0xf]
      %v1773 = vld [vmem:[%s373 + $0x88] sm:$0xf]
      %v1774 = vld [vmem:[%s373 + $0x8c] sm:$0xf]
      %v1775 = vld [vmem:[%s373 + $0x90] sm:$0xf]
      %v1776 = vld [vmem:[%s373 + $0x94] sm:$0xf]
      %v1777 = vld [vmem:[%s373 + $0x98] sm:$0xf]
      %v1778 = vld [vmem:[%s373 + $0x9c] sm:$0xf]
      %v1779 = vld [vmem:[%s373 + $0xa0] sm:$0xf]
      %v1780 = vld [vmem:[%s373 + $0xa4] sm:$0xf]
      %v1781 = vld [vmem:[%s373 + $0xa8] sm:$0xf]
      %v1782 = vld [vmem:[%s373 + $0xac] sm:$0xf]
      %v1783 = vld [vmem:[%s373 + $0xb0] sm:$0xf]
      %v1784 = vld [vmem:[%s373 + $0xb4] sm:$0xf]
      %v1785 = vld [vmem:[%s373 + $0xb8] sm:$0xf]
      %v1786 = vld [vmem:[%s373 + $0xbc] sm:$0xf]
      %v1787 = vld [vmem:[%s373 + $0xc0] sm:$0xf]
      %v1788 = vld [vmem:[%s373 + $0xc4] sm:$0xf]
      %v1789 = vld [vmem:[%s373 + $0xc8] sm:$0xf]
      %v1790 = vld [vmem:[%s373 + $0xcc] sm:$0xf]
      %v1791 = vld [vmem:[%s373 + $0xd0] sm:$0xf]
      %v1792 = vld [vmem:[%s373 + $0xd4] sm:$0xf]
      %v1793 = vld [vmem:[%s373 + $0xd8] sm:$0xf]
      %v1794 = vld [vmem:[%s373 + $0xdc] sm:$0xf]
      %v1795 = vld [vmem:[%s373 + $0xe0] sm:$0xf]
      %v1796 = vld [vmem:[%s373 + $0xe4] sm:$0xf]
      %v1797 = vld [vmem:[%s373 + $0xe8] sm:$0xf]
      %v1798 = vld [vmem:[%s373 + $0xec] sm:$0xf]
      %v1799 = vld [vmem:[%s373 + $0xf0] sm:$0xf]
      %v1800 = vld [vmem:[%s373 + $0xf4] sm:$0xf]
      %v1801 = vld [vmem:[%s373 + $0xf8] sm:$0xf]
      %v1802 = vld [vmem:[%s373 + $0xfc] sm:$0xf]
      %s1803 = scalar_lea.vmem %s3, 16
      %v1804 = vld [vmem:[%s1803] sm:$0xf]
      %v1805 = vld [vmem:[%s1803 + $0x4] sm:$0x3]
      %v1868 = vunpack.c.l.b16 %v1741
      %v1869 = vunpack.c.l.b16 %v1742
      %v1870 = vunpack.c.l.b16 %v1743
      %v1871 = vunpack.c.l.b16 %v1744
      %v1872 = vunpack.c.l.b16 %v1745
      %v1873 = vunpack.c.l.b16 %v1746
      %v1874 = vunpack.c.l.b16 %v1747
      %v1875 = vunpack.c.l.b16 %v1748
      %v1876 = vunpack.c.l.b16 %v1749
      %v1877 = vunpack.c.l.b16 %v1750
      %v1878 = vunpack.c.l.b16 %v1751
      %v1879 = vunpack.c.l.b16 %v1752
      %v1880 = vunpack.c.l.b16 %v1753
      %v1881 = vunpack.c.l.b16 %v1754
      %v1882 = vunpack.c.l.b16 %v1755
      %v1883 = vunpack.c.l.b16 %v1756
      %v1884 = vunpack.c.l.b16 %v1757
      %v1885 = vunpack.c.l.b16 %v1758
      %v1886 = vunpack.c.l.b16 %v1759
      %v1887 = vunpack.c.l.b16 %v1760
      %v1888 = vunpack.c.l.b16 %v1761
      %v1889 = vunpack.c.l.b16 %v1762
      %v1890 = vunpack.c.l.b16 %v1763
      %v1891 = vunpack.c.l.b16 %v1764
      %v1892 = vunpack.c.l.b16 %v1765
      %v1893 = vunpack.c.l.b16 %v1766
      %v1894 = vunpack.c.l.b16 %v1767
      %v1895 = vunpack.c.l.b16 %v1768
      %v1896 = vunpack.c.l.b16 %v1769
      %v1897 = vunpack.c.l.b16 %v1770
      %v1898 = vunpack.c.l.b16 %v1771
      %v1899 = vunpack.c.l.b16 %v1772
      %v1900 = vunpack.c.l.b16 %v1773
      %v1901 = vunpack.c.l.b16 %v1774
      %v1902 = vunpack.c.l.b16 %v1775
      %v1903 = vunpack.c.l.b16 %v1776
      %v1904 = vunpack.c.l.b16 %v1777
      %v1905 = vunpack.c.l.b16 %v1778
      %v1906 = vunpack.c.l.b16 %v1779
      %v1907 = vunpack.c.l.b16 %v1780
      %v1908 = vunpack.c.l.b16 %v1781
      %v1909 = vunpack.c.l.b16 %v1782
      %v1910 = vunpack.c.l.b16 %v1783
      %v1911 = vunpack.c.l.b16 %v1784
      %v1912 = vunpack.c.l.b16 %v1785
      %v1913 = vunpack.c.l.b16 %v1786
      %v1914 = vunpack.c.l.b16 %v1787
      %v1915 = vunpack.c.l.b16 %v1788
      %v1916 = vunpack.c.l.b16 %v1789
      %v1917 = vunpack.c.l.b16 %v1790
      %v1918 = vunpack.c.l.b16 %v1791
      %v1919 = vunpack.c.l.b16 %v1792
      %v1920 = vunpack.c.l.b16 %v1793
      %v1921 = vunpack.c.l.b16 %v1794
      %v1922 = vunpack.c.l.b16 %v1795
      %v1923 = vunpack.c.l.b16 %v1796
      %v1924 = vunpack.c.l.b16 %v1797
      %v1925 = vunpack.c.l.b16 %v1798
      %v1926 = vunpack.c.l.b16 %v1799
      %v1927 = vunpack.c.l.b16 %v1800
      %v1928 = vunpack.c.l.b16 %v1801
      %v1929 = vunpack.c.l.b16 %v1802
      %v1930 = vpack.c.b16 %v1869, %v1868
      %v1931 = vpack.c.b16 %v1871, %v1870
      %v1932 = vpack.c.b16 %v1873, %v1872
      %v1933 = vpack.c.b16 %v1875, %v1874
      %v1934 = vpack.c.b16 %v1877, %v1876
      %v1935 = vpack.c.b16 %v1879, %v1878
      %v1936 = vpack.c.b16 %v1881, %v1880
      %v1937 = vpack.c.b16 %v1883, %v1882
      %v1938 = vpack.c.b16 %v1885, %v1884
      %v1939 = vpack.c.b16 %v1887, %v1886
      %v1940 = vpack.c.b16 %v1889, %v1888
      %v1941 = vpack.c.b16 %v1891, %v1890
      %v1942 = vpack.c.b16 %v1893, %v1892
      %v1943 = vpack.c.b16 %v1895, %v1894
      %v1944 = vpack.c.b16 %v1897, %v1896
      %v1945 = vpack.c.b16 %v1899, %v1898
      %v1946 = vpack.c.b16 %v1901, %v1900
      %v1947 = vpack.c.b16 %v1903, %v1902
      %v1948 = vpack.c.b16 %v1905, %v1904
      %v1949 = vpack.c.b16 %v1907, %v1906
      %v1950 = vpack.c.b16 %v1909, %v1908
      %v1951 = vpack.c.b16 %v1911, %v1910
      %v1952 = vpack.c.b16 %v1913, %v1912
      %v1953 = vpack.c.b16 %v1915, %v1914
      %v1954 = vpack.c.b16 %v1917, %v1916
      %v1955 = vpack.c.b16 %v1919, %v1918
      %v1956 = vpack.c.b16 %v1921, %v1920
      %v1957 = vpack.c.b16 %v1923, %v1922
      %v1958 = vpack.c.b16 %v1925, %v1924
      %v1959 = vpack.c.b16 %v1927, %v1926
      %v1960 = vpack.c.b16 %v1929, %v1928
      %v1963 = vunpack.c.l.b16 %v1804
      %v1964 = vunpack.c.l.b16 %v1805
      %v1965 = vpack.c.b16 %v1964, %v1963
      %v1967 = vsel %vm635, %v1930, 0
      %v1970 = vsel %vm635, %v1931, 0
      %v1973 = vsel %vm635, %v1932, 0
      %v1976 = vsel %vm635, %v1933, 0
      %v1979 = vsel %vm635, %v1934, 0
      %v1982 = vsel %vm635, %v1935, 0
      %v1985 = vsel %vm635, %v1936, 0
      %v1988 = vsel %vm635, %v1937, 0
      %v1991 = vsel %vm635, %v1938, 0
      %v1994 = vsel %vm635, %v1939, 0
      %v1997 = vsel %vm635, %v1940, 0
      %v2000 = vsel %vm635, %v1941, 0
      %v2003 = vsel %vm635, %v1942, 0
      %v2006 = vsel %vm635, %v1943, 0
      %v2009 = vsel %vm635, %v1944, 0
      %v2012 = vsel %vm635, %v1945, 0
      %v2015 = vsel %vm635, %v1946, 0
      %v2018 = vsel %vm635, %v1947, 0
      %v2021 = vsel %vm635, %v1948, 0
      %v2024 = vsel %vm635, %v1949, 0
      %v2027 = vsel %vm635, %v1950, 0
      %v2030 = vsel %vm635, %v1951, 0
      %v2033 = vsel %vm635, %v1952, 0
      %v2036 = vsel %vm635, %v1953, 0
      %v2039 = vsel %vm635, %v1954, 0
      %v2042 = vsel %vm635, %v1955, 0
      %v2045 = vsel %vm635, %v1956, 0
      %v2048 = vsel %vm635, %v1957, 0
      %v2051 = vsel %vm635, %v1958, 0
      %v2054 = vsel %vm635, %v1959, 0
      %v2057 = vsel %vm635, %v1960, 0
      %v2060 = vsel %vm732, %v1965, 0
      %2062 = vmatpush.bf16.msra.mxu0 0
      %2063 = vmatpush.bf16.msra.mxu0 0
      %2064 = vmatpush.bf16.msra.mxu0 0
      %2065 = vmatpush.bf16.msra.mxu0 0
      %2066 = vmatpush.bf16.msra.mxu0 0
      %2067 = vmatpush.bf16.msra.mxu0 0
      %2068 = vmatpush.bf16.msra.mxu0 0
      %2069 = vmatpush.bf16.msra.mxu0 %v2060
      %2070 = vmatmul.bf16.gmra.mxu0 %v1967
      %v2071 = vpop.f32.mrf.mxu0
      %v2072 = vadd.f32 0.0, %v2071
      %v2073 = vpop.f32.mrf.mxu0
      %v2074 = vadd.f32 0.0, %v2073
      %2075 = vmatmul.bf16.gmra.mxu0 %v1970
      %v2076 = vpop.f32.mrf.mxu0
      %v2077 = vadd.f32 0.0, %v2076
      %v2078 = vpop.f32.mrf.mxu0
      %v2079 = vadd.f32 0.0, %v2078
      %2080 = vmatmul.bf16.gmra.mxu0 %v1973
      %v2081 = vpop.f32.mrf.mxu0
      %v2082 = vadd.f32 0.0, %v2081
      %v2083 = vpop.f32.mrf.mxu0
      %v2084 = vadd.f32 0.0, %v2083
      %2085 = vmatmul.bf16.gmra.mxu0 %v1976
      %v2086 = vpop.f32.mrf.mxu0
      %v2087 = vadd.f32 0.0, %v2086
      %v2088 = vpop.f32.mrf.mxu0
      %v2089 = vadd.f32 0.0, %v2088
      %2090 = vmatmul.bf16.gmra.mxu0 %v1979
      %v2091 = vpop.f32.mrf.mxu0
      %v2092 = vadd.f32 0.0, %v2091
      %v2093 = vpop.f32.mrf.mxu0
      %v2094 = vadd.f32 0.0, %v2093
      %2095 = vmatmul.bf16.gmra.mxu0 %v1982
      %v2096 = vpop.f32.mrf.mxu0
      %v2097 = vadd.f32 0.0, %v2096
      %v2098 = vpop.f32.mrf.mxu0
      %v2099 = vadd.f32 0.0, %v2098
      %2100 = vmatmul.bf16.gmra.mxu0 %v1985
      %v2101 = vpop.f32.mrf.mxu0
      %v2102 = vadd.f32 0.0, %v2101
      %v2103 = vpop.f32.mrf.mxu0
      %v2104 = vadd.f32 0.0, %v2103
      %2105 = vmatmul.bf16.gmra.mxu0 %v1988
      %v2106 = vpop.f32.mrf.mxu0
      %v2107 = vadd.f32 0.0, %v2106
      %v2108 = vpop.f32.mrf.mxu0
      %v2109 = vadd.f32 0.0, %v2108
      %2110 = vmatmul.bf16.gmra.mxu0 %v1991
      %v2111 = vpop.f32.mrf.mxu0
      %v2112 = vadd.f32 0.0, %v2111
      %v2113 = vpop.f32.mrf.mxu0
      %v2114 = vadd.f32 0.0, %v2113
      %2115 = vmatmul.bf16.gmra.mxu0 %v1994
      %v2116 = vpop.f32.mrf.mxu0
      %v2117 = vadd.f32 0.0, %v2116
      %v2118 = vpop.f32.mrf.mxu0
      %v2119 = vadd.f32 0.0, %v2118
      %2120 = vmatmul.bf16.gmra.mxu0 %v1997
      %v2121 = vpop.f32.mrf.mxu0
      %v2122 = vadd.f32 0.0, %v2121
      %v2123 = vpop.f32.mrf.mxu0
      %v2124 = vadd.f32 0.0, %v2123
      %2125 = vmatmul.bf16.gmra.mxu0 %v2000
      %v2126 = vpop.f32.mrf.mxu0
      %v2127 = vadd.f32 0.0, %v2126
      %v2128 = vpop.f32.mrf.mxu0
      %v2129 = vadd.f32 0.0, %v2128
      %2130 = vmatmul.bf16.gmra.mxu0 %v2003
      %v2131 = vpop.f32.mrf.mxu0
      %v2132 = vadd.f32 0.0, %v2131
      %v2133 = vpop.f32.mrf.mxu0
      %v2134 = vadd.f32 0.0, %v2133
      %2135 = vmatmul.bf16.gmra.mxu0 %v2006
      %v2136 = vpop.f32.mrf.mxu0
      %v2137 = vadd.f32 0.0, %v2136
      %v2138 = vpop.f32.mrf.mxu0
      %v2139 = vadd.f32 0.0, %v2138
      %2140 = vmatmul.bf16.gmra.mxu0 %v2009
      %v2141 = vpop.f32.mrf.mxu0
      %v2142 = vadd.f32 0.0, %v2141
      %v2143 = vpop.f32.mrf.mxu0
      %v2144 = vadd.f32 0.0, %v2143
      %2145 = vmatmul.bf16.gmra.mxu0 %v2012
      %v2146 = vpop.f32.mrf.mxu0
      %v2147 = vadd.f32 0.0, %v2146
      %v2148 = vpop.f32.mrf.mxu0
      %v2149 = vadd.f32 0.0, %v2148
      %2150 = vmatmul.bf16.gmra.mxu0 %v2015
      %v2151 = vpop.f32.mrf.mxu0
      %v2152 = vadd.f32 0.0, %v2151
      %v2153 = vpop.f32.mrf.mxu0
      %v2154 = vadd.f32 0.0, %v2153
      %2155 = vmatmul.bf16.gmra.mxu0 %v2018
      %v2156 = vpop.f32.mrf.mxu0
      %v2157 = vadd.f32 0.0, %v2156
      %v2158 = vpop.f32.mrf.mxu0
      %v2159 = vadd.f32 0.0, %v2158
      %2160 = vmatmul.bf16.gmra.mxu0 %v2021
      %v2161 = vpop.f32.mrf.mxu0
      %v2162 = vadd.f32 0.0, %v2161
      %v2163 = vpop.f32.mrf.mxu0
      %v2164 = vadd.f32 0.0, %v2163
      %2165 = vmatmul.bf16.gmra.mxu0 %v2024
      %v2166 = vpop.f32.mrf.mxu0
      %v2167 = vadd.f32 0.0, %v2166
      %v2168 = vpop.f32.mrf.mxu0
      %v2169 = vadd.f32 0.0, %v2168
      %2170 = vmatmul.bf16.gmra.mxu0 %v2027
      %v2171 = vpop.f32.mrf.mxu0
      %v2172 = vadd.f32 0.0, %v2171
      %v2173 = vpop.f32.mrf.mxu0
      %v2174 = vadd.f32 0.0, %v2173
      %2175 = vmatmul.bf16.gmra.mxu0 %v2030
      %v2176 = vpop.f32.mrf.mxu0
      %v2177 = vadd.f32 0.0, %v2176
      %v2178 = vpop.f32.mrf.mxu0
      %v2179 = vadd.f32 0.0, %v2178
      %2180 = vmatmul.bf16.gmra.mxu0 %v2033
      %v2181 = vpop.f32.mrf.mxu0
      %v2182 = vadd.f32 0.0, %v2181
      %v2183 = vpop.f32.mrf.mxu0
      %v2184 = vadd.f32 0.0, %v2183
      %2185 = vmatmul.bf16.gmra.mxu0 %v2036
      %v2186 = vpop.f32.mrf.mxu0
      %v2187 = vadd.f32 0.0, %v2186
      %v2188 = vpop.f32.mrf.mxu0
      %v2189 = vadd.f32 0.0, %v2188
      %2190 = vmatmul.bf16.gmra.mxu0 %v2039
      %v2191 = vpop.f32.mrf.mxu0
      %v2192 = vadd.f32 0.0, %v2191
      %v2193 = vpop.f32.mrf.mxu0
      %v2194 = vadd.f32 0.0, %v2193
      %2195 = vmatmul.bf16.gmra.mxu0 %v2042
      %v2196 = vpop.f32.mrf.mxu0
      %v2197 = vadd.f32 0.0, %v2196
      %v2198 = vpop.f32.mrf.mxu0
      %v2199 = vadd.f32 0.0, %v2198
      %2200 = vmatmul.bf16.gmra.mxu0 %v2045
      %v2201 = vpop.f32.mrf.mxu0
      %v2202 = vadd.f32 0.0, %v2201
      %v2203 = vpop.f32.mrf.mxu0
      %v2204 = vadd.f32 0.0, %v2203
      %2205 = vmatmul.bf16.gmra.mxu0 %v2048
      %v2206 = vpop.f32.mrf.mxu0
      %v2207 = vadd.f32 0.0, %v2206
      %v2208 = vpop.f32.mrf.mxu0
      %v2209 = vadd.f32 0.0, %v2208
      %2210 = vmatmul.bf16.gmra.mxu0 %v2051
      %v2211 = vpop.f32.mrf.mxu0
      %v2212 = vadd.f32 0.0, %v2211
      %v2213 = vpop.f32.mrf.mxu0
      %v2214 = vadd.f32 0.0, %v2213
      %2215 = vmatmul.bf16.gmra.mxu0 %v2054
      %v2216 = vpop.f32.mrf.mxu0
      %v2217 = vadd.f32 0.0, %v2216
      %v2218 = vpop.f32.mrf.mxu0
      %v2219 = vadd.f32 0.0, %v2218
      %2220 = vmatmul.bf16.gmra.mxu0 %v2057
      %v2221 = vpop.f32.mrf.mxu0
      %v2222 = vadd.f32 0.0, %v2221
      %v2223 = vpop.f32.mrf.mxu0
      %v2224 = vadd.f32 0.0, %v2223
      %2225 = vdwg.mxu0
      %v2226 = vadd.f32 %v1679, %v2072
      %v2227 = vadd.f32 %v1680, %v2074
      %v2228 = vadd.f32 %v1681, %v2077
      %v2229 = vadd.f32 %v1682, %v2079
      %v2230 = vadd.f32 %v1683, %v2082
      %v2231 = vadd.f32 %v1684, %v2084
      %v2232 = vadd.f32 %v1685, %v2087
      %v2233 = vadd.f32 %v1686, %v2089
      %v2234 = vadd.f32 %v1687, %v2092
      %v2235 = vadd.f32 %v1688, %v2094
      %v2236 = vadd.f32 %v1689, %v2097
      %v2237 = vadd.f32 %v1690, %v2099
      %v2238 = vadd.f32 %v1691, %v2102
      %v2239 = vadd.f32 %v1692, %v2104
      %v2240 = vadd.f32 %v1693, %v2107
      %v2241 = vadd.f32 %v1694, %v2109
      %v2242 = vadd.f32 %v1695, %v2112
      %v2243 = vadd.f32 %v1696, %v2114
      %v2244 = vadd.f32 %v1697, %v2117
      %v2245 = vadd.f32 %v1698, %v2119
      %v2246 = vadd.f32 %v1699, %v2122
      %v2247 = vadd.f32 %v1700, %v2124
      %v2248 = vadd.f32 %v1701, %v2127
      %v2249 = vadd.f32 %v1702, %v2129
      %v2250 = vadd.f32 %v1703, %v2132
      %v2251 = vadd.f32 %v1704, %v2134
      %v2252 = vadd.f32 %v1705, %v2137
      %v2253 = vadd.f32 %v1706, %v2139
      %v2254 = vadd.f32 %v1707, %v2142
      %v2255 = vadd.f32 %v1708, %v2144
      %v2256 = vadd.f32 %v1709, %v2147
      %v2257 = vadd.f32 %v1710, %v2149
      %v2258 = vadd.f32 %v1711, %v2152
      %v2259 = vadd.f32 %v1712, %v2154
      %v2260 = vadd.f32 %v1713, %v2157
      %v2261 = vadd.f32 %v1714, %v2159
      %v2262 = vadd.f32 %v1715, %v2162
      %v2263 = vadd.f32 %v1716, %v2164
      %v2264 = vadd.f32 %v1717, %v2167
      %v2265 = vadd.f32 %v1718, %v2169
      %v2266 = vadd.f32 %v1719, %v2172
      %v2267 = vadd.f32 %v1720, %v2174
      %v2268 = vadd.f32 %v1721, %v2177
      %v2269 = vadd.f32 %v1722, %v2179
      %v2270 = vadd.f32 %v1723, %v2182
      %v2271 = vadd.f32 %v1724, %v2184
      %v2272 = vadd.f32 %v1725, %v2187
      %v2273 = vadd.f32 %v1726, %v2189
      %v2274 = vadd.f32 %v1727, %v2192
      %v2275 = vadd.f32 %v1728, %v2194
      %v2276 = vadd.f32 %v1729, %v2197
      %v2277 = vadd.f32 %v1730, %v2199
      %v2278 = vadd.f32 %v1731, %v2202
      %v2279 = vadd.f32 %v1732, %v2204
      %v2280 = vadd.f32 %v1733, %v2207
      %v2281 = vadd.f32 %v1734, %v2209
      %v2282 = vadd.f32 %v1735, %v2212
      %v2283 = vadd.f32 %v1736, %v2214
      %v2284 = vadd.f32 %v1737, %v2217
      %v2285 = vadd.f32 %v1738, %v2219
      %v2286 = vadd.f32 %v1739, %v2222
      %v2287 = vadd.f32 %v1740, %v2224
      %2288 = vst [vmem:[#allocation2] sm:$0xff] %v2226
      %2289 = vst [vmem:[#allocation2 + $0x8] sm:$0xff] %v2227
      %2290 = vst [vmem:[#allocation2 + $0x10] sm:$0xff] %v2228
      %2291 = vst [vmem:[#allocation2 + $0x18] sm:$0xff] %v2229
      %2292 = vst [vmem:[#allocation2 + $0x20] sm:$0xff] %v2230
      %2293 = vst [vmem:[#allocation2 + $0x28] sm:$0xff] %v2231
      %2294 = vst [vmem:[#allocation2 + $0x30] sm:$0xff] %v2232
      %2295 = vst [vmem:[#allocation2 + $0x38] sm:$0xff] %v2233
      %2296 = vst [vmem:[#allocation2 + $0x40] sm:$0xff] %v2234
      %2297 = vst [vmem:[#allocation2 + $0x48] sm:$0xff] %v2235
      %2298 = vst [vmem:[#allocation2 + $0x50] sm:$0xff] %v2236
      %2299 = vst [vmem:[#allocation2 + $0x58] sm:$0xff] %v2237
      %2300 = vst [vmem:[#allocation2 + $0x60] sm:$0xff] %v2238
      %2301 = vst [vmem:[#allocation2 + $0x68] sm:$0xff] %v2239
      %2302 = vst [vmem:[#allocation2 + $0x70] sm:$0xff] %v2240
      %2303 = vst [vmem:[#allocation2 + $0x78] sm:$0xff] %v2241
      %2304 = vst [vmem:[#allocation2 + $0x80] sm:$0xff] %v2242
      %2305 = vst [vmem:[#allocation2 + $0x88] sm:$0xff] %v2243
      %2306 = vst [vmem:[#allocation2 + $0x90] sm:$0xff] %v2244
      %2307 = vst [vmem:[#allocation2 + $0x98] sm:$0xff] %v2245
      %2308 = vst [vmem:[#allocation2 + $0xa0] sm:$0xff] %v2246
      %2309 = vst [vmem:[#allocation2 + $0xa8] sm:$0xff] %v2247
      %2310 = vst [vmem:[#allocation2 + $0xb0] sm:$0xff] %v2248
      %2311 = vst [vmem:[#allocation2 + $0xb8] sm:$0xff] %v2249
      %2312 = vst [vmem:[#allocation2 + $0xc0] sm:$0xff] %v2250
      %2313 = vst [vmem:[#allocation2 + $0xc8] sm:$0xff] %v2251
      %2314 = vst [vmem:[#allocation2 + $0xd0] sm:$0xff] %v2252
      %2315 = vst [vmem:[#allocation2 + $0xd8] sm:$0xff] %v2253
      %2316 = vst [vmem:[#allocation2 + $0xe0] sm:$0xff] %v2254
      %2317 = vst [vmem:[#allocation2 + $0xe8] sm:$0xff] %v2255
      %2318 = vst [vmem:[#allocation2 + $0xf0] sm:$0xff] %v2256
      %2319 = vst [vmem:[#allocation2 + $0xf8] sm:$0xff] %v2257
      %2320 = vst [vmem:[#allocation2 + $0x100] sm:$0xff] %v2258
      %2321 = vst [vmem:[#allocation2 + $0x108] sm:$0xff] %v2259
      %2322 = vst [vmem:[#allocation2 + $0x110] sm:$0xff] %v2260
      %2323 = vst [vmem:[#allocation2 + $0x118] sm:$0xff] %v2261
      %2324 = vst [vmem:[#allocation2 + $0x120] sm:$0xff] %v2262
      %2325 = vst [vmem:[#allocation2 + $0x128] sm:$0xff] %v2263
      %2326 = vst [vmem:[#allocation2 + $0x130] sm:$0xff] %v2264
      %2327 = vst [vmem:[#allocation2 + $0x138] sm:$0xff] %v2265
      %2328 = vst [vmem:[#allocation2 + $0x140] sm:$0xff] %v2266
      %2329 = vst [vmem:[#allocation2 + $0x148] sm:$0xff] %v2267
      %2330 = vst [vmem:[#allocation2 + $0x150] sm:$0xff] %v2268
      %2331 = vst [vmem:[#allocation2 + $0x158] sm:$0xff] %v2269
      %2332 = vst [vmem:[#allocation2 + $0x160] sm:$0xff] %v2270
      %2333 = vst [vmem:[#allocation2 + $0x168] sm:$0xff] %v2271
      %2334 = vst [vmem:[#allocation2 + $0x170] sm:$0xff] %v2272
      %2335 = vst [vmem:[#allocation2 + $0x178] sm:$0xff] %v2273
      %2336 = vst [vmem:[#allocation2 + $0x180] sm:$0xff] %v2274
      %2337 = vst [vmem:[#allocation2 + $0x188] sm:$0xff] %v2275
      %2338 = vst [vmem:[#allocation2 + $0x190] sm:$0xff] %v2276
      %2339 = vst [vmem:[#allocation2 + $0x198] sm:$0xff] %v2277
      %2340 = vst [vmem:[#allocation2 + $0x1a0] sm:$0xff] %v2278
      %2341 = vst [vmem:[#allocation2 + $0x1a8] sm:$0xff] %v2279
      %2342 = vst [vmem:[#allocation2 + $0x1b0] sm:$0xff] %v2280
      %2343 = vst [vmem:[#allocation2 + $0x1b8] sm:$0xff] %v2281
      %2344 = vst [vmem:[#allocation2 + $0x1c0] sm:$0xff] %v2282
      %2345 = vst [vmem:[#allocation2 + $0x1c8] sm:$0xff] %v2283
      %2346 = vst [vmem:[#allocation2 + $0x1d0] sm:$0xff] %v2284
      %2347 = vst [vmem:[#allocation2 + $0x1d8] sm:$0xff] %v2285
      %2348 = vst [vmem:[#allocation2 + $0x1e0] sm:$0xff] %v2286
      %2349 = vst [vmem:[#allocation2 + $0x1e8] sm:$0xff] %v2287
      %v2350 = vld [vmem:[#allocation2 + $0x1f0] sm:$0xff]
      %v2351 = vld [vmem:[#allocation2 + $0x1f8] sm:$0xff]
      %v2352 = vld [vmem:[%s382] sm:$0xf]
      %v2353 = vld [vmem:[%s382 + $0x4] sm:$0xf]
      %v2354 = vld [vmem:[%s1803] sm:$0xf]
      %v2355 = vld [vmem:[%s1803 + $0x4] sm:$0x3]
      %v2358 = vunpack.c.l.b16 %v2352
      %v2359 = vunpack.c.l.b16 %v2353
      %v2360 = vpack.c.b16 %v2359, %v2358
      %v2363 = vunpack.c.l.b16 %v2354
      %v2364 = vunpack.c.l.b16 %v2355
      %v2365 = vpack.c.b16 %v2364, %v2363
      %v2367 = vsel %vm635, %v2360, 0
      %v2370 = vsel %vm732, %v2365, 0
      %2372 = vmatpush.bf16.msra.mxu0 0
      %2373 = vmatpush.bf16.msra.mxu0 0
      %2374 = vmatpush.bf16.msra.mxu0 0
      %2375 = vmatpush.bf16.msra.mxu0 0
      %2376 = vmatpush.bf16.msra.mxu0 0
      %2377 = vmatpush.bf16.msra.mxu0 0
      %2378 = vmatpush.bf16.msra.mxu0 0
      %2379 = vmatpush.bf16.msra.mxu0 %v2370
      %2380 = vmatmul.bf16.gmra.mxu0 %v2367
      %v2381 = vpop.f32.mrf.mxu0
      %v2382 = vadd.f32 0.0, %v2381
      %v2383 = vpop.f32.mrf.mxu0
      %v2384 = vadd.f32 0.0, %v2383
      %2385 = vdwg.mxu0
      %v2386 = vadd.f32 %v2350, %v2382
      %v2387 = vadd.f32 %v2351, %v2384
      %2388 = vst [vmem:[#allocation2 + $0x1f0] sm:$0xff] %v2386
      %2389 = vst [vmem:[#allocation2 + $0x1f8] sm:$0xff] %v2387
      %v2390 = vld [vmem:[#allocation2] sm:$0xff]
      %v2391 = vld [vmem:[#allocation2 + $0x8] sm:$0xff]
      %v2392 = vld [vmem:[#allocation2 + $0x10] sm:$0xff]
      %v2393 = vld [vmem:[#allocation2 + $0x18] sm:$0xff]
      %v2394 = vld [vmem:[#allocation2 + $0x20] sm:$0xff]
      %v2395 = vld [vmem:[#allocation2 + $0x28] sm:$0xff]
      %v2396 = vld [vmem:[#allocation2 + $0x30] sm:$0xff]
      %v2397 = vld [vmem:[#allocation2 + $0x38] sm:$0xff]
      %v2398 = vld [vmem:[#allocation2 + $0x40] sm:$0xff]
      %v2399 = vld [vmem:[#allocation2 + $0x48] sm:$0xff]
      %v2400 = vld [vmem:[#allocation2 + $0x50] sm:$0xff]
      %v2401 = vld [vmem:[#allocation2 + $0x58] sm:$0xff]
      %v2402 = vld [vmem:[#allocation2 + $0x60] sm:$0xff]
      %v2403 = vld [vmem:[#allocation2 + $0x68] sm:$0xff]
      %v2404 = vld [vmem:[#allocation2 + $0x70] sm:$0xff]
      %v2405 = vld [vmem:[#allocation2 + $0x78] sm:$0xff]
      %v2406 = vld [vmem:[#allocation2 + $0x80] sm:$0xff]
      %v2407 = vld [vmem:[#allocation2 + $0x88] sm:$0xff]
      %v2408 = vld [vmem:[#allocation2 + $0x90] sm:$0xff]
      %v2409 = vld [vmem:[#allocation2 + $0x98] sm:$0xff]
      %v2410 = vld [vmem:[#allocation2 + $0xa0] sm:$0xff]
      %v2411 = vld [vmem:[#allocation2 + $0xa8] sm:$0xff]
      %v2412 = vld [vmem:[#allocation2 + $0xb0] sm:$0xff]
      %v2413 = vld [vmem:[#allocation2 + $0xb8] sm:$0xff]
      %v2414 = vld [vmem:[#allocation2 + $0xc0] sm:$0xff]
      %v2415 = vld [vmem:[#allocation2 + $0xc8] sm:$0xff]
      %v2416 = vld [vmem:[#allocation2 + $0xd0] sm:$0xff]
      %v2417 = vld [vmem:[#allocation2 + $0xd8] sm:$0xff]
      %v2418 = vld [vmem:[#allocation2 + $0xe0] sm:$0xff]
      %v2419 = vld [vmem:[#allocation2 + $0xe8] sm:$0xff]
      %v2420 = vld [vmem:[#allocation2 + $0xf0] sm:$0xff]
      %v2421 = vld [vmem:[#allocation2 + $0xf8] sm:$0xff]
      %v2422 = vld [vmem:[#allocation2 + $0x100] sm:$0xff]
      %v2423 = vld [vmem:[#allocation2 + $0x108] sm:$0xff]
      %v2424 = vld [vmem:[#allocation2 + $0x110] sm:$0xff]
      %v2425 = vld [vmem:[#allocation2 + $0x118] sm:$0xff]
      %v2426 = vld [vmem:[#allocation2 + $0x120] sm:$0xff]
      %v2427 = vld [vmem:[#allocation2 + $0x128] sm:$0xff]
      %v2428 = vld [vmem:[#allocation2 + $0x130] sm:$0xff]
      %v2429 = vld [vmem:[#allocation2 + $0x138] sm:$0xff]
      %v2430 = vld [vmem:[#allocation2 + $0x140] sm:$0xff]
      %v2431 = vld [vmem:[#allocation2 + $0x148] sm:$0xff]
      %v2432 = vld [vmem:[#allocation2 + $0x150] sm:$0xff]
      %v2433 = vld [vmem:[#allocation2 + $0x158] sm:$0xff]
      %v2434 = vld [vmem:[#allocation2 + $0x160] sm:$0xff]
      %v2435 = vld [vmem:[#allocation2 + $0x168] sm:$0xff]
      %v2436 = vld [vmem:[#allocation2 + $0x170] sm:$0xff]
      %v2437 = vld [vmem:[#allocation2 + $0x178] sm:$0xff]
      %v2438 = vld [vmem:[#allocation2 + $0x180] sm:$0xff]
      %v2439 = vld [vmem:[#allocation2 + $0x188] sm:$0xff]
      %v2440 = vld [vmem:[#allocation2 + $0x190] sm:$0xff]
      %v2441 = vld [vmem:[#allocation2 + $0x198] sm:$0xff]
      %v2442 = vld [vmem:[#allocation2 + $0x1a0] sm:$0xff]
      %v2443 = vld [vmem:[#allocation2 + $0x1a8] sm:$0xff]
      %v2444 = vld [vmem:[#allocation2 + $0x1b0] sm:$0xff]
      %v2445 = vld [vmem:[#allocation2 + $0x1b8] sm:$0xff]
      %v2446 = vld [vmem:[#allocation2 + $0x1c0] sm:$0xff]
      %v2447 = vld [vmem:[#allocation2 + $0x1c8] sm:$0xff]
      %v2448 = vld [vmem:[#allocation2 + $0x1d0] sm:$0xff]
      %v2449 = vld [vmem:[#allocation2 + $0x1d8] sm:$0xff]
      %v2450 = vld [vmem:[#allocation2 + $0x1e0] sm:$0xff]
      %v2451 = vld [vmem:[#allocation2 + $0x1e8] sm:$0xff]
      %v2452 = vld [vmem:[#allocation2 + $0x1f0] sm:$0xff]
      %v2453 = vld [vmem:[#allocation2 + $0x1f8] sm:$0xff]
      %2454 = vst [vmem:[%s394] sm:$0xff] %v2390
      %2455 = vst [vmem:[%s394 + $0x8] sm:$0xff] %v2391
      %2456 = vst [vmem:[%s394 + $0x10] sm:$0xff] %v2392
      %2457 = vst [vmem:[%s394 + $0x18] sm:$0xff] %v2393
      %2458 = vst [vmem:[%s394 + $0x20] sm:$0xff] %v2394
      %2459 = vst [vmem:[%s394 + $0x28] sm:$0xff] %v2395
      %2460 = vst [vmem:[%s394 + $0x30] sm:$0xff] %v2396
      %2461 = vst [vmem:[%s394 + $0x38] sm:$0xff] %v2397
      %2462 = vst [vmem:[%s394 + $0x40] sm:$0xff] %v2398
      %2463 = vst [vmem:[%s394 + $0x48] sm:$0xff] %v2399
      %2464 = vst [vmem:[%s394 + $0x50] sm:$0xff] %v2400
      %2465 = vst [vmem:[%s394 + $0x58] sm:$0xff] %v2401
      %2466 = vst [vmem:[%s394 + $0x60] sm:$0xff] %v2402
      %2467 = vst [vmem:[%s394 + $0x68] sm:$0xff] %v2403
      %2468 = vst [vmem:[%s394 + $0x70] sm:$0xff] %v2404
      %2469 = vst [vmem:[%s394 + $0x78] sm:$0xff] %v2405
      %2470 = vst [vmem:[%s394 + $0x80] sm:$0xff] %v2406
      %2471 = vst [vmem:[%s394 + $0x88] sm:$0xff] %v2407
      %2472 = vst [vmem:[%s394 + $0x90] sm:$0xff] %v2408
      %2473 = vst [vmem:[%s394 + $0x98] sm:$0xff] %v2409
      %2474 = vst [vmem:[%s394 + $0xa0] sm:$0xff] %v2410
      %2475 = vst [vmem:[%s394 + $0xa8] sm:$0xff] %v2411
      %2476 = vst [vmem:[%s394 + $0xb0] sm:$0xff] %v2412
      %2477 = vst [vmem:[%s394 + $0xb8] sm:$0xff] %v2413
      %2478 = vst [vmem:[%s394 + $0xc0] sm:$0xff] %v2414
      %2479 = vst [vmem:[%s394 + $0xc8] sm:$0xff] %v2415
      %2480 = vst [vmem:[%s394 + $0xd0] sm:$0xff] %v2416
      %2481 = vst [vmem:[%s394 + $0xd8] sm:$0xff] %v2417
      %2482 = vst [vmem:[%s394 + $0xe0] sm:$0xff] %v2418
      %2483 = vst [vmem:[%s394 + $0xe8] sm:$0xff] %v2419
      %2484 = vst [vmem:[%s394 + $0xf0] sm:$0xff] %v2420
      %2485 = vst [vmem:[%s394 + $0xf8] sm:$0xff] %v2421
      %2486 = vst [vmem:[%s394 + $0x100] sm:$0xff] %v2422
      %2487 = vst [vmem:[%s394 + $0x108] sm:$0xff] %v2423
      %2488 = vst [vmem:[%s394 + $0x110] sm:$0xff] %v2424
      %2489 = vst [vmem:[%s394 + $0x118] sm:$0xff] %v2425
      %2490 = vst [vmem:[%s394 + $0x120] sm:$0xff] %v2426
      %2491 = vst [vmem:[%s394 + $0x128] sm:$0xff] %v2427
      %2492 = vst [vmem:[%s394 + $0x130] sm:$0xff] %v2428
      %2493 = vst [vmem:[%s394 + $0x138] sm:$0xff] %v2429
      %2494 = vst [vmem:[%s394 + $0x140] sm:$0xff] %v2430
      %2495 = vst [vmem:[%s394 + $0x148] sm:$0xff] %v2431
      %2496 = vst [vmem:[%s394 + $0x150] sm:$0xff] %v2432
      %2497 = vst [vmem:[%s394 + $0x158] sm:$0xff] %v2433
      %2498 = vst [vmem:[%s394 + $0x160] sm:$0xff] %v2434
      %2499 = vst [vmem:[%s394 + $0x168] sm:$0xff] %v2435
      %2500 = vst [vmem:[%s394 + $0x170] sm:$0xff] %v2436
      %2501 = vst [vmem:[%s394 + $0x178] sm:$0xff] %v2437
      %2502 = vst [vmem:[%s394 + $0x180] sm:$0xff] %v2438
      %2503 = vst [vmem:[%s394 + $0x188] sm:$0xff] %v2439
      %2504 = vst [vmem:[%s394 + $0x190] sm:$0xff] %v2440
      %2505 = vst [vmem:[%s394 + $0x198] sm:$0xff] %v2441
      %2506 = vst [vmem:[%s394 + $0x1a0] sm:$0xff] %v2442
      %2507 = vst [vmem:[%s394 + $0x1a8] sm:$0xff] %v2443
      %2508 = vst [vmem:[%s394 + $0x1b0] sm:$0xff] %v2444
      %2509 = vst [vmem:[%s394 + $0x1b8] sm:$0xff] %v2445
      %2510 = vst [vmem:[%s394 + $0x1c0] sm:$0xff] %v2446
      %2511 = vst [vmem:[%s394 + $0x1c8] sm:$0xff] %v2447
      %2512 = vst [vmem:[%s394 + $0x1d0] sm:$0xff] %v2448
      %2513 = vst [vmem:[%s394 + $0x1d8] sm:$0xff] %v2449
      %2514 = vst [vmem:[%s394 + $0x1e0] sm:$0xff] %v2450
      %2515 = vst [vmem:[%s394 + $0x1e8] sm:$0xff] %v2451
      %2516 = vst [vmem:[%s394 + $0x1f0] sm:$0xff] %v2452
      %2517 = vst [vmem:[%s394 + $0x1f8] sm:$0xff] %v2453
      %v2518 = vld [vmem:[%s389] sm:$0xf]
      %v2520 = vperm.slane %v2518, 0
      %v2521 = vperm.slane %v2518, 1
      %v2522 = vperm.slane %v2518, 2
      %v2523 = vperm.slane %v2518, 3
      %2528 = vmatpush.msra.mxu0 %v2405
      %2529 = vmatpush.msra.mxu0 %v2404
      %2530 = vmatpush.msra.mxu0 %v2403
      %2531 = vmatpush.msra.mxu0 %v2402
      %2532 = vmatpush.msra.mxu0 %v2401
      %2533 = vmatpush.msra.mxu0 %v2400
      %2534 = vmatpush.msra.mxu0 %v2399
      %2535 = vmatpush.msra.mxu0 %v2398
      %2536 = vmatpush.msra.mxu0 %v2397
      %2537 = vmatpush.msra.mxu0 %v2396
      %2538 = vmatpush.msra.mxu0 %v2395
      %2539 = vmatpush.msra.mxu0 %v2394
      %2540 = vmatpush.msra.mxu0 %v2393
      %2541 = vmatpush.msra.mxu0 %v2392
      %2542 = vmatpush.msra.mxu0 %v2391
      %2543 = vmatpush.msra.mxu0 %v2390
      %2544 = vmatmul.f32.gmra.mxu0 %v2520
      %v2545 = vpop.f32.mrf.mxu0
      %v2546 = vadd.f32 0.0, %v2545
      %2547 = vdwg.mxu0
      %2548 = vmatpush.msra.mxu0 %v2421
      %2549 = vmatpush.msra.mxu0 %v2420
      %2550 = vmatpush.msra.mxu0 %v2419
      %2551 = vmatpush.msra.mxu0 %v2418
      %2552 = vmatpush.msra.mxu0 %v2417
      %2553 = vmatpush.msra.mxu0 %v2416
      %2554 = vmatpush.msra.mxu0 %v2415
      %2555 = vmatpush.msra.mxu0 %v2414
      %2556 = vmatpush.msra.mxu0 %v2413
      %2557 = vmatpush.msra.mxu0 %v2412
      %2558 = vmatpush.msra.mxu0 %v2411
      %2559 = vmatpush.msra.mxu0 %v2410
      %2560 = vmatpush.msra.mxu0 %v2409
      %2561 = vmatpush.msra.mxu0 %v2408
      %2562 = vmatpush.msra.mxu0 %v2407
      %2563 = vmatpush.msra.mxu0 %v2406
      %2564 = vmatmul.f32.gmra.mxu0 %v2521
      %v2565 = vpop.f32.mrf.mxu0
      %v2566 = vadd.f32 %v2546, %v2565
      %2567 = vdwg.mxu0
      %2568 = vmatpush.msra.mxu0 %v2437
      %2569 = vmatpush.msra.mxu0 %v2436
      %2570 = vmatpush.msra.mxu0 %v2435
      %2571 = vmatpush.msra.mxu0 %v2434
      %2572 = vmatpush.msra.mxu0 %v2433
      %2573 = vmatpush.msra.mxu0 %v2432
      %2574 = vmatpush.msra.mxu0 %v2431
      %2575 = vmatpush.msra.mxu0 %v2430
      %2576 = vmatpush.msra.mxu0 %v2429
      %2577 = vmatpush.msra.mxu0 %v2428
      %2578 = vmatpush.msra.mxu0 %v2427
      %2579 = vmatpush.msra.mxu0 %v2426
      %2580 = vmatpush.msra.mxu0 %v2425
      %2581 = vmatpush.msra.mxu0 %v2424
      %2582 = vmatpush.msra.mxu0 %v2423
      %2583 = vmatpush.msra.mxu0 %v2422
      %2584 = vmatmul.f32.gmra.mxu0 %v2522
      %v2585 = vpop.f32.mrf.mxu0
      %v2586 = vadd.f32 %v2566, %v2585
      %2587 = vdwg.mxu0
      %2588 = vmatpush.msra.mxu0 %v2453
      %2589 = vmatpush.msra.mxu0 %v2452
      %2590 = vmatpush.msra.mxu0 %v2451
      %2591 = vmatpush.msra.mxu0 %v2450
      %2592 = vmatpush.msra.mxu0 %v2449
      %2593 = vmatpush.msra.mxu0 %v2448
      %2594 = vmatpush.msra.mxu0 %v2447
      %2595 = vmatpush.msra.mxu0 %v2446
      %2596 = vmatpush.msra.mxu0 %v2445
      %2597 = vmatpush.msra.mxu0 %v2444
      %2598 = vmatpush.msra.mxu0 %v2443
      %2599 = vmatpush.msra.mxu0 %v2442
      %2600 = vmatpush.msra.mxu0 %v2441
      %2601 = vmatpush.msra.mxu0 %v2440
      %2602 = vmatpush.msra.mxu0 %v2439
      %2603 = vmatpush.msra.mxu0 %v2438
      %2604 = vmatmul.f32.gmra.mxu0 %v2523
      %v2605 = vpop.f32.mrf.mxu0
      %v2606 = vadd.f32 %v2586, %v2605
      %2607 = vdwg.mxu0
      %2608 = vst [vmem:[%s398] sm:$0x1] %v2606
      %v2609 = vmul.f32 %v2390, %v2390
      %v2610 = vmul.f32 %v2391, %v2391
      %v2611 = vmul.f32 %v2392, %v2392
      %v2612 = vmul.f32 %v2393, %v2393
      %v2613 = vmul.f32 %v2394, %v2394
      %v2614 = vmul.f32 %v2395, %v2395
      %v2615 = vmul.f32 %v2396, %v2396
      %v2616 = vmul.f32 %v2397, %v2397
      %v2617 = vmul.f32 %v2398, %v2398
      %v2618 = vmul.f32 %v2399, %v2399
      %v2619 = vmul.f32 %v2400, %v2400
      %v2620 = vmul.f32 %v2401, %v2401
      %v2621 = vmul.f32 %v2402, %v2402
      %v2622 = vmul.f32 %v2403, %v2403
      %v2623 = vmul.f32 %v2404, %v2404
      %v2624 = vmul.f32 %v2405, %v2405
      %v2625 = vmul.f32 %v2406, %v2406
      %v2626 = vmul.f32 %v2407, %v2407
      %v2627 = vmul.f32 %v2408, %v2408
      %v2628 = vmul.f32 %v2409, %v2409
      %v2629 = vmul.f32 %v2410, %v2410
      %v2630 = vmul.f32 %v2411, %v2411
      %v2631 = vmul.f32 %v2412, %v2412
      %v2632 = vmul.f32 %v2413, %v2413
      %v2633 = vmul.f32 %v2414, %v2414
      %v2634 = vmul.f32 %v2415, %v2415
      %v2635 = vmul.f32 %v2416, %v2416
      %v2636 = vmul.f32 %v2417, %v2417
      %v2637 = vmul.f32 %v2418, %v2418
      %v2638 = vmul.f32 %v2419, %v2419
      %v2639 = vmul.f32 %v2420, %v2420
      %v2640 = vmul.f32 %v2421, %v2421
      %v2641 = vmul.f32 %v2422, %v2422
      %v2642 = vmul.f32 %v2423, %v2423
      %v2643 = vmul.f32 %v2424, %v2424
      %v2644 = vmul.f32 %v2425, %v2425
      %v2645 = vmul.f32 %v2426, %v2426
      %v2646 = vmul.f32 %v2427, %v2427
      %v2647 = vmul.f32 %v2428, %v2428
      %v2648 = vmul.f32 %v2429, %v2429
      %v2649 = vmul.f32 %v2430, %v2430
      %v2650 = vmul.f32 %v2431, %v2431
      %v2651 = vmul.f32 %v2432, %v2432
      %v2652 = vmul.f32 %v2433, %v2433
      %v2653 = vmul.f32 %v2434, %v2434
      %v2654 = vmul.f32 %v2435, %v2435
      %v2655 = vmul.f32 %v2436, %v2436
      %v2656 = vmul.f32 %v2437, %v2437
      %v2657 = vmul.f32 %v2438, %v2438
      %v2658 = vmul.f32 %v2439, %v2439
      %v2659 = vmul.f32 %v2440, %v2440
      %v2660 = vmul.f32 %v2441, %v2441
      %v2661 = vmul.f32 %v2442, %v2442
      %v2662 = vmul.f32 %v2443, %v2443
      %v2663 = vmul.f32 %v2444, %v2444
      %v2664 = vmul.f32 %v2445, %v2445
      %v2665 = vmul.f32 %v2446, %v2446
      %v2666 = vmul.f32 %v2447, %v2447
      %v2667 = vmul.f32 %v2448, %v2448
      %v2668 = vmul.f32 %v2449, %v2449
      %v2669 = vmul.f32 %v2450, %v2450
      %v2670 = vmul.f32 %v2451, %v2451
      %v2671 = vmul.f32 %v2452, %v2452
      %v2672 = vmul.f32 %v2453, %v2453
      %2673 = vmatpush.msra.mxu0 %v2624
      %2674 = vmatpush.msra.mxu0 %v2623
      %2675 = vmatpush.msra.mxu0 %v2622
      %2676 = vmatpush.msra.mxu0 %v2621
      %2677 = vmatpush.msra.mxu0 %v2620
      %2678 = vmatpush.msra.mxu0 %v2619
      %2679 = vmatpush.msra.mxu0 %v2618
      %2680 = vmatpush.msra.mxu0 %v2617
      %2681 = vmatpush.msra.mxu0 %v2616
      %2682 = vmatpush.msra.mxu0 %v2615
      %2683 = vmatpush.msra.mxu0 %v2614
      %2684 = vmatpush.msra.mxu0 %v2613
      %2685 = vmatpush.msra.mxu0 %v2612
      %2686 = vmatpush.msra.mxu0 %v2611
      %2687 = vmatpush.msra.mxu0 %v2610
      %2688 = vmatpush.msra.mxu0 %v2609
      %2689 = vmatmul.f32.gmra.mxu0 %v2520
      %v2690 = vpop.f32.mrf.mxu0
      %v2691 = vadd.f32 0.0, %v2690
      %2692 = vdwg.mxu0
      %2693 = vmatpush.msra.mxu0 %v2640
      %2694 = vmatpush.msra.mxu0 %v2639
      %2695 = vmatpush.msra.mxu0 %v2638
      %2696 = vmatpush.msra.mxu0 %v2637
      %2697 = vmatpush.msra.mxu0 %v2636
      %2698 = vmatpush.msra.mxu0 %v2635
      %2699 = vmatpush.msra.mxu0 %v2634
      %2700 = vmatpush.msra.mxu0 %v2633
      %2701 = vmatpush.msra.mxu0 %v2632
      %2702 = vmatpush.msra.mxu0 %v2631
      %2703 = vmatpush.msra.mxu0 %v2630
      %2704 = vmatpush.msra.mxu0 %v2629
      %2705 = vmatpush.msra.mxu0 %v2628
      %2706 = vmatpush.msra.mxu0 %v2627
      %2707 = vmatpush.msra.mxu0 %v2626
      %2708 = vmatpush.msra.mxu0 %v2625
      %2709 = vmatmul.f32.gmra.mxu0 %v2521
      %v2710 = vpop.f32.mrf.mxu0
      %v2711 = vadd.f32 %v2691, %v2710
      %2712 = vdwg.mxu0
      %2713 = vmatpush.msra.mxu0 %v2656
      %2714 = vmatpush.msra.mxu0 %v2655
      %2715 = vmatpush.msra.mxu0 %v2654
      %2716 = vmatpush.msra.mxu0 %v2653
      %2717 = vmatpush.msra.mxu0 %v2652
      %2718 = vmatpush.msra.mxu0 %v2651
      %2719 = vmatpush.msra.mxu0 %v2650
      %2720 = vmatpush.msra.mxu0 %v2649
      %2721 = vmatpush.msra.mxu0 %v2648
      %2722 = vmatpush.msra.mxu0 %v2647
      %2723 = vmatpush.msra.mxu0 %v2646
      %2724 = vmatpush.msra.mxu0 %v2645
      %2725 = vmatpush.msra.mxu0 %v2644
      %2726 = vmatpush.msra.mxu0 %v2643
      %2727 = vmatpush.msra.mxu0 %v2642
      %2728 = vmatpush.msra.mxu0 %v2641
      %2729 = vmatmul.f32.gmra.mxu0 %v2522
      %v2730 = vpop.f32.mrf.mxu0
      %v2731 = vadd.f32 %v2711, %v2730
      %2732 = vdwg.mxu0
      %2733 = vmatpush.msra.mxu0 %v2672
      %2734 = vmatpush.msra.mxu0 %v2671
      %2735 = vmatpush.msra.mxu0 %v2670
      %2736 = vmatpush.msra.mxu0 %v2669
      %2737 = vmatpush.msra.mxu0 %v2668
      %2738 = vmatpush.msra.mxu0 %v2667
      %2739 = vmatpush.msra.mxu0 %v2666
      %2740 = vmatpush.msra.mxu0 %v2665
      %2741 = vmatpush.msra.mxu0 %v2664
      %2742 = vmatpush.msra.mxu0 %v2663
      %2743 = vmatpush.msra.mxu0 %v2662
      %2744 = vmatpush.msra.mxu0 %v2661
      %2745 = vmatpush.msra.mxu0 %v2660
      %2746 = vmatpush.msra.mxu0 %v2659
      %2747 = vmatpush.msra.mxu0 %v2658
      %2748 = vmatpush.msra.mxu0 %v2657
      %2749 = vmatmul.f32.gmra.mxu0 %v2523
      %v2750 = vpop.f32.mrf.mxu0
      %v2751 = vadd.f32 %v2731, %v2750
      %2752 = vdwg.mxu0
      %2753 = vst [vmem:[%s401] sm:$0x1] %v2751
      %s2754 = smul.u32 64, %s19
      %p2755 = scmp.lt.s32.totalorder %s2754, 127
      %s2756 = scalar_select %p2755, %s2754, 127
      %s2757 = smul.addr %s2756, 8
      %s2758 = scalar_lea.vmem %s5, %s2757
      %p2759 = scmp.lt.s32.totalorder %s19, 1
      %s2760 = scalar_select %p2759, %s19, 1
      %s2761 = scalar_lea.vmem %s6, %s2760
      %p2762 = scmp.lt.s32.totalorder %s19, 1
      %s2763 = scalar_select %p2762, %s19, 1
      %s2764 = scalar_lea.vmem %s7, %s2763
      // Predicated region
      $region41: #{conv_block_forward.2} parent=39 // pred_check
        %p2765 = pneg %p174
      $region42: #{conv_block_forward.2} parent=39 // pred_check_branch
        %2767 = sbr.rel (%p2765) target = $region44
      $region43: #{conv_block_forward.2} parent=39 // pred_region
        %s2768 = smul.u32 64, %s19
      $region44: #{conv_block_forward.2} parent=39 // pred_fallthru
        _
      // Predicated region
      $region45: #{conv_block_forward.2} parent=39 // pred_check
        %p2769 = pneg %p200
      $region46: #{conv_block_forward.2} parent=39 // pred_check_branch
        %2771 = sbr.rel (%p2769) target = $region48
      $region47: #{conv_block_forward.2} parent=39 // pred_region
        _
      $region48: #{conv_block_forward.2} parent=39 // pred_fallthru
        _
      // Predicated region
      $region49: #{conv_block_forward.2} parent=39 // pred_check
        %p2772 = pneg %p226
      $region50: #{conv_block_forward.2} parent=39 // pred_check_branch
        %2774 = sbr.rel (%p2772) target = $region52
      $region51: #{conv_block_forward.2} parent=39 // pred_region
        _
      $region52: #{conv_block_forward.2} parent=39 // pred_fallthru
        _
    $region40: #{conv_block_forward.2} parent=5 // pred_fallthru
      _
    %p2775 = scmp.le.s32.totalorder 2, %s14
    // Predicated region
    $region53: #{conv_block_forward.2} parent=5 // pred_check
      %p2776 = pneg %p2775
    $region54: #{conv_block_forward.2} parent=5 // pred_check_branch
      %2778 = sbr.rel (%p2776) target = $region56
    $region55: #{conv_block_forward.2} parent=5 // pred_region
      %s2779 = ssub.s32 %s14, 2
      // Predicated region
      $region57: #{conv_block_forward.2} parent=55 // pred_check
        %p2780 = pneg %p180
      $region58: #{conv_block_forward.2} parent=55 // pred_check_branch
        %2782 = sbr.rel (%p2780) target = $region60
      $region59: #{conv_block_forward.2} parent=55 // pred_region
        %s2783 = smul.u32 64, %s20
        %p2784 = scmp.lt.s32.totalorder %s2783, 127
        %s2785 = scalar_select %p2784, %s2783, 127
        %s2786 = smul.addr %s2785, 8
        %s2787 = scalar_lea.vmem %s5, %s2786
      $region60: #{conv_block_forward.2} parent=55 // pred_fallthru
        _
      // Predicated region
      $region61: #{conv_block_forward.2} parent=55 // pred_check
        %p2788 = pneg %p206
      $region62: #{conv_block_forward.2} parent=55 // pred_check_branch
        %2790 = sbr.rel (%p2788) target = $region64
      $region63: #{conv_block_forward.2} parent=55 // pred_region
        %p2791 = scmp.lt.s32.totalorder %s20, 1
        %s2792 = scalar_select %p2791, %s20, 1
        %s2793 = scalar_lea.vmem %s6, %s2792
      $region64: #{conv_block_forward.2} parent=55 // pred_fallthru
        _
      // Predicated region
      $region65: #{conv_block_forward.2} parent=55 // pred_check
        %p2794 = pneg %p232
      $region66: #{conv_block_forward.2} parent=55 // pred_check_branch
        %2796 = sbr.rel (%p2794) target = $region68
      $region67: #{conv_block_forward.2} parent=55 // pred_region
        %p2797 = scmp.lt.s32.totalorder %s20, 1
        %s2798 = scalar_select %p2797, %s20, 1
        %s2799 = scalar_lea.vmem %s7, %s2798
      $region68: #{conv_block_forward.2} parent=55 // pred_fallthru
        _
    $region56: #{conv_block_forward.2} parent=5 // pred_fallthru
      _
  $region6: #{conv_block_forward.2} parent=0 // loop_footer
    %s18 = sadd.s32 1, %s14
  $region7: #{conv_block_forward.2} parent=0 // loop_footer_branch
    %13 = sbr.rel target = $region3
  $region8: #{conv_block_forward.2} parent=0 // loop_exit
    _

</llo_original>
